<compile_context>
chip_gen: v6e
topology: v6e:2x2x1
jax: 0.10.0
libtpu: 0.0.40
codegen_flags: <defaults>
</compile_context>

<pallas_src>
import functools

import jax
import jax.numpy as jnp
from jax.experimental import pallas as pl
from jax.experimental.pallas import tpu as pltpu

H = 64        # logical hidden size (matches the PyTorch module)
HP = 128      # per-gate lane padding: one full vreg lane group
GP = 4 * HP   # padded gate width
BP = 8        # batch padded to one f32 sublane tile

# PyTorch LSTM gate order is [i, f, g, o]; the kernel uses [i, f, o, g] so the three
# sigmoid gates are contiguous.
_GATE_ORDER = (0, 1, 3, 2)


def _lstm_fc_kernel(xproj_ref,   # (T*BP, GP)  f32   layer-1 input proj (+b1), time-major
                    whh1_ref,    # (H, GP)     bf16  layer-1 recurrent
                    wih2_hbm,    # (H, GP)     bf16  layer-2 input weights  (HBM, manual DMA)
                    whh2_hbm,    # (H, GP)     bf16  layer-2 recurrent      (HBM, manual DMA)
                    b2_ref,      # (1, GP)     f32   b_ih + b_hh, layer 2
                    wfc_ref,     # (H, O)      f32
                    bfc_ref,     # (1, O)      f32
                    out_ref,     # (BP, O)     f32
                    wih2_buf,    # (H, GP)     bf16  VMEM scratch
                    whh2_buf,    # (H, GP)     bf16  VMEM scratch
                    dma_sem,     # DMA semaphores (2,)
                    *, seq_len: int, batch_p: int, hid: int, hp: int):
    T, Bp = seq_len, batch_p
    gp = 4 * hp

    # Kick off the layer-2 weight DMA immediately; it overlaps step-0 layer-1 compute
    # and is waited on just before its first use.
    cp_wih2 = pltpu.make_async_copy(wih2_hbm, wih2_buf, dma_sem.at[0])
    cp_whh2 = pltpu.make_async_copy(whh2_hbm, whh2_buf, dma_sem.at[1])
    cp_wih2.start()
    cp_whh2.start()

    whh1 = whh1_ref[...]                                    # bf16 (H, GP)
    b2 = jnp.broadcast_to(b2_ref[...], (Bp, gp))            # hoisted broadcast

    def cell_update(gates, c):
        # gates: (Bp, gp) f32, gate order [i, f, o, g]; each gate block is hp lanes wide
        # (128-aligned offsets), only the first `hid` lanes of each block are real.
        sig = jax.nn.sigmoid(gates[:, :3 * hp])             # i | f | o, one EUP call site
        i_g = sig[:, 0 * hp:0 * hp + hid]
        f_g = sig[:, 1 * hp:1 * hp + hid]
        o_g = sig[:, 2 * hp:2 * hp + hid]
        g_g = jnp.tanh(gates[:, 3 * hp:3 * hp + hid])
        c_new = f_g * c + i_g * g_g                         # (Bp, hid) f32
        h_new = o_g * jnp.tanh(c_new)
        return h_new, c_new

    c1 = jnp.zeros((Bp, hid), jnp.float32)
    c2 = jnp.zeros((Bp, hid), jnp.float32)
    h1b = h2b = None        # h == 0 at t == 0; the recurrent matmuls are skipped there
    wih2 = whh2 = None
    h2 = None

    # Fully unrolled recurrence (T is small & static); 2 K=64 bf16 matmuls per step on
    # the serial chain, plus one off-path matmul for layer-2 recurrence.
    # TODO(synk): for long sequences switch to lax.fori_loop carrying (h1,c1,h2,c2) to
    # bound instruction memory / compile time.
    for t in range(T):
        xp = xproj_ref[t * Bp:(t + 1) * Bp, :]              # aligned (8, gp) tile

        # ---- layer 1: recurrent matmul only (input projection precomputed in XLA).
        if t == 0:
            gates1 = xp
        else:
            gates1 = xp + jnp.dot(h1b, whh1, preferred_element_type=jnp.float32)
        h1, c1 = cell_update(gates1, c1)
        h1b = h1.astype(jnp.bfloat16)                       # (Bp, hid) bf16

        if t == 0:
            cp_wih2.wait()
            cp_whh2.wait()
            wih2 = wih2_buf[...]
            whh2 = whh2_buf[...]

        # ---- layer 2: separate input / recurrent matmuls so dot(h2(t-1), whh2) can be
        # issued in parallel with layer-1 work of step t.
        gates2 = jnp.dot(h1b, wih2, preferred_element_type=jnp.float32) + b2
        if t > 0:
            gates2 = gates2 + jnp.dot(h2b, whh2, preferred_element_type=jnp.float32)
        h2, c2 = cell_update(gates2, c2)
        h2b = h2.astype(jnp.bfloat16)

    # Linear head on the last timestep's layer-2 hidden state (f32, off the chain).
    out = jnp.dot(h2, wfc_ref[...], preferred_element_type=jnp.float32) + bfc_ref[...]
    out_ref[...] = out.astype(out_ref.dtype)


def lstm_model_forward(x, kparams):
    """x: (B, T, D_in) batch_first (PyTorch convention). Returns (B, output_size)."""
    B, T, D_in = x.shape
    O = kparams["wfc"].shape[1]
    assert B <= BP, "single padded batch tile assumes B <= 8"
    # TODO(synk): for real batch sizes (esp. v7x with 2 TensorCores) add a 'parallel'
    # grid over batch tiles instead of one padded tile.

    # time-major, batch zero-padded to a full f32 sublane tile (8 rows).
    x_tm = jnp.transpose(x, (1, 0, 2)).astype(jnp.float32)          # (T, B, D)
    x_tm = jnp.pad(x_tm, ((0, 0), (0, BP - B), (0, 0)))             # (T, BP, D)
    x_flat = x_tm.reshape(T * BP, D_in)

    # Layer-1 input projection in XLA, f32 (K=6 is a terrible MXU shape; doing it here
    # keeps it off the kernel's serial chain and lets it overlap the weight DMA).
    xproj = x_flat @ kparams["wih1"] + kparams["b1"]                # (T*BP, GP) f32

    vmem = pl.BlockSpec(memory_space=pltpu.MemorySpace.VMEM)
    hbm = pl.BlockSpec(memory_space=pl.ANY)
    kernel = functools.partial(_lstm_fc_kernel, seq_len=T, batch_p=BP, hid=H, hp=HP)

    out_p = pl.pallas_call(
        kernel,
        out_shape=jax.ShapeDtypeStruct((BP, O), jnp.float32),
        in_specs=[vmem, vmem, hbm, hbm, vmem, vmem, vmem],
        out_specs=vmem,
        scratch_shapes=[
            pltpu.VMEM((H, GP), jnp.bfloat16),       # wih2 landing buffer
            pltpu.VMEM((H, GP), jnp.bfloat16),       # whh2 landing buffer
            pltpu.SemaphoreType.DMA((2,)),
        ],
    )(xproj,
      kparams["whh1"], kparams["wih2"], kparams["whh2"], kparams["b2"],
      kparams["wfc"], kparams["bfc"])
    return out_p[:B]


# ----------------------------- parameter handling -----------------------------

def init_params(key, input_size, hidden_size, output_size):
    """PyTorch-shaped LSTM + Linear parameters (float32)."""
    Hh = hidden_size
    k = 1.0 / jnp.sqrt(jnp.float32(Hh))
    keys = jax.random.split(key, 10)

    def u(kk, shape):
        return jax.random.uniform(kk, shape, jnp.float32, -k, k)

    return {
        "w_ih_l0": u(keys[0], (4 * Hh, input_size)),
        "w_hh_l0": u(keys[1], (4 * Hh, Hh)),
        "b_ih_l0": u(keys[2], (4 * Hh,)),
        "b_hh_l0": u(keys[3], (4 * Hh,)),
        "w_ih_l1": u(keys[4], (4 * Hh, Hh)),
        "w_hh_l1": u(keys[5], (4 * Hh, Hh)),
        "b_ih_l1": u(keys[6], (4 * Hh,)),
        "b_hh_l1": u(keys[7], (4 * Hh,)),
        "w_fc": jax.random.uniform(keys[8], (output_size, Hh), jnp.float32, -k, k),
        "b_fc": jax.random.uniform(keys[9], (output_size,), jnp.float32, -k, k),
    }


def _gate_pad_cols(w, hidden, hp):
    """(rows, 4*hidden) in PyTorch gate order [i,f,g,o] -> (rows, 4*hp) in kernel order
    [i,f,o,g], each gate block zero-padded to hp columns (128-lane aligned offsets)."""
    rows = w.shape[0]
    w4 = w.reshape(rows, 4, hidden)[:, jnp.array(_GATE_ORDER), :]
    return jnp.pad(w4, ((0, 0), (0, 0), (0, hp - hidden))).reshape(rows, 4 * hp)


def prepare_kernel_params(p, hidden_size, hp=HP):
    """Pre-transpose, gate-reorder/pad to 128 lanes per gate, cast recurrent weights to
    bf16. No K-row padding: matmul LHS is the 64-lane hidden state / input directly."""
    Hh = hidden_size
    bf16 = jnp.bfloat16

    # layer 1: input projection runs in f32 in the XLA wrapper (wih1/b1 stay f32).
    wih1 = _gate_pad_cols(p["w_ih_l0"].T, Hh, hp)                        # (D_in, GP)
    b1 = _gate_pad_cols((p["b_ih_l0"] + p["b_hh_l0"]).reshape(1, -1), Hh, hp)
    whh1 = _gate_pad_cols(p["w_hh_l0"].T, Hh, hp).astype(bf16)           # (H, GP)

    # layer 2: kept un-fused (separate input / recurrent matmuls in the kernel).
    wih2 = _gate_pad_cols(p["w_ih_l1"].T, Hh, hp).astype(bf16)           # (H, GP)
    whh2 = _gate_pad_cols(p["w_hh_l1"].T, Hh, hp).astype(bf16)           # (H, GP)
    b2 = _gate_pad_cols((p["b_ih_l1"] + p["b_hh_l1"]).reshape(1, -1), Hh, hp)

    # fc head, f32 (off the recurrent chain).
    wfc = p["w_fc"].T                                                    # (H, O)
    bfc = p["b_fc"].reshape(1, -1)

    return {"wih1": wih1, "b1": b1, "whh1": whh1,
            "wih2": wih2, "whh2": whh2, "b2": b2,
            "wfc": wfc, "bfc": bfc}


# ------------------------------- reference path -------------------------------

def reference_forward(x, p, hidden_size):
    """Pure-JAX f32 reference mirroring torch.nn.LSTM(num_layers=2) + Linear."""
    Hh = hidden_size
    B, T, _ = x.shape
    wih1, whh1 = p["w_ih_l0"].T, p["w_hh_l0"].T
    b1 = (p["b_ih_l0"] + p["b_hh_l0"])[None, :]
    wih2, whh2 = p["w_ih_l1"].T, p["w_hh_l1"].T
    b2 = (p["b_ih_l1"] + p["b_hh_l1"])[None, :]

    def cell(x_t, h, c, wih, whh, b):
        g = x_t @ wih + h @ whh + b
        i = jax.nn.sigmoid(g[:, 0 * Hh:1 * Hh])
        f = jax.nn.sigmoid(g[:, 1 * Hh:2 * Hh])
        gg = jnp.tanh(g[:, 2 * Hh:3 * Hh])
        o = jax.nn.sigmoid(g[:, 3 * Hh:4 * Hh])
        c = f * c + i * gg
        h = o * jnp.tanh(c)
        return h, c

    h1 = c1 = h2 = c2 = jnp.zeros((B, Hh), jnp.float32)
    for t in range(T):
        h1, c1 = cell(x[:, t, :], h1, c1, wih1, whh1, b1)
        h2, c2 = cell(h1, h2, c2, wih2, whh2, b2)
    return h2 @ p["w_fc"].T + p["b_fc"][None, :]


if __name__ == "__main__":
    INPUT_SIZE, HIDDEN_SIZE, OUTPUT_SIZE = 6, 64, 1
    BATCH, SEQ = 2, 8

    root = jax.random.PRNGKey(0)
    k_x, k_p = jax.random.split(root)

    x = jax.random.normal(k_x, (BATCH, SEQ, INPUT_SIZE), jnp.float32)
    params = init_params(k_p, INPUT_SIZE, HIDDEN_SIZE, OUTPUT_SIZE)
    kparams = prepare_kernel_params(params, HIDDEN_SIZE)

    out = lstm_model_forward(x, kparams)
    out = jax.block_until_ready(out)

    ref = reference_forward(x, params, HIDDEN_SIZE)
    assert out.shape == (BATCH, OUTPUT_SIZE)
    # Recurrent weights / per-step h are bf16 (f32 MXU accumulation) vs the f32
    # reference -> relaxed tolerance; input projection and fc head are f32.
    assert jnp.allclose(out, ref, atol=5e-2, rtol=5e-2), (out, ref)

    print("KERNEL_OK")
</pallas_src>

<mosaic_0001>
module attributes {stable_mosaic.version = 11 : i64} {
  func.func @_lstm_fc_kernel(%arg0: memref<64x512xf32, #tpu.memory_space<vmem>>, %arg1: memref<64x512xbf16, #tpu.memory_space<vmem>>, %arg2: memref<64x512xbf16, #tpu.memory_space<any>>, %arg3: memref<64x512xbf16, #tpu.memory_space<any>>, %arg4: memref<1x512xf32, #tpu.memory_space<vmem>>, %arg5: memref<64x1xf32, #tpu.memory_space<vmem>>, %arg6: memref<1x1xf32, #tpu.memory_space<vmem>>, %arg7: memref<8x1xf32, #tpu.memory_space<vmem>>, %arg8: memref<64x512xbf16, #tpu.memory_space<vmem>>, %arg9: memref<64x512xbf16, #tpu.memory_space<vmem>>, %arg10: memref<2x!tpu.dma_semaphore, #tpu.memory_space<semaphore_mem>>) attributes {dimension_semantics = [], scalar_prefetch = 0 : i64, scratch_operands = 3 : i64, tpu.core_type = #tpu.core_type<tc>} {
    %c0_i32 = arith.constant 0 : i32
    %0 = tpu.memref_slice %arg10[%c0_i32] : memref<2x!tpu.dma_semaphore, #tpu.memory_space<semaphore_mem>> -> memref<1x!tpu.dma_semaphore, #tpu.memory_space<semaphore_mem>>
    %1 = tpu.memref_squeeze %0 : memref<1x!tpu.dma_semaphore, #tpu.memory_space<semaphore_mem>> -> memref<!tpu.dma_semaphore, #tpu.memory_space<semaphore_mem>>
    tpu.enqueue_dma source(%arg2 : memref<64x512xbf16, #tpu.memory_space<any>>) target(%arg8 : memref<64x512xbf16, #tpu.memory_space<vmem>>) target_semaphore(%1 : memref<!tpu.dma_semaphore, #tpu.memory_space<semaphore_mem>>)
    %c1_i32 = arith.constant 1 : i32
    %2 = tpu.memref_slice %arg10[%c1_i32] : memref<2x!tpu.dma_semaphore, #tpu.memory_space<semaphore_mem>> -> memref<1x!tpu.dma_semaphore, #tpu.memory_space<semaphore_mem>>
    %3 = tpu.memref_squeeze %2 : memref<1x!tpu.dma_semaphore, #tpu.memory_space<semaphore_mem>> -> memref<!tpu.dma_semaphore, #tpu.memory_space<semaphore_mem>>
    tpu.enqueue_dma source(%arg3 : memref<64x512xbf16, #tpu.memory_space<any>>) target(%arg9 : memref<64x512xbf16, #tpu.memory_space<vmem>>) target_semaphore(%3 : memref<!tpu.dma_semaphore, #tpu.memory_space<semaphore_mem>>)
    %c0 = arith.constant 0 : index
    %c0_0 = arith.constant 0 : index
    %4 = vector.load %arg1[%c0, %c0_0] : memref<64x512xbf16, #tpu.memory_space<vmem>>, vector<64x512xbf16>
    %c0_1 = arith.constant 0 : index
    %c0_2 = arith.constant 0 : index
    %5 = vector.load %arg4[%c0_1, %c0_2] : memref<1x512xf32, #tpu.memory_space<vmem>>, vector<1x512xf32>
    %6 = vector.shape_cast %5 : vector<1x512xf32> to vector<1x512xf32>
    %7 = vector.broadcast %6 : vector<1x512xf32> to vector<8x512xf32>
    %cst = arith.constant 0.000000e+00 : f32
    %8 = vector.broadcast %cst : f32 to vector<8x64xf32>
    %cst_3 = arith.constant 0.000000e+00 : f32
    %9 = vector.broadcast %cst_3 : f32 to vector<8x64xf32>
    %c0_4 = arith.constant 0 : index
    %c0_5 = arith.constant 0 : index
    %10 = vector.load %arg0[%c0_4, %c0_5] : memref<64x512xf32, #tpu.memory_space<vmem>>, vector<8x512xf32>
    %11 = vector.extract_strided_slice %10 {offsets = [0, 0], sizes = [8, 384], strides = [1, 1]} : vector<8x512xf32> to vector<8x384xf32>
    %12 = arith.negf %11 : vector<8x384xf32>
    %13 = math.exp %12 : vector<8x384xf32>
    %cst_6 = arith.constant 1.000000e+00 : f32
    %14 = vector.broadcast %cst_6 : f32 to vector<8x384xf32>
    %15 = arith.addf %14, %13 : vector<8x384xf32>
    %16 = arith.divf %14, %15 : vector<8x384xf32>
    %17 = vector.extract_strided_slice %16 {offsets = [0, 0], sizes = [8, 64], strides = [1, 1]} : vector<8x384xf32> to vector<8x64xf32>
    %18 = vector.extract_strided_slice %16 {offsets = [0, 128], sizes = [8, 64], strides = [1, 1]} : vector<8x384xf32> to vector<8x64xf32>
    %19 = vector.extract_strided_slice %16 {offsets = [0, 256], sizes = [8, 64], strides = [1, 1]} : vector<8x384xf32> to vector<8x64xf32>
    %20 = vector.extract_strided_slice %10 {offsets = [0, 384], sizes = [8, 64], strides = [1, 1]} : vector<8x512xf32> to vector<8x64xf32>
    %21 = math.tanh %20 : vector<8x64xf32>
    %22 = arith.mulf %18, %8 : vector<8x64xf32>
    %23 = arith.mulf %17, %21 : vector<8x64xf32>
    %24 = arith.addf %22, %23 : vector<8x64xf32>
    %25 = math.tanh %24 : vector<8x64xf32>
    %26 = arith.mulf %19, %25 : vector<8x64xf32>
    %27 = arith.truncf %26 : vector<8x64xf32> to vector<8x64xbf16>
    %c0_i32_7 = arith.constant 0 : i32
    %28 = tpu.memref_slice %arg10[%c0_i32_7] : memref<2x!tpu.dma_semaphore, #tpu.memory_space<semaphore_mem>> -> memref<1x!tpu.dma_semaphore, #tpu.memory_space<semaphore_mem>>
    %29 = tpu.memref_squeeze %28 : memref<1x!tpu.dma_semaphore, #tpu.memory_space<semaphore_mem>> -> memref<!tpu.dma_semaphore, #tpu.memory_space<semaphore_mem>>
    tpu.wait_dma2 semaphore(%29 : memref<!tpu.dma_semaphore, #tpu.memory_space<semaphore_mem>>) src(%arg2 : memref<64x512xbf16, #tpu.memory_space<any>>) dst(%arg8 : memref<64x512xbf16, #tpu.memory_space<vmem>>)
    %c1_i32_8 = arith.constant 1 : i32
    %30 = tpu.memref_slice %arg10[%c1_i32_8] : memref<2x!tpu.dma_semaphore, #tpu.memory_space<semaphore_mem>> -> memref<1x!tpu.dma_semaphore, #tpu.memory_space<semaphore_mem>>
    %31 = tpu.memref_squeeze %30 : memref<1x!tpu.dma_semaphore, #tpu.memory_space<semaphore_mem>> -> memref<!tpu.dma_semaphore, #tpu.memory_space<semaphore_mem>>
    tpu.wait_dma2 semaphore(%31 : memref<!tpu.dma_semaphore, #tpu.memory_space<semaphore_mem>>) src(%arg3 : memref<64x512xbf16, #tpu.memory_space<any>>) dst(%arg9 : memref<64x512xbf16, #tpu.memory_space<vmem>>)
    %c0_9 = arith.constant 0 : index
    %c0_10 = arith.constant 0 : index
    %32 = vector.load %arg8[%c0_9, %c0_10] : memref<64x512xbf16, #tpu.memory_space<vmem>>, vector<64x512xbf16>
    %c0_11 = arith.constant 0 : index
    %c0_12 = arith.constant 0 : index
    %33 = vector.load %arg9[%c0_11, %c0_12] : memref<64x512xbf16, #tpu.memory_space<vmem>>, vector<64x512xbf16>
    %cst_13 = arith.constant dense<0.000000e+00> : vector<8x512xf32>
    %34 = tpu.matmul %27, %32, %cst_13 {dimension_numbers = #tpu.dot_dimension_numbers<[1], [0], [0], [1], [0, 0, 1, 1], [], []>} : vector<8x64xbf16>, vector<64x512xbf16>, vector<8x512xf32> -> vector<8x512xf32>
    %35 = arith.addf %34, %7 : vector<8x512xf32>
    %36 = vector.extract_strided_slice %35 {offsets = [0, 0], sizes = [8, 384], strides = [1, 1]} : vector<8x512xf32> to vector<8x384xf32>
    %37 = arith.negf %36 : vector<8x384xf32>
    %38 = math.exp %37 : vector<8x384xf32>
    %cst_14 = arith.constant 1.000000e+00 : f32
    %39 = vector.broadcast %cst_14 : f32 to vector<8x384xf32>
    %40 = arith.addf %39, %38 : vector<8x384xf32>
    %41 = arith.divf %39, %40 : vector<8x384xf32>
    %42 = vector.extract_strided_slice %41 {offsets = [0, 0], sizes = [8, 64], strides = [1, 1]} : vector<8x384xf32> to vector<8x64xf32>
    %43 = vector.extract_strided_slice %41 {offsets = [0, 128], sizes = [8, 64], strides = [1, 1]} : vector<8x384xf32> to vector<8x64xf32>
    %44 = vector.extract_strided_slice %41 {offsets = [0, 256], sizes = [8, 64], strides = [1, 1]} : vector<8x384xf32> to vector<8x64xf32>
    %45 = vector.extract_strided_slice %35 {offsets = [0, 384], sizes = [8, 64], strides = [1, 1]} : vector<8x512xf32> to vector<8x64xf32>
    %46 = math.tanh %45 : vector<8x64xf32>
    %47 = arith.mulf %43, %9 : vector<8x64xf32>
    %48 = arith.mulf %42, %46 : vector<8x64xf32>
    %49 = arith.addf %47, %48 : vector<8x64xf32>
    %50 = math.tanh %49 : vector<8x64xf32>
    %51 = arith.mulf %44, %50 : vector<8x64xf32>
    %52 = arith.truncf %51 : vector<8x64xf32> to vector<8x64xbf16>
    %c8 = arith.constant 8 : index
    %c0_15 = arith.constant 0 : index
    %53 = vector.load %arg0[%c8, %c0_15] : memref<64x512xf32, #tpu.memory_space<vmem>>, vector<8x512xf32>
    %cst_16 = arith.constant dense<0.000000e+00> : vector<8x512xf32>
    %54 = tpu.matmul %27, %4, %cst_16 {dimension_numbers = #tpu.dot_dimension_numbers<[1], [0], [0], [1], [0, 0, 1, 1], [], []>} : vector<8x64xbf16>, vector<64x512xbf16>, vector<8x512xf32> -> vector<8x512xf32>
    %55 = arith.addf %53, %54 : vector<8x512xf32>
    %56 = vector.extract_strided_slice %55 {offsets = [0, 0], sizes = [8, 384], strides = [1, 1]} : vector<8x512xf32> to vector<8x384xf32>
    %57 = arith.negf %56 : vector<8x384xf32>
    %58 = math.exp %57 : vector<8x384xf32>
    %cst_17 = arith.constant 1.000000e+00 : f32
    %59 = vector.broadcast %cst_17 : f32 to vector<8x384xf32>
    %60 = arith.addf %59, %58 : vector<8x384xf32>
    %61 = arith.divf %59, %60 : vector<8x384xf32>
    %62 = vector.extract_strided_slice %61 {offsets = [0, 0], sizes = [8, 64], strides = [1, 1]} : vector<8x384xf32> to vector<8x64xf32>
    %63 = vector.extract_strided_slice %61 {offsets = [0, 128], sizes = [8, 64], strides = [1, 1]} : vector<8x384xf32> to vector<8x64xf32>
    %64 = vector.extract_strided_slice %61 {offsets = [0, 256], sizes = [8, 64], strides = [1, 1]} : vector<8x384xf32> to vector<8x64xf32>
    %65 = vector.extract_strided_slice %55 {offsets = [0, 384], sizes = [8, 64], strides = [1, 1]} : vector<8x512xf32> to vector<8x64xf32>
    %66 = math.tanh %65 : vector<8x64xf32>
    %67 = arith.mulf %63, %24 : vector<8x64xf32>
    %68 = arith.mulf %62, %66 : vector<8x64xf32>
    %69 = arith.addf %67, %68 : vector<8x64xf32>
    %70 = math.tanh %69 : vector<8x64xf32>
    %71 = arith.mulf %64, %70 : vector<8x64xf32>
    %72 = arith.truncf %71 : vector<8x64xf32> to vector<8x64xbf16>
    %cst_18 = arith.constant dense<0.000000e+00> : vector<8x512xf32>
    %73 = tpu.matmul %72, %32, %cst_18 {dimension_numbers = #tpu.dot_dimension_numbers<[1], [0], [0], [1], [0, 0, 1, 1], [], []>} : vector<8x64xbf16>, vector<64x512xbf16>, vector<8x512xf32> -> vector<8x512xf32>
    %74 = arith.addf %73, %7 : vector<8x512xf32>
    %cst_19 = arith.constant dense<0.000000e+00> : vector<8x512xf32>
    %75 = tpu.matmul %52, %33, %cst_19 {dimension_numbers = #tpu.dot_dimension_numbers<[1], [0], [0], [1], [0, 0, 1, 1], [], []>} : vector<8x64xbf16>, vector<64x512xbf16>, vector<8x512xf32> -> vector<8x512xf32>
    %76 = arith.addf %74, %75 : vector<8x512xf32>
    %77 = vector.extract_strided_slice %76 {offsets = [0, 0], sizes = [8, 384], strides = [1, 1]} : vector<8x512xf32> to vector<8x384xf32>
    %78 = arith.negf %77 : vector<8x384xf32>
    %79 = math.exp %78 : vector<8x384xf32>
    %cst_20 = arith.constant 1.000000e+00 : f32
    %80 = vector.broadcast %cst_20 : f32 to vector<8x384xf32>
    %81 = arith.addf %80, %79 : vector<8x384xf32>
    %82 = arith.divf %80, %81 : vector<8x384xf32>
    %83 = vector.extract_strided_slice %82 {offsets = [0, 0], sizes = [8, 64], strides = [1, 1]} : vector<8x384xf32> to vector<8x64xf32>
    %84 = vector.extract_strided_slice %82 {offsets = [0, 128], sizes = [8, 64], strides = [1, 1]} : vector<8x384xf32> to vector<8x64xf32>
    %85 = vector.extract_strided_slice %82 {offsets = [0, 256], sizes = [8, 64], strides = [1, 1]} : vector<8x384xf32> to vector<8x64xf32>
    %86 = vector.extract_strided_slice %76 {offsets = [0, 384], sizes = [8, 64], strides = [1, 1]} : vector<8x512xf32> to vector<8x64xf32>
    %87 = math.tanh %86 : vector<8x64xf32>
    %88 = arith.mulf %84, %49 : vector<8x64xf32>
    %89 = arith.mulf %83, %87 : vector<8x64xf32>
    %90 = arith.addf %88, %89 : vector<8x64xf32>
    %91 = math.tanh %90 : vector<8x64xf32>
    %92 = arith.mulf %85, %91 : vector<8x64xf32>
    %93 = arith.truncf %92 : vector<8x64xf32> to vector<8x64xbf16>
    %c16 = arith.constant 16 : index
    %c0_21 = arith.constant 0 : index
    %94 = vector.load %arg0[%c16, %c0_21] : memref<64x512xf32, #tpu.memory_space<vmem>>, vector<8x512xf32>
    %cst_22 = arith.constant dense<0.000000e+00> : vector<8x512xf32>
    %95 = tpu.matmul %72, %4, %cst_22 {dimension_numbers = #tpu.dot_dimension_numbers<[1], [0], [0], [1], [0, 0, 1, 1], [], []>} : vector<8x64xbf16>, vector<64x512xbf16>, vector<8x512xf32> -> vector<8x512xf32>
    %96 = arith.addf %94, %95 : vector<8x512xf32>
    %97 = vector.extract_strided_slice %96 {offsets = [0, 0], sizes = [8, 384], strides = [1, 1]} : vector<8x512xf32> to vector<8x384xf32>
    %98 = arith.negf %97 : vector<8x384xf32>
    %99 = math.exp %98 : vector<8x384xf32>
    %cst_23 = arith.constant 1.000000e+00 : f32
    %100 = vector.broadcast %cst_23 : f32 to vector<8x384xf32>
    %101 = arith.addf %100, %99 : vector<8x384xf32>
    %102 = arith.divf %100, %101 : vector<8x384xf32>
    %103 = vector.extract_strided_slice %102 {offsets = [0, 0], sizes = [8, 64], strides = [1, 1]} : vector<8x384xf32> to vector<8x64xf32>
    %104 = vector.extract_strided_slice %102 {offsets = [0, 128], sizes = [8, 64], strides = [1, 1]} : vector<8x384xf32> to vector<8x64xf32>
    %105 = vector.extract_strided_slice %102 {offsets = [0, 256], sizes = [8, 64], strides = [1, 1]} : vector<8x384xf32> to vector<8x64xf32>
    %106 = vector.extract_strided_slice %96 {offsets = [0, 384], sizes = [8, 64], strides = [1, 1]} : vector<8x512xf32> to vector<8x64xf32>
    %107 = math.tanh %106 : vector<8x64xf32>
    %108 = arith.mulf %104, %69 : vector<8x64xf32>
    %109 = arith.mulf %103, %107 : vector<8x64xf32>
    %110 = arith.addf %108, %109 : vector<8x64xf32>
    %111 = math.tanh %110 : vector<8x64xf32>
    %112 = arith.mulf %105, %111 : vector<8x64xf32>
    %113 = arith.truncf %112 : vector<8x64xf32> to vector<8x64xbf16>
    %cst_24 = arith.constant dense<0.000000e+00> : vector<8x512xf32>
    %114 = tpu.matmul %113, %32, %cst_24 {dimension_numbers = #tpu.dot_dimension_numbers<[1], [0], [0], [1], [0, 0, 1, 1], [], []>} : vector<8x64xbf16>, vector<64x512xbf16>, vector<8x512xf32> -> vector<8x512xf32>
    %115 = arith.addf %114, %7 : vector<8x512xf32>
    %cst_25 = arith.constant dense<0.000000e+00> : vector<8x512xf32>
    %116 = tpu.matmul %93, %33, %cst_25 {dimension_numbers = #tpu.dot_dimension_numbers<[1], [0], [0], [1], [0, 0, 1, 1], [], []>} : vector<8x64xbf16>, vector<64x512xbf16>, vector<8x512xf32> -> vector<8x512xf32>
    %117 = arith.addf %115, %116 : vector<8x512xf32>
    %118 = vector.extract_strided_slice %117 {offsets = [0, 0], sizes = [8, 384], strides = [1, 1]} : vector<8x512xf32> to vector<8x384xf32>
    %119 = arith.negf %118 : vector<8x384xf32>
    %120 = math.exp %119 : vector<8x384xf32>
    %cst_26 = arith.constant 1.000000e+00 : f32
    %121 = vector.broadcast %cst_26 : f32 to vector<8x384xf32>
    %122 = arith.addf %121, %120 : vector<8x384xf32>
    %123 = arith.divf %121, %122 : vector<8x384xf32>
    %124 = vector.extract_strided_slice %123 {offsets = [0, 0], sizes = [8, 64], strides = [1, 1]} : vector<8x384xf32> to vector<8x64xf32>
    %125 = vector.extract_strided_slice %123 {offsets = [0, 128], sizes = [8, 64], strides = [1, 1]} : vector<8x384xf32> to vector<8x64xf32>
    %126 = vector.extract_strided_slice %123 {offsets = [0, 256], sizes = [8, 64], strides = [1, 1]} : vector<8x384xf32> to vector<8x64xf32>
    %127 = vector.extract_strided_slice %117 {offsets = [0, 384], sizes = [8, 64], strides = [1, 1]} : vector<8x512xf32> to vector<8x64xf32>
    %128 = math.tanh %127 : vector<8x64xf32>
    %129 = arith.mulf %125, %90 : vector<8x64xf32>
    %130 = arith.mulf %124, %128 : vector<8x64xf32>
    %131 = arith.addf %129, %130 : vector<8x64xf32>
    %132 = math.tanh %131 : vector<8x64xf32>
    %133 = arith.mulf %126, %132 : vector<8x64xf32>
    %134 = arith.truncf %133 : vector<8x64xf32> to vector<8x64xbf16>
    %c24 = arith.constant 24 : index
    %c0_27 = arith.constant 0 : index
    %135 = vector.load %arg0[%c24, %c0_27] : memref<64x512xf32, #tpu.memory_space<vmem>>, vector<8x512xf32>
    %cst_28 = arith.constant dense<0.000000e+00> : vector<8x512xf32>
    %136 = tpu.matmul %113, %4, %cst_28 {dimension_numbers = #tpu.dot_dimension_numbers<[1], [0], [0], [1], [0, 0, 1, 1], [], []>} : vector<8x64xbf16>, vector<64x512xbf16>, vector<8x512xf32> -> vector<8x512xf32>
    %137 = arith.addf %135, %136 : vector<8x512xf32>
    %138 = vector.extract_strided_slice %137 {offsets = [0, 0], sizes = [8, 384], strides = [1, 1]} : vector<8x512xf32> to vector<8x384xf32>
    %139 = arith.negf %138 : vector<8x384xf32>
    %140 = math.exp %139 : vector<8x384xf32>
    %cst_29 = arith.constant 1.000000e+00 : f32
    %141 = vector.broadcast %cst_29 : f32 to vector<8x384xf32>
    %142 = arith.addf %141, %140 : vector<8x384xf32>
    %143 = arith.divf %141, %142 : vector<8x384xf32>
    %144 = vector.extract_strided_slice %143 {offsets = [0, 0], sizes = [8, 64], strides = [1, 1]} : vector<8x384xf32> to vector<8x64xf32>
    %145 = vector.extract_strided_slice %143 {offsets = [0, 128], sizes = [8, 64], strides = [1, 1]} : vector<8x384xf32> to vector<8x64xf32>
    %146 = vector.extract_strided_slice %143 {offsets = [0, 256], sizes = [8, 64], strides = [1, 1]} : vector<8x384xf32> to vector<8x64xf32>
    %147 = vector.extract_strided_slice %137 {offsets = [0, 384], sizes = [8, 64], strides = [1, 1]} : vector<8x512xf32> to vector<8x64xf32>
    %148 = math.tanh %147 : vector<8x64xf32>
    %149 = arith.mulf %145, %110 : vector<8x64xf32>
    %150 = arith.mulf %144, %148 : vector<8x64xf32>
    %151 = arith.addf %149, %150 : vector<8x64xf32>
    %152 = math.tanh %151 : vector<8x64xf32>
    %153 = arith.mulf %146, %152 : vector<8x64xf32>
    %154 = arith.truncf %153 : vector<8x64xf32> to vector<8x64xbf16>
    %cst_30 = arith.constant dense<0.000000e+00> : vector<8x512xf32>
    %155 = tpu.matmul %154, %32, %cst_30 {dimension_numbers = #tpu.dot_dimension_numbers<[1], [0], [0], [1], [0, 0, 1, 1], [], []>} : vector<8x64xbf16>, vector<64x512xbf16>, vector<8x512xf32> -> vector<8x512xf32>
    %156 = arith.addf %155, %7 : vector<8x512xf32>
    %cst_31 = arith.constant dense<0.000000e+00> : vector<8x512xf32>
    %157 = tpu.matmul %134, %33, %cst_31 {dimension_numbers = #tpu.dot_dimension_numbers<[1], [0], [0], [1], [0, 0, 1, 1], [], []>} : vector<8x64xbf16>, vector<64x512xbf16>, vector<8x512xf32> -> vector<8x512xf32>
    %158 = arith.addf %156, %157 : vector<8x512xf32>
    %159 = vector.extract_strided_slice %158 {offsets = [0, 0], sizes = [8, 384], strides = [1, 1]} : vector<8x512xf32> to vector<8x384xf32>
    %160 = arith.negf %159 : vector<8x384xf32>
    %161 = math.exp %160 : vector<8x384xf32>
    %cst_32 = arith.constant 1.000000e+00 : f32
    %162 = vector.broadcast %cst_32 : f32 to vector<8x384xf32>
    %163 = arith.addf %162, %161 : vector<8x384xf32>
    %164 = arith.divf %162, %163 : vector<8x384xf32>
    %165 = vector.extract_strided_slice %164 {offsets = [0, 0], sizes = [8, 64], strides = [1, 1]} : vector<8x384xf32> to vector<8x64xf32>
    %166 = vector.extract_strided_slice %164 {offsets = [0, 128], sizes = [8, 64], strides = [1, 1]} : vector<8x384xf32> to vector<8x64xf32>
    %167 = vector.extract_strided_slice %164 {offsets = [0, 256], sizes = [8, 64], strides = [1, 1]} : vector<8x384xf32> to vector<8x64xf32>
    %168 = vector.extract_strided_slice %158 {offsets = [0, 384], sizes = [8, 64], strides = [1, 1]} : vector<8x512xf32> to vector<8x64xf32>
    %169 = math.tanh %168 : vector<8x64xf32>
    %170 = arith.mulf %166, %131 : vector<8x64xf32>
    %171 = arith.mulf %165, %169 : vector<8x64xf32>
    %172 = arith.addf %170, %171 : vector<8x64xf32>
    %173 = math.tanh %172 : vector<8x64xf32>
    %174 = arith.mulf %167, %173 : vector<8x64xf32>
    %175 = arith.truncf %174 : vector<8x64xf32> to vector<8x64xbf16>
    %c32 = arith.constant 32 : index
    %c0_33 = arith.constant 0 : index
    %176 = vector.load %arg0[%c32, %c0_33] : memref<64x512xf32, #tpu.memory_space<vmem>>, vector<8x512xf32>
    %cst_34 = arith.constant dense<0.000000e+00> : vector<8x512xf32>
    %177 = tpu.matmul %154, %4, %cst_34 {dimension_numbers = #tpu.dot_dimension_numbers<[1], [0], [0], [1], [0, 0, 1, 1], [], []>} : vector<8x64xbf16>, vector<64x512xbf16>, vector<8x512xf32> -> vector<8x512xf32>
    %178 = arith.addf %176, %177 : vector<8x512xf32>
    %179 = vector.extract_strided_slice %178 {offsets = [0, 0], sizes = [8, 384], strides = [1, 1]} : vector<8x512xf32> to vector<8x384xf32>
    %180 = arith.negf %179 : vector<8x384xf32>
    %181 = math.exp %180 : vector<8x384xf32>
    %cst_35 = arith.constant 1.000000e+00 : f32
    %182 = vector.broadcast %cst_35 : f32 to vector<8x384xf32>
    %183 = arith.addf %182, %181 : vector<8x384xf32>
    %184 = arith.divf %182, %183 : vector<8x384xf32>
    %185 = vector.extract_strided_slice %184 {offsets = [0, 0], sizes = [8, 64], strides = [1, 1]} : vector<8x384xf32> to vector<8x64xf32>
    %186 = vector.extract_strided_slice %184 {offsets = [0, 128], sizes = [8, 64], strides = [1, 1]} : vector<8x384xf32> to vector<8x64xf32>
    %187 = vector.extract_strided_slice %184 {offsets = [0, 256], sizes = [8, 64], strides = [1, 1]} : vector<8x384xf32> to vector<8x64xf32>
    %188 = vector.extract_strided_slice %178 {offsets = [0, 384], sizes = [8, 64], strides = [1, 1]} : vector<8x512xf32> to vector<8x64xf32>
    %189 = math.tanh %188 : vector<8x64xf32>
    %190 = arith.mulf %186, %151 : vector<8x64xf32>
    %191 = arith.mulf %185, %189 : vector<8x64xf32>
    %192 = arith.addf %190, %191 : vector<8x64xf32>
    %193 = math.tanh %192 : vector<8x64xf32>
    %194 = arith.mulf %187, %193 : vector<8x64xf32>
    %195 = arith.truncf %194 : vector<8x64xf32> to vector<8x64xbf16>
    %cst_36 = arith.constant dense<0.000000e+00> : vector<8x512xf32>
    %196 = tpu.matmul %195, %32, %cst_36 {dimension_numbers = #tpu.dot_dimension_numbers<[1], [0], [0], [1], [0, 0, 1, 1], [], []>} : vector<8x64xbf16>, vector<64x512xbf16>, vector<8x512xf32> -> vector<8x512xf32>
    %197 = arith.addf %196, %7 : vector<8x512xf32>
    %cst_37 = arith.constant dense<0.000000e+00> : vector<8x512xf32>
    %198 = tpu.matmul %175, %33, %cst_37 {dimension_numbers = #tpu.dot_dimension_numbers<[1], [0], [0], [1], [0, 0, 1, 1], [], []>} : vector<8x64xbf16>, vector<64x512xbf16>, vector<8x512xf32> -> vector<8x512xf32>
    %199 = arith.addf %197, %198 : vector<8x512xf32>
    %200 = vector.extract_strided_slice %199 {offsets = [0, 0], sizes = [8, 384], strides = [1, 1]} : vector<8x512xf32> to vector<8x384xf32>
    %201 = arith.negf %200 : vector<8x384xf32>
    %202 = math.exp %201 : vector<8x384xf32>
    %cst_38 = arith.constant 1.000000e+00 : f32
    %203 = vector.broadcast %cst_38 : f32 to vector<8x384xf32>
    %204 = arith.addf %203, %202 : vector<8x384xf32>
    %205 = arith.divf %203, %204 : vector<8x384xf32>
    %206 = vector.extract_strided_slice %205 {offsets = [0, 0], sizes = [8, 64], strides = [1, 1]} : vector<8x384xf32> to vector<8x64xf32>
    %207 = vector.extract_strided_slice %205 {offsets = [0, 128], sizes = [8, 64], strides = [1, 1]} : vector<8x384xf32> to vector<8x64xf32>
    %208 = vector.extract_strided_slice %205 {offsets = [0, 256], sizes = [8, 64], strides = [1, 1]} : vector<8x384xf32> to vector<8x64xf32>
    %209 = vector.extract_strided_slice %199 {offsets = [0, 384], sizes = [8, 64], strides = [1, 1]} : vector<8x512xf32> to vector<8x64xf32>
    %210 = math.tanh %209 : vector<8x64xf32>
    %211 = arith.mulf %207, %172 : vector<8x64xf32>
    %212 = arith.mulf %206, %210 : vector<8x64xf32>
    %213 = arith.addf %211, %212 : vector<8x64xf32>
    %214 = math.tanh %213 : vector<8x64xf32>
    %215 = arith.mulf %208, %214 : vector<8x64xf32>
    %216 = arith.truncf %215 : vector<8x64xf32> to vector<8x64xbf16>
    %c40 = arith.constant 40 : index
    %c0_39 = arith.constant 0 : index
    %217 = vector.load %arg0[%c40, %c0_39] : memref<64x512xf32, #tpu.memory_space<vmem>>, vector<8x512xf32>
    %cst_40 = arith.constant dense<0.000000e+00> : vector<8x512xf32>
    %218 = tpu.matmul %195, %4, %cst_40 {dimension_numbers = #tpu.dot_dimension_numbers<[1], [0], [0], [1], [0, 0, 1, 1], [], []>} : vector<8x64xbf16>, vector<64x512xbf16>, vector<8x512xf32> -> vector<8x512xf32>
    %219 = arith.addf %217, %218 : vector<8x512xf32>
    %220 = vector.extract_strided_slice %219 {offsets = [0, 0], sizes = [8, 384], strides = [1, 1]} : vector<8x512xf32> to vector<8x384xf32>
    %221 = arith.negf %220 : vector<8x384xf32>
    %222 = math.exp %221 : vector<8x384xf32>
    %cst_41 = arith.constant 1.000000e+00 : f32
    %223 = vector.broadcast %cst_41 : f32 to vector<8x384xf32>
    %224 = arith.addf %223, %222 : vector<8x384xf32>
    %225 = arith.divf %223, %224 : vector<8x384xf32>
    %226 = vector.extract_strided_slice %225 {offsets = [0, 0], sizes = [8, 64], strides = [1, 1]} : vector<8x384xf32> to vector<8x64xf32>
    %227 = vector.extract_strided_slice %225 {offsets = [0, 128], sizes = [8, 64], strides = [1, 1]} : vector<8x384xf32> to vector<8x64xf32>
    %228 = vector.extract_strided_slice %225 {offsets = [0, 256], sizes = [8, 64], strides = [1, 1]} : vector<8x384xf32> to vector<8x64xf32>
    %229 = vector.extract_strided_slice %219 {offsets = [0, 384], sizes = [8, 64], strides = [1, 1]} : vector<8x512xf32> to vector<8x64xf32>
    %230 = math.tanh %229 : vector<8x64xf32>
    %231 = arith.mulf %227, %192 : vector<8x64xf32>
    %232 = arith.mulf %226, %230 : vector<8x64xf32>
    %233 = arith.addf %231, %232 : vector<8x64xf32>
    %234 = math.tanh %233 : vector<8x64xf32>
    %235 = arith.mulf %228, %234 : vector<8x64xf32>
    %236 = arith.truncf %235 : vector<8x64xf32> to vector<8x64xbf16>
    %cst_42 = arith.constant dense<0.000000e+00> : vector<8x512xf32>
    %237 = tpu.matmul %236, %32, %cst_42 {dimension_numbers = #tpu.dot_dimension_numbers<[1], [0], [0], [1], [0, 0, 1, 1], [], []>} : vector<8x64xbf16>, vector<64x512xbf16>, vector<8x512xf32> -> vector<8x512xf32>
    %238 = arith.addf %237, %7 : vector<8x512xf32>
    %cst_43 = arith.constant dense<0.000000e+00> : vector<8x512xf32>
    %239 = tpu.matmul %216, %33, %cst_43 {dimension_numbers = #tpu.dot_dimension_numbers<[1], [0], [0], [1], [0, 0, 1, 1], [], []>} : vector<8x64xbf16>, vector<64x512xbf16>, vector<8x512xf32> -> vector<8x512xf32>
    %240 = arith.addf %238, %239 : vector<8x512xf32>
    %241 = vector.extract_strided_slice %240 {offsets = [0, 0], sizes = [8, 384], strides = [1, 1]} : vector<8x512xf32> to vector<8x384xf32>
    %242 = arith.negf %241 : vector<8x384xf32>
    %243 = math.exp %242 : vector<8x384xf32>
    %cst_44 = arith.constant 1.000000e+00 : f32
    %244 = vector.broadcast %cst_44 : f32 to vector<8x384xf32>
    %245 = arith.addf %244, %243 : vector<8x384xf32>
    %246 = arith.divf %244, %245 : vector<8x384xf32>
    %247 = vector.extract_strided_slice %246 {offsets = [0, 0], sizes = [8, 64], strides = [1, 1]} : vector<8x384xf32> to vector<8x64xf32>
    %248 = vector.extract_strided_slice %246 {offsets = [0, 128], sizes = [8, 64], strides = [1, 1]} : vector<8x384xf32> to vector<8x64xf32>
    %249 = vector.extract_strided_slice %246 {offsets = [0, 256], sizes = [8, 64], strides = [1, 1]} : vector<8x384xf32> to vector<8x64xf32>
    %250 = vector.extract_strided_slice %240 {offsets = [0, 384], sizes = [8, 64], strides = [1, 1]} : vector<8x512xf32> to vector<8x64xf32>
    %251 = math.tanh %250 : vector<8x64xf32>
    %252 = arith.mulf %248, %213 : vector<8x64xf32>
    %253 = arith.mulf %247, %251 : vector<8x64xf32>
    %254 = arith.addf %252, %253 : vector<8x64xf32>
    %255 = math.tanh %254 : vector<8x64xf32>
    %256 = arith.mulf %249, %255 : vector<8x64xf32>
    %257 = arith.truncf %256 : vector<8x64xf32> to vector<8x64xbf16>
    %c48 = arith.constant 48 : index
    %c0_45 = arith.constant 0 : index
    %258 = vector.load %arg0[%c48, %c0_45] : memref<64x512xf32, #tpu.memory_space<vmem>>, vector<8x512xf32>
    %cst_46 = arith.constant dense<0.000000e+00> : vector<8x512xf32>
    %259 = tpu.matmul %236, %4, %cst_46 {dimension_numbers = #tpu.dot_dimension_numbers<[1], [0], [0], [1], [0, 0, 1, 1], [], []>} : vector<8x64xbf16>, vector<64x512xbf16>, vector<8x512xf32> -> vector<8x512xf32>
    %260 = arith.addf %258, %259 : vector<8x512xf32>
    %261 = vector.extract_strided_slice %260 {offsets = [0, 0], sizes = [8, 384], strides = [1, 1]} : vector<8x512xf32> to vector<8x384xf32>
    %262 = arith.negf %261 : vector<8x384xf32>
    %263 = math.exp %262 : vector<8x384xf32>
    %cst_47 = arith.constant 1.000000e+00 : f32
    %264 = vector.broadcast %cst_47 : f32 to vector<8x384xf32>
    %265 = arith.addf %264, %263 : vector<8x384xf32>
    %266 = arith.divf %264, %265 : vector<8x384xf32>
    %267 = vector.extract_strided_slice %266 {offsets = [0, 0], sizes = [8, 64], strides = [1, 1]} : vector<8x384xf32> to vector<8x64xf32>
    %268 = vector.extract_strided_slice %266 {offsets = [0, 128], sizes = [8, 64], strides = [1, 1]} : vector<8x384xf32> to vector<8x64xf32>
    %269 = vector.extract_strided_slice %266 {offsets = [0, 256], sizes = [8, 64], strides = [1, 1]} : vector<8x384xf32> to vector<8x64xf32>
    %270 = vector.extract_strided_slice %260 {offsets = [0, 384], sizes = [8, 64], strides = [1, 1]} : vector<8x512xf32> to vector<8x64xf32>
    %271 = math.tanh %270 : vector<8x64xf32>
    %272 = arith.mulf %268, %233 : vector<8x64xf32>
    %273 = arith.mulf %267, %271 : vector<8x64xf32>
    %274 = arith.addf %272, %273 : vector<8x64xf32>
    %275 = math.tanh %274 : vector<8x64xf32>
    %276 = arith.mulf %269, %275 : vector<8x64xf32>
    %277 = arith.truncf %276 : vector<8x64xf32> to vector<8x64xbf16>
    %cst_48 = arith.constant dense<0.000000e+00> : vector<8x512xf32>
    %278 = tpu.matmul %277, %32, %cst_48 {dimension_numbers = #tpu.dot_dimension_numbers<[1], [0], [0], [1], [0, 0, 1, 1], [], []>} : vector<8x64xbf16>, vector<64x512xbf16>, vector<8x512xf32> -> vector<8x512xf32>
    %279 = arith.addf %278, %7 : vector<8x512xf32>
    %cst_49 = arith.constant dense<0.000000e+00> : vector<8x512xf32>
    %280 = tpu.matmul %257, %33, %cst_49 {dimension_numbers = #tpu.dot_dimension_numbers<[1], [0], [0], [1], [0, 0, 1, 1], [], []>} : vector<8x64xbf16>, vector<64x512xbf16>, vector<8x512xf32> -> vector<8x512xf32>
    %281 = arith.addf %279, %280 : vector<8x512xf32>
    %282 = vector.extract_strided_slice %281 {offsets = [0, 0], sizes = [8, 384], strides = [1, 1]} : vector<8x512xf32> to vector<8x384xf32>
    %283 = arith.negf %282 : vector<8x384xf32>
    %284 = math.exp %283 : vector<8x384xf32>
    %cst_50 = arith.constant 1.000000e+00 : f32
    %285 = vector.broadcast %cst_50 : f32 to vector<8x384xf32>
    %286 = arith.addf %285, %284 : vector<8x384xf32>
    %287 = arith.divf %285, %286 : vector<8x384xf32>
    %288 = vector.extract_strided_slice %287 {offsets = [0, 0], sizes = [8, 64], strides = [1, 1]} : vector<8x384xf32> to vector<8x64xf32>
    %289 = vector.extract_strided_slice %287 {offsets = [0, 128], sizes = [8, 64], strides = [1, 1]} : vector<8x384xf32> to vector<8x64xf32>
    %290 = vector.extract_strided_slice %287 {offsets = [0, 256], sizes = [8, 64], strides = [1, 1]} : vector<8x384xf32> to vector<8x64xf32>
    %291 = vector.extract_strided_slice %281 {offsets = [0, 384], sizes = [8, 64], strides = [1, 1]} : vector<8x512xf32> to vector<8x64xf32>
    %292 = math.tanh %291 : vector<8x64xf32>
    %293 = arith.mulf %289, %254 : vector<8x64xf32>
    %294 = arith.mulf %288, %292 : vector<8x64xf32>
    %295 = arith.addf %293, %294 : vector<8x64xf32>
    %296 = math.tanh %295 : vector<8x64xf32>
    %297 = arith.mulf %290, %296 : vector<8x64xf32>
    %298 = arith.truncf %297 : vector<8x64xf32> to vector<8x64xbf16>
    %c56 = arith.constant 56 : index
    %c0_51 = arith.constant 0 : index
    %299 = vector.load %arg0[%c56, %c0_51] : memref<64x512xf32, #tpu.memory_space<vmem>>, vector<8x512xf32>
    %cst_52 = arith.constant dense<0.000000e+00> : vector<8x512xf32>
    %300 = tpu.matmul %277, %4, %cst_52 {dimension_numbers = #tpu.dot_dimension_numbers<[1], [0], [0], [1], [0, 0, 1, 1], [], []>} : vector<8x64xbf16>, vector<64x512xbf16>, vector<8x512xf32> -> vector<8x512xf32>
    %301 = arith.addf %299, %300 : vector<8x512xf32>
    %302 = vector.extract_strided_slice %301 {offsets = [0, 0], sizes = [8, 384], strides = [1, 1]} : vector<8x512xf32> to vector<8x384xf32>
    %303 = arith.negf %302 : vector<8x384xf32>
    %304 = math.exp %303 : vector<8x384xf32>
    %cst_53 = arith.constant 1.000000e+00 : f32
    %305 = vector.broadcast %cst_53 : f32 to vector<8x384xf32>
    %306 = arith.addf %305, %304 : vector<8x384xf32>
    %307 = arith.divf %305, %306 : vector<8x384xf32>
    %308 = vector.extract_strided_slice %307 {offsets = [0, 0], sizes = [8, 64], strides = [1, 1]} : vector<8x384xf32> to vector<8x64xf32>
    %309 = vector.extract_strided_slice %307 {offsets = [0, 128], sizes = [8, 64], strides = [1, 1]} : vector<8x384xf32> to vector<8x64xf32>
    %310 = vector.extract_strided_slice %307 {offsets = [0, 256], sizes = [8, 64], strides = [1, 1]} : vector<8x384xf32> to vector<8x64xf32>
    %311 = vector.extract_strided_slice %301 {offsets = [0, 384], sizes = [8, 64], strides = [1, 1]} : vector<8x512xf32> to vector<8x64xf32>
    %312 = math.tanh %311 : vector<8x64xf32>
    %313 = arith.mulf %309, %274 : vector<8x64xf32>
    %314 = arith.mulf %308, %312 : vector<8x64xf32>
    %315 = arith.addf %313, %314 : vector<8x64xf32>
    %316 = math.tanh %315 : vector<8x64xf32>
    %317 = arith.mulf %310, %316 : vector<8x64xf32>
    %318 = arith.truncf %317 : vector<8x64xf32> to vector<8x64xbf16>
    %cst_54 = arith.constant dense<0.000000e+00> : vector<8x512xf32>
    %319 = tpu.matmul %318, %32, %cst_54 {dimension_numbers = #tpu.dot_dimension_numbers<[1], [0], [0], [1], [0, 0, 1, 1], [], []>} : vector<8x64xbf16>, vector<64x512xbf16>, vector<8x512xf32> -> vector<8x512xf32>
    %320 = arith.addf %319, %7 : vector<8x512xf32>
    %cst_55 = arith.constant dense<0.000000e+00> : vector<8x512xf32>
    %321 = tpu.matmul %298, %33, %cst_55 {dimension_numbers = #tpu.dot_dimension_numbers<[1], [0], [0], [1], [0, 0, 1, 1], [], []>} : vector<8x64xbf16>, vector<64x512xbf16>, vector<8x512xf32> -> vector<8x512xf32>
    %322 = arith.addf %320, %321 : vector<8x512xf32>
    %323 = vector.extract_strided_slice %322 {offsets = [0, 0], sizes = [8, 384], strides = [1, 1]} : vector<8x512xf32> to vector<8x384xf32>
    %324 = arith.negf %323 : vector<8x384xf32>
    %325 = math.exp %324 : vector<8x384xf32>
    %cst_56 = arith.constant 1.000000e+00 : f32
    %326 = vector.broadcast %cst_56 : f32 to vector<8x384xf32>
    %327 = arith.addf %326, %325 : vector<8x384xf32>
    %328 = arith.divf %326, %327 : vector<8x384xf32>
    %329 = vector.extract_strided_slice %328 {offsets = [0, 0], sizes = [8, 64], strides = [1, 1]} : vector<8x384xf32> to vector<8x64xf32>
    %330 = vector.extract_strided_slice %328 {offsets = [0, 128], sizes = [8, 64], strides = [1, 1]} : vector<8x384xf32> to vector<8x64xf32>
    %331 = vector.extract_strided_slice %328 {offsets = [0, 256], sizes = [8, 64], strides = [1, 1]} : vector<8x384xf32> to vector<8x64xf32>
    %332 = vector.extract_strided_slice %322 {offsets = [0, 384], sizes = [8, 64], strides = [1, 1]} : vector<8x512xf32> to vector<8x64xf32>
    %333 = math.tanh %332 : vector<8x64xf32>
    %334 = arith.mulf %330, %295 : vector<8x64xf32>
    %335 = arith.mulf %329, %333 : vector<8x64xf32>
    %336 = arith.addf %334, %335 : vector<8x64xf32>
    %337 = math.tanh %336 : vector<8x64xf32>
    %338 = arith.mulf %331, %337 : vector<8x64xf32>
    %c0_57 = arith.constant 0 : index
    %c0_58 = arith.constant 0 : index
    %339 = vector.load %arg5[%c0_57, %c0_58] : memref<64x1xf32, #tpu.memory_space<vmem>>, vector<64x1xf32>
    %cst_59 = arith.constant dense<0.000000e+00> : vector<8x1xf32>
    %340 = tpu.matmul %338, %339, %cst_59 {dimension_numbers = #tpu.dot_dimension_numbers<[1], [0], [0], [1], [0, 0, 1, 1], [], []>} : vector<8x64xf32>, vector<64x1xf32>, vector<8x1xf32> -> vector<8x1xf32>
    %c0_60 = arith.constant 0 : index
    %c0_61 = arith.constant 0 : index
    %341 = vector.load %arg6[%c0_60, %c0_61] : memref<1x1xf32, #tpu.memory_space<vmem>>, vector<1x1xf32>
    %342 = vector.broadcast %341 : vector<1x1xf32> to vector<8x1xf32>
    %343 = arith.addf %340, %342 : vector<8x1xf32>
    %c0_62 = arith.constant 0 : index
    %c0_63 = arith.constant 0 : index
    %344 = vector.load %arg7[%c0_62, %c0_63] : memref<8x1xf32, #tpu.memory_space<vmem>>, vector<8x1xf32>
    tpu.vector_store %arg7[%c0_62, %c0_63], %343 {strides = array<i32>} : memref<8x1xf32, #tpu.memory_space<vmem>>, vector<8x1xf32>,
    return
  }
}

</mosaic_0001>

<llo_original>
// kernel: tpu_custom_call.1
$region0: #{tpu_custom_call.1}
  #allocation0 [shape = 'u32[]', space=smem, size = 0x4, offset = 0x4, fixed_abs, tag = 'smem constant byte address 0x4 - core index']
  #allocation1 [shape = 'u32[144,128]{1,0:T(1,128)}', space=vmem, size = 0x12000, scoped, tag = 'internal scratch']
  #allocation2 [shape = 'bf16[64,512]{1,0:T(8,128)(2,1)}', space=vmem, size = 0x10000, scoped, tag = 'scratch operand']
  #allocation3 [shape = 'bf16[64,512]{1,0:T(8,128)(2,1)}', space=vmem, size = 0x10000, scoped, tag = 'scratch operand']
  #allocation4 [shape = 's32[2]{0}', space=sflag, size = 0x8, scoped, tag = 'scratch operand']
  #allocation5 [shape = 'f32[1,1]{1,0:T(1,128)S(1)}', space=vmem, size = 0x200, scoped, tag = 'scoped memory for tpu_custom_call.1']
  #allocation10 [shape = 's32[]', space=sflag, size = 0x4, offset = 0, fixed_abs, tag = 'sflag constant byte address 0x0 - dummy sync flag']
  #allocation11 [shape = 's32[]', space=sflag, size = 0x4, offset = 0, fixed_abs, tag = 'sflag constant byte address 0x0 - dummy sync flag']
  #allocation12 [shape = 'u32[]', space=smem, size = 0x4, offset = 0x44, fixed_abs, tag = 'smem constant byte address 0x44 - assertion arg 0']
  #allocation13 [shape = 'u32[]', space=smem, size = 0x4, offset = 0x48, fixed_abs, tag = 'smem constant byte address 0x48 - assertion arg 1']
  #allocation14 [shape = 's32[]', space=sflag, size = 0x4, offset = 0, fixed_abs, tag = 'sflag constant byte address 0x0 - dummy sync flag']
  #allocation15 [shape = 's32[]', space=sflag, size = 0x4, offset = 0, fixed_abs, tag = 'sflag constant byte address 0x0 - dummy sync flag']
  %s0 = inlined_call_operand.hbm [shape: f32[64,512], index: 0, kind: input, shape index: {}]
  %s1 = inlined_call_operand.hbm [shape: bf16[64,512], index: 1, kind: input, shape index: {}]
  %s2 = inlined_call_operand.hbm [shape: bf16[64,512], index: 2, kind: input, shape index: {}]
  %s3 = inlined_call_operand.hbm [shape: bf16[64,512], index: 3, kind: input, shape index: {}]
  %s4 = inlined_call_operand.vmem [shape: f32[1,512], index: 4, kind: input, shape index: {}]
  %s5 = inlined_call_operand.vmem [shape: f32[64,1], index: 5, kind: input, shape index: {}]
  %s6 = inlined_call_operand.<no memory space> [shape: f32[1,1], index: 6, kind: input, shape index: {}]
  %s7 = inlined_call_operand.vmem [shape: f32[8,1], index: 7, kind: output, shape index: {}]
  %s8 = sld [smem:[#allocation0]]
  $region46: #{tpu_custom_call.1} parent=0
    _
  %s10 = ssub.s32 1, %s8
  %s11 = scalar_select 0, %s10, %s8
  %v12 = vstv %s6
  %13 = vst [vmem:[#allocation5] sm:$0x1] %v12
  $region1: #{tpu_custom_call.1} parent=0
    #allocation6 [shape = 'u8[131072]{0}', space=vmem, size = 0x20000, scoped, tag = 'input window, operand 0, single buffered']
    #allocation7 [shape = 's32[1]{0}', space=sflag, size = 0x4, scoped, tag = 'scoped memory for tpu_custom_call.1']
    #allocation8 [shape = 'u8[65536]{0}', space=vmem, size = 0x10000, scoped, tag = 'input window, operand 1, single buffered']
    #allocation9 [shape = 's32[1]{0}', space=sflag, size = 0x4, scoped, tag = 'scoped memory for tpu_custom_call.1']
    %14 = vsyncpa [#allocation7], 0
    %15 = vsyncpa [#allocation9], 0
    // Predicated region
    $region2: #{tpu_custom_call.1} parent=1 // pred_check
      _
    $region3: #{tpu_custom_call.1} parent=1 // pred_check_branch
      %17 = sbr.rel (0) target = $region5
    $region4: #{tpu_custom_call.1} parent=1 // pred_region
      %s19 = ssub.s32 4096, 4096
      %20 = vsyncadd [#allocation7], %s19
      %s21 = sshll.u32 [#allocation6], 4
      %s22 = int_to_ptr.vmem [resolvable:$true] %s21
      %27 = dma.hbm_to_vmem [thread:$0]  %s0, 4096, %s22, [#allocation7], 512, 512, 32
    $region5: #{tpu_custom_call.1} parent=1 // pred_fallthru
      _
    // Predicated region
    $region6: #{tpu_custom_call.1} parent=1 // pred_check
      _
    $region7: #{tpu_custom_call.1} parent=1 // pred_check_branch
      %29 = sbr.rel (0) target = $region9
    $region8: #{tpu_custom_call.1} parent=1 // pred_region
      %s31 = ssub.s32 2048, 2048
      %32 = vsyncadd [#allocation9], %s31
      %s33 = sshll.u32 [#allocation8], 4
      %s34 = int_to_ptr.vmem [resolvable:$true] %s33
      %39 = dma.hbm_to_vmem [thread:$0]  %s1, 2048, %s34, [#allocation9], 256, 256, 16
    $region9: #{tpu_custom_call.1} parent=1 // pred_fallthru
      _
    // Predicated region
    $region10: #{tpu_custom_call.1} parent=1 // pred_check
      _
    $region11: #{tpu_custom_call.1} parent=1 // pred_check_branch
      %41 = sbr.rel (0) target = $region13
    $region12: #{tpu_custom_call.1} parent=1 // pred_region
      _
    $region13: #{tpu_custom_call.1} parent=1 // pred_fallthru
      _
    // Predicated region
    $region14: #{tpu_custom_call.1} parent=1 // pred_check
      _
    $region15: #{tpu_custom_call.1} parent=1 // pred_check_branch
      %43 = sbr.rel (0) target = $region17
    $region16: #{tpu_custom_call.1} parent=1 // pred_region
      _
    $region17: #{tpu_custom_call.1} parent=1 // pred_fallthru
      _
    // Predicated region
    $region18: #{tpu_custom_call.1} parent=1 // pred_check
      _
    $region19: #{tpu_custom_call.1} parent=1 // pred_check_branch
      %45 = sbr.rel (0) target = $region21
    $region20: #{tpu_custom_call.1} parent=1 // pred_region
      _
    $region21: #{tpu_custom_call.1} parent=1 // pred_fallthru
      _
    // Predicated region
    $region22: #{tpu_custom_call.1} parent=1 // pred_check
      _
    $region23: #{tpu_custom_call.1} parent=1 // pred_check_branch
      %47 = sbr.rel (0) target = $region25
    $region24: #{tpu_custom_call.1} parent=1 // pred_region
      %48 = dma.done [#allocation7], 4096
    $region25: #{tpu_custom_call.1} parent=1 // pred_fallthru
      _
    // Predicated region
    $region26: #{tpu_custom_call.1} parent=1 // pred_check
      _
    $region27: #{tpu_custom_call.1} parent=1 // pred_check_branch
      %50 = sbr.rel (0) target = $region29
    $region28: #{tpu_custom_call.1} parent=1 // pred_region
      %51 = dma.done [#allocation9], 2048
    $region29: #{tpu_custom_call.1} parent=1 // pred_fallthru
      _
    // Predicated region
    $region30: #{tpu_custom_call.1} parent=1 // pred_check
      _
    $region31: #{tpu_custom_call.1} parent=1 // pred_check_branch
      %54 = sbr.rel target = $region33
    $region32: #{tpu_custom_call.1} parent=1 // pred_region
      %55 = sst [smem:[#allocation12]] [#allocation11]
      %56 = sst [smem:[#allocation13]] [#allocation10]
    $region33: #{tpu_custom_call.1} parent=1 // pred_fallthru
      _
    %58 = shalt.err (0)
    %s60 = sshll.u32 [#allocation2], 4
    %s61 = int_to_ptr.vmem [resolvable:$true] %s60
    %63 = dma.hbm_to_vmem [thread:$0]  %s2, 2048, %s61, [#allocation4]
    %s64 = scalar_lea.sflag [#allocation4], 1
    // Predicated region
    $region34: #{tpu_custom_call.1} parent=1 // pred_check
      _
    $region35: #{tpu_custom_call.1} parent=1 // pred_check_branch
      %66 = sbr.rel target = $region37
    $region36: #{tpu_custom_call.1} parent=1 // pred_region
      %67 = sst [smem:[#allocation12]] [#allocation15]
      %68 = sst [smem:[#allocation13]] [#allocation14]
    $region37: #{tpu_custom_call.1} parent=1 // pred_fallthru
      _
    %70 = shalt.err (0)
    %s72 = sshll.u32 [#allocation3], 4
    %s73 = int_to_ptr.vmem [resolvable:$true] %s72
    %75 = dma.hbm_to_vmem [thread:$0]  %s3, 2048, %s73, %s64
    %v76 = vld [vmem:[#allocation8] sm:$0xff]
    %v77 = vld [vmem:[#allocation8 + $0x8] sm:$0xff]
    %v78 = vld [vmem:[#allocation8 + $0x10] sm:$0xff]
    %v79 = vld [vmem:[#allocation8 + $0x18] sm:$0xff]
    %v80 = vld [vmem:[#allocation8 + $0x20] sm:$0xff]
    %v81 = vld [vmem:[#allocation8 + $0x28] sm:$0xff]
    %v82 = vld [vmem:[#allocation8 + $0x30] sm:$0xff]
    %v83 = vld [vmem:[#allocation8 + $0x38] sm:$0xff]
    %v84 = vld [vmem:[#allocation8 + $0x40] sm:$0xff]
    %v85 = vld [vmem:[#allocation8 + $0x48] sm:$0xff]
    %v86 = vld [vmem:[#allocation8 + $0x50] sm:$0xff]
    %v87 = vld [vmem:[#allocation8 + $0x58] sm:$0xff]
    %v88 = vld [vmem:[#allocation8 + $0x60] sm:$0xff]
    %v89 = vld [vmem:[#allocation8 + $0x68] sm:$0xff]
    %v90 = vld [vmem:[#allocation8 + $0x70] sm:$0xff]
    %v91 = vld [vmem:[#allocation8 + $0x78] sm:$0xff]
    %v92 = vld [vmem:[%s4] sm:$0xf]
    %v94 = vlaneseq
    %v95 = vshrl.u32 %v94, 7
    %v96 = vsub.s32 0, %v95
    %v97 = vrot.slane %v92, %v96
    %v98 = vlaneseq
    %v99 = vshrl.u32 %v98, 7
    %v100 = vsub.s32 1, %v99
    %v101 = vrot.slane %v92, %v100
    %v102 = vlaneseq
    %v103 = vshrl.u32 %v102, 7
    %v104 = vsub.s32 2, %v103
    %v105 = vrot.slane %v92, %v104
    %v106 = vlaneseq
    %v107 = vshrl.u32 %v106, 7
    %v108 = vsub.s32 3, %v107
    %v109 = vrot.slane %v92, %v108
    %v114 = vld [vmem:[#allocation6] sm:$0xff]
    %v115 = vld [vmem:[#allocation6 + $0x8] sm:$0xff]
    %v116 = vld [vmem:[#allocation6 + $0x10] sm:$0xff]
    %v117 = vld [vmem:[#allocation6 + $0x18] sm:$0xff]
    %v118 = vxor.u32 %v114, 2147483648
    %v119 = vxor.u32 %v115, 2147483648
    %v120 = vxor.u32 %v116, 2147483648
    %v121 = vmul.f32 %v118, 1.442695
    %v122 = vpow.pop %v121
    %v123 = vmul.f32 %v119, 1.442695
    %v124 = vpow.pop %v123
    %v125 = vmul.f32 %v120, 1.442695
    %v126 = vpow.pop %v125
    %v127 = vadd.f32 %v122, 1.0
    %v128 = vadd.f32 %v124, 1.0
    %v129 = vadd.f32 %v126, 1.0
    %v130 = vrcp.pop %v127
    %v131 = vmul.f32 1.0, %v130
    %v132 = vrcp.pop %v128
    %v133 = vmul.f32 1.0, %v132
    %v134 = vrcp.pop %v129
    %v135 = vmul.f32 1.0, %v134
    %v136 = vtanh.pop %v117
    %v137 = vmul.f32 %v133, 0.0
    %v138 = vmul.f32 %v131, %v136
    %v139 = vadd.f32 %v137, %v138
    %v140 = vtanh.pop %v139
    %v141 = vmul.f32 %v135, %v140
    %v142 = vpack.c.bf16 %v141, %v141
    %s143 = smul.u32 4, 8
    %s144 = smul.u32 %s143, 4
    %s145 = sshll.u32 %s144, 4
    %146 = dma.done [#allocation4], %s145
    %s147 = sshll.u32 %s144, 4
    %148 = dma.done %s64, %s147
    %v149 = vld [vmem:[#allocation2] sm:$0xff]
    %v150 = vld [vmem:[#allocation2 + $0x8] sm:$0xff]
    %v151 = vld [vmem:[#allocation2 + $0x10] sm:$0xff]
    %v152 = vld [vmem:[#allocation2 + $0x18] sm:$0xff]
    %v153 = vld [vmem:[#allocation2 + $0x20] sm:$0xff]
    %v154 = vld [vmem:[#allocation2 + $0x28] sm:$0xff]
    %v155 = vld [vmem:[#allocation2 + $0x30] sm:$0xff]
    %v156 = vld [vmem:[#allocation2 + $0x38] sm:$0xff]
    %v157 = vld [vmem:[#allocation2 + $0x40] sm:$0xff]
    %v158 = vld [vmem:[#allocation2 + $0x48] sm:$0xff]
    %v159 = vld [vmem:[#allocation2 + $0x50] sm:$0xff]
    %v160 = vld [vmem:[#allocation2 + $0x58] sm:$0xff]
    %v161 = vld [vmem:[#allocation2 + $0x60] sm:$0xff]
    %v162 = vld [vmem:[#allocation2 + $0x68] sm:$0xff]
    %v163 = vld [vmem:[#allocation2 + $0x70] sm:$0xff]
    %v164 = vld [vmem:[#allocation2 + $0x78] sm:$0xff]
    %v165 = vld [vmem:[#allocation3] sm:$0xff]
    %v166 = vld [vmem:[#allocation3 + $0x8] sm:$0xff]
    %v167 = vld [vmem:[#allocation3 + $0x10] sm:$0xff]
    %v168 = vld [vmem:[#allocation3 + $0x18] sm:$0xff]
    %v169 = vld [vmem:[#allocation3 + $0x20] sm:$0xff]
    %v170 = vld [vmem:[#allocation3 + $0x28] sm:$0xff]
    %v171 = vld [vmem:[#allocation3 + $0x30] sm:$0xff]
    %v172 = vld [vmem:[#allocation3 + $0x38] sm:$0xff]
    %v173 = vld [vmem:[#allocation3 + $0x40] sm:$0xff]
    %v174 = vld [vmem:[#allocation3 + $0x48] sm:$0xff]
    %v175 = vld [vmem:[#allocation3 + $0x50] sm:$0xff]
    %v176 = vld [vmem:[#allocation3 + $0x58] sm:$0xff]
    %v177 = vld [vmem:[#allocation3 + $0x60] sm:$0xff]
    %v178 = vld [vmem:[#allocation3 + $0x68] sm:$0xff]
    %v179 = vld [vmem:[#allocation3 + $0x70] sm:$0xff]
    %v180 = vld [vmem:[#allocation3 + $0x78] sm:$0xff]
    %v197 = vunpack.c.l.b16 %v149
    %v198 = vunpack.c.h.b16 %v149
    %v199 = vunpack.c.l.b16 %v150
    %v200 = vunpack.c.h.b16 %v150
    %v201 = vunpack.c.l.b16 %v151
    %v202 = vunpack.c.h.b16 %v151
    %v203 = vunpack.c.l.b16 %v152
    %v204 = vunpack.c.h.b16 %v152
    %v205 = vunpack.c.l.b16 %v153
    %v206 = vunpack.c.h.b16 %v153
    %v207 = vunpack.c.l.b16 %v154
    %v208 = vunpack.c.h.b16 %v154
    %v209 = vunpack.c.l.b16 %v155
    %v210 = vunpack.c.h.b16 %v155
    %v211 = vunpack.c.l.b16 %v156
    %v212 = vunpack.c.h.b16 %v156
    %v213 = vunpack.c.l.b16 %v157
    %v214 = vunpack.c.h.b16 %v157
    %v215 = vunpack.c.l.b16 %v158
    %v216 = vunpack.c.h.b16 %v158
    %v217 = vunpack.c.l.b16 %v159
    %v218 = vunpack.c.h.b16 %v159
    %v219 = vunpack.c.l.b16 %v160
    %v220 = vunpack.c.h.b16 %v160
    %v221 = vunpack.c.l.b16 %v161
    %v222 = vunpack.c.h.b16 %v161
    %v223 = vunpack.c.l.b16 %v162
    %v224 = vunpack.c.h.b16 %v162
    %v225 = vunpack.c.l.b16 %v163
    %v226 = vunpack.c.h.b16 %v163
    %v227 = vunpack.c.l.b16 %v164
    %v228 = vunpack.c.h.b16 %v164
    %v229 = vpack.c.b16 %v201, %v197
    %v230 = vpack.c.b16 %v202, %v198
    %v231 = vpack.c.b16 %v203, %v199
    %v232 = vpack.c.b16 %v204, %v200
    %v233 = vpack.c.b16 %v209, %v205
    %v234 = vpack.c.b16 %v210, %v206
    %v235 = vpack.c.b16 %v211, %v207
    %v236 = vpack.c.b16 %v212, %v208
    %v237 = vpack.c.b16 %v217, %v213
    %v238 = vpack.c.b16 %v218, %v214
    %v239 = vpack.c.b16 %v219, %v215
    %v240 = vpack.c.b16 %v220, %v216
    %v241 = vpack.c.b16 %v225, %v221
    %v242 = vpack.c.b16 %v226, %v222
    %v243 = vpack.c.b16 %v227, %v223
    %v244 = vpack.c.b16 %v228, %v224
    %vm261 = vcmask 523264
    %v263 = vsel %vm261, %v142, 0
    %265 = vmatprep.subr.bf16.mxu0 0
    %266 = vmatpush1.bf16.msra.mxu0 0
    %267 = vmatprep.subr.bf16.mxu0 0
    %268 = vmatpush1.bf16.msra.mxu0 0
    %269 = vmatprep.subr.bf16.mxu0 0
    %270 = vmatpush1.bf16.msra.mxu0 0
    %271 = vmatprep.subr.bf16.mxu0 0
    %272 = vmatpush1.bf16.msra.mxu0 0
    %273 = vmatprep.subr.bf16.mxu0 %v242
    %274 = vmatpush1.bf16.msra.mxu0 %v241
    %275 = vmatprep.subr.bf16.mxu0 %v238
    %276 = vmatpush1.bf16.msra.mxu0 %v237
    %277 = vmatprep.subr.bf16.mxu0 %v234
    %278 = vmatpush1.bf16.msra.mxu0 %v233
    %279 = vmatprep.subr.bf16.mxu0 %v230
    %280 = vmatpush1.bf16.msra.mxu0 %v229
    %281 = vmatprep.subr.bf16.mxu0 0
    %282 = vmatpush2.bf16.msra.mxu0 0
    %283 = vmatprep.subr.bf16.mxu0 0
    %284 = vmatpush2.bf16.msra.mxu0 0
    %285 = vmatprep.subr.bf16.mxu0 0
    %286 = vmatpush2.bf16.msra.mxu0 0
    %287 = vmatprep.subr.bf16.mxu0 0
    %288 = vmatpush2.bf16.msra.mxu0 0
    %289 = vmatprep.subr.bf16.mxu0 0
    %290 = vmatpush2.bf16.msra.mxu0 0
    %291 = vmatprep.subr.bf16.mxu0 0
    %292 = vmatpush2.bf16.msra.mxu0 0
    %293 = vmatprep.subr.bf16.mxu0 0
    %294 = vmatpush2.bf16.msra.mxu0 0
    %295 = vmatprep.subr.bf16.mxu0 0
    %296 = vmatpush2.bf16.msra.mxu0 0
    %297 = vmatprep.mubr.bf16.mxu0 0
    %298 = vmatmul.mubr.bf16.gmra.mxu0 %v263
    %v299 = vpop.f32.mrf.mxu0
    %v300 = vadd.f32 %v97, %v299
    %v301 = vpop.f32.mrf.mxu0
    %v302 = vadd.f32 %v101, %v301
    %v303 = vpop.f32.mrf.mxu0
    %v304 = vpop.f32.mrf.mxu0
    %305 = vdwg.mxu0
    %306 = vmatprep.subr.bf16.mxu0 0
    %307 = vmatpush1.bf16.msra.mxu0 0
    %308 = vmatprep.subr.bf16.mxu0 0
    %309 = vmatpush1.bf16.msra.mxu0 0
    %310 = vmatprep.subr.bf16.mxu0 0
    %311 = vmatpush1.bf16.msra.mxu0 0
    %312 = vmatprep.subr.bf16.mxu0 0
    %313 = vmatpush1.bf16.msra.mxu0 0
    %314 = vmatprep.subr.bf16.mxu0 %v244
    %315 = vmatpush1.bf16.msra.mxu0 %v243
    %316 = vmatprep.subr.bf16.mxu0 %v240
    %317 = vmatpush1.bf16.msra.mxu0 %v239
    %318 = vmatprep.subr.bf16.mxu0 %v236
    %319 = vmatpush1.bf16.msra.mxu0 %v235
    %320 = vmatprep.subr.bf16.mxu0 %v232
    %321 = vmatpush1.bf16.msra.mxu0 %v231
    %322 = vmatprep.subr.bf16.mxu0 0
    %323 = vmatpush2.bf16.msra.mxu0 0
    %324 = vmatprep.subr.bf16.mxu0 0
    %325 = vmatpush2.bf16.msra.mxu0 0
    %326 = vmatprep.subr.bf16.mxu0 0
    %327 = vmatpush2.bf16.msra.mxu0 0
    %328 = vmatprep.subr.bf16.mxu0 0
    %329 = vmatpush2.bf16.msra.mxu0 0
    %330 = vmatprep.subr.bf16.mxu0 0
    %331 = vmatpush2.bf16.msra.mxu0 0
    %332 = vmatprep.subr.bf16.mxu0 0
    %333 = vmatpush2.bf16.msra.mxu0 0
    %334 = vmatprep.subr.bf16.mxu0 0
    %335 = vmatpush2.bf16.msra.mxu0 0
    %336 = vmatprep.subr.bf16.mxu0 0
    %337 = vmatpush2.bf16.msra.mxu0 0
    %338 = vmatprep.mubr.bf16.mxu0 0
    %339 = vmatmul.mubr.bf16.gmra.mxu0 %v263
    %v340 = vpop.f32.mrf.mxu0
    %v341 = vadd.f32 %v105, %v340
    %v342 = vpop.f32.mrf.mxu0
    %v343 = vadd.f32 %v109, %v342
    %v344 = vpop.f32.mrf.mxu0
    %v345 = vpop.f32.mrf.mxu0
    %346 = vdwg.mxu0
    %v347 = vxor.u32 %v300, 2147483648
    %v348 = vxor.u32 %v302, 2147483648
    %v349 = vxor.u32 %v341, 2147483648
    %v350 = vmul.f32 %v347, 1.442695
    %v351 = vpow.pop %v350
    %v352 = vmul.f32 %v348, 1.442695
    %v353 = vpow.pop %v352
    %v354 = vmul.f32 %v349, 1.442695
    %v355 = vpow.pop %v354
    %v356 = vadd.f32 %v351, 1.0
    %v357 = vadd.f32 %v353, 1.0
    %v358 = vadd.f32 %v355, 1.0
    %v359 = vrcp.pop %v356
    %v360 = vmul.f32 1.0, %v359
    %v361 = vrcp.pop %v357
    %v362 = vmul.f32 1.0, %v361
    %v363 = vrcp.pop %v358
    %v364 = vmul.f32 1.0, %v363
    %v365 = vtanh.pop %v343
    %v366 = vmul.f32 %v362, 0.0
    %v367 = vmul.f32 %v360, %v365
    %v368 = vadd.f32 %v366, %v367
    %v369 = vtanh.pop %v368
    %v370 = vmul.f32 %v364, %v369
    %v371 = vpack.c.bf16 %v370, %v370
    %v372 = vld [vmem:[#allocation6 + $0x20] sm:$0xff]
    %v373 = vld [vmem:[#allocation6 + $0x28] sm:$0xff]
    %v374 = vld [vmem:[#allocation6 + $0x30] sm:$0xff]
    %v375 = vld [vmem:[#allocation6 + $0x38] sm:$0xff]
    %v392 = vunpack.c.l.b16 %v76
    %v393 = vunpack.c.h.b16 %v76
    %v394 = vunpack.c.l.b16 %v77
    %v395 = vunpack.c.h.b16 %v77
    %v396 = vunpack.c.l.b16 %v78
    %v397 = vunpack.c.h.b16 %v78
    %v398 = vunpack.c.l.b16 %v79
    %v399 = vunpack.c.h.b16 %v79
    %v400 = vunpack.c.l.b16 %v80
    %v401 = vunpack.c.h.b16 %v80
    %v402 = vunpack.c.l.b16 %v81
    %v403 = vunpack.c.h.b16 %v81
    %v404 = vunpack.c.l.b16 %v82
    %v405 = vunpack.c.h.b16 %v82
    %v406 = vunpack.c.l.b16 %v83
    %v407 = vunpack.c.h.b16 %v83
    %v408 = vunpack.c.l.b16 %v84
    %v409 = vunpack.c.h.b16 %v84
    %v410 = vunpack.c.l.b16 %v85
    %v411 = vunpack.c.h.b16 %v85
    %v412 = vunpack.c.l.b16 %v86
    %v413 = vunpack.c.h.b16 %v86
    %v414 = vunpack.c.l.b16 %v87
    %v415 = vunpack.c.h.b16 %v87
    %v416 = vunpack.c.l.b16 %v88
    %v417 = vunpack.c.h.b16 %v88
    %v418 = vunpack.c.l.b16 %v89
    %v419 = vunpack.c.h.b16 %v89
    %v420 = vunpack.c.l.b16 %v90
    %v421 = vunpack.c.h.b16 %v90
    %v422 = vunpack.c.l.b16 %v91
    %v423 = vunpack.c.h.b16 %v91
    %v424 = vpack.c.b16 %v396, %v392
    %v425 = vpack.c.b16 %v397, %v393
    %v426 = vpack.c.b16 %v398, %v394
    %v427 = vpack.c.b16 %v399, %v395
    %v428 = vpack.c.b16 %v404, %v400
    %v429 = vpack.c.b16 %v405, %v401
    %v430 = vpack.c.b16 %v406, %v402
    %v431 = vpack.c.b16 %v407, %v403
    %v432 = vpack.c.b16 %v412, %v408
    %v433 = vpack.c.b16 %v413, %v409
    %v434 = vpack.c.b16 %v414, %v410
    %v435 = vpack.c.b16 %v415, %v411
    %v436 = vpack.c.b16 %v420, %v416
    %v437 = vpack.c.b16 %v421, %v417
    %v438 = vpack.c.b16 %v422, %v418
    %v439 = vpack.c.b16 %v423, %v419
    %456 = vmatprep.subr.bf16.mxu0 0
    %457 = vmatpush1.bf16.msra.mxu0 0
    %458 = vmatprep.subr.bf16.mxu0 0
    %459 = vmatpush1.bf16.msra.mxu0 0
    %460 = vmatprep.subr.bf16.mxu0 0
    %461 = vmatpush1.bf16.msra.mxu0 0
    %462 = vmatprep.subr.bf16.mxu0 0
    %463 = vmatpush1.bf16.msra.mxu0 0
    %464 = vmatprep.subr.bf16.mxu0 %v437
    %465 = vmatpush1.bf16.msra.mxu0 %v436
    %466 = vmatprep.subr.bf16.mxu0 %v433
    %467 = vmatpush1.bf16.msra.mxu0 %v432
    %468 = vmatprep.subr.bf16.mxu0 %v429
    %469 = vmatpush1.bf16.msra.mxu0 %v428
    %470 = vmatprep.subr.bf16.mxu0 %v425
    %471 = vmatpush1.bf16.msra.mxu0 %v424
    %472 = vmatprep.subr.bf16.mxu0 0
    %473 = vmatpush2.bf16.msra.mxu0 0
    %474 = vmatprep.subr.bf16.mxu0 0
    %475 = vmatpush2.bf16.msra.mxu0 0
    %476 = vmatprep.subr.bf16.mxu0 0
    %477 = vmatpush2.bf16.msra.mxu0 0
    %478 = vmatprep.subr.bf16.mxu0 0
    %479 = vmatpush2.bf16.msra.mxu0 0
    %480 = vmatprep.subr.bf16.mxu0 0
    %481 = vmatpush2.bf16.msra.mxu0 0
    %482 = vmatprep.subr.bf16.mxu0 0
    %483 = vmatpush2.bf16.msra.mxu0 0
    %484 = vmatprep.subr.bf16.mxu0 0
    %485 = vmatpush2.bf16.msra.mxu0 0
    %486 = vmatprep.subr.bf16.mxu0 0
    %487 = vmatpush2.bf16.msra.mxu0 0
    %488 = vmatprep.mubr.bf16.mxu0 0
    %489 = vmatmul.mubr.bf16.gmra.mxu0 %v263
    %v490 = vpop.f32.mrf.mxu0
    %v491 = vadd.f32 0.0, %v490
    %v492 = vpop.f32.mrf.mxu0
    %v493 = vadd.f32 0.0, %v492
    %v494 = vpop.f32.mrf.mxu0
    %v495 = vpop.f32.mrf.mxu0
    %496 = vdwg.mxu0
    %497 = vmatprep.subr.bf16.mxu0 0
    %498 = vmatpush1.bf16.msra.mxu0 0
    %499 = vmatprep.subr.bf16.mxu0 0
    %500 = vmatpush1.bf16.msra.mxu0 0
    %501 = vmatprep.subr.bf16.mxu0 0
    %502 = vmatpush1.bf16.msra.mxu0 0
    %503 = vmatprep.subr.bf16.mxu0 0
    %504 = vmatpush1.bf16.msra.mxu0 0
    %505 = vmatprep.subr.bf16.mxu0 %v439
    %506 = vmatpush1.bf16.msra.mxu0 %v438
    %507 = vmatprep.subr.bf16.mxu0 %v435
    %508 = vmatpush1.bf16.msra.mxu0 %v434
    %509 = vmatprep.subr.bf16.mxu0 %v431
    %510 = vmatpush1.bf16.msra.mxu0 %v430
    %511 = vmatprep.subr.bf16.mxu0 %v427
    %512 = vmatpush1.bf16.msra.mxu0 %v426
    %513 = vmatprep.subr.bf16.mxu0 0
    %514 = vmatpush2.bf16.msra.mxu0 0
    %515 = vmatprep.subr.bf16.mxu0 0
    %516 = vmatpush2.bf16.msra.mxu0 0
    %517 = vmatprep.subr.bf16.mxu0 0
    %518 = vmatpush2.bf16.msra.mxu0 0
    %519 = vmatprep.subr.bf16.mxu0 0
    %520 = vmatpush2.bf16.msra.mxu0 0
    %521 = vmatprep.subr.bf16.mxu0 0
    %522 = vmatpush2.bf16.msra.mxu0 0
    %523 = vmatprep.subr.bf16.mxu0 0
    %524 = vmatpush2.bf16.msra.mxu0 0
    %525 = vmatprep.subr.bf16.mxu0 0
    %526 = vmatpush2.bf16.msra.mxu0 0
    %527 = vmatprep.subr.bf16.mxu0 0
    %528 = vmatpush2.bf16.msra.mxu0 0
    %529 = vmatprep.mubr.bf16.mxu0 0
    %530 = vmatmul.mubr.bf16.gmra.mxu0 %v263
    %v531 = vpop.f32.mrf.mxu0
    %v532 = vadd.f32 0.0, %v531
    %v533 = vpop.f32.mrf.mxu0
    %v534 = vadd.f32 0.0, %v533
    %v535 = vpop.f32.mrf.mxu0
    %v536 = vpop.f32.mrf.mxu0
    %537 = vdwg.mxu0
    %v538 = vadd.f32 %v372, %v491
    %v539 = vadd.f32 %v373, %v493
    %v540 = vadd.f32 %v374, %v532
    %v541 = vadd.f32 %v375, %v534
    %v542 = vxor.u32 %v538, 2147483648
    %v543 = vxor.u32 %v539, 2147483648
    %v544 = vxor.u32 %v540, 2147483648
    %v545 = vmul.f32 %v542, 1.442695
    %v546 = vpow.pop %v545
    %v547 = vmul.f32 %v543, 1.442695
    %v548 = vpow.pop %v547
    %v549 = vmul.f32 %v544, 1.442695
    %v550 = vpow.pop %v549
    %v551 = vadd.f32 %v546, 1.0
    %v552 = vadd.f32 %v548, 1.0
    %v553 = vadd.f32 %v550, 1.0
    %v554 = vrcp.pop %v551
    %v555 = vmul.f32 1.0, %v554
    %v556 = vrcp.pop %v552
    %v557 = vmul.f32 1.0, %v556
    %v558 = vrcp.pop %v553
    %v559 = vmul.f32 1.0, %v558
    %v560 = vtanh.pop %v541
    %v561 = vmul.f32 %v557, %v139
    %v562 = vmul.f32 %v555, %v560
    %v563 = vadd.f32 %v561, %v562
    %v564 = vtanh.pop %v563
    %v565 = vmul.f32 %v559, %v564
    %v566 = vpack.c.bf16 %v565, %v565
    %v568 = vsel %vm261, %v566, 0
    %570 = vmatprep.subr.bf16.mxu0 0
    %571 = vmatpush1.bf16.msra.mxu0 0
    %572 = vmatprep.subr.bf16.mxu0 0
    %573 = vmatpush1.bf16.msra.mxu0 0
    %574 = vmatprep.subr.bf16.mxu0 0
    %575 = vmatpush1.bf16.msra.mxu0 0
    %576 = vmatprep.subr.bf16.mxu0 0
    %577 = vmatpush1.bf16.msra.mxu0 0
    %578 = vmatprep.subr.bf16.mxu0 %v242
    %579 = vmatpush1.bf16.msra.mxu0 %v241
    %580 = vmatprep.subr.bf16.mxu0 %v238
    %581 = vmatpush1.bf16.msra.mxu0 %v237
    %582 = vmatprep.subr.bf16.mxu0 %v234
    %583 = vmatpush1.bf16.msra.mxu0 %v233
    %584 = vmatprep.subr.bf16.mxu0 %v230
    %585 = vmatpush1.bf16.msra.mxu0 %v229
    %586 = vmatprep.subr.bf16.mxu0 0
    %587 = vmatpush2.bf16.msra.mxu0 0
    %588 = vmatprep.subr.bf16.mxu0 0
    %589 = vmatpush2.bf16.msra.mxu0 0
    %590 = vmatprep.subr.bf16.mxu0 0
    %591 = vmatpush2.bf16.msra.mxu0 0
    %592 = vmatprep.subr.bf16.mxu0 0
    %593 = vmatpush2.bf16.msra.mxu0 0
    %594 = vmatprep.subr.bf16.mxu0 0
    %595 = vmatpush2.bf16.msra.mxu0 0
    %596 = vmatprep.subr.bf16.mxu0 0
    %597 = vmatpush2.bf16.msra.mxu0 0
    %598 = vmatprep.subr.bf16.mxu0 0
    %599 = vmatpush2.bf16.msra.mxu0 0
    %600 = vmatprep.subr.bf16.mxu0 0
    %601 = vmatpush2.bf16.msra.mxu0 0
    %602 = vmatprep.mubr.bf16.mxu0 0
    %603 = vmatmul.mubr.bf16.gmra.mxu0 %v568
    %v604 = vpop.f32.mrf.mxu0
    %v605 = vadd.f32 %v97, %v604
    %v606 = vpop.f32.mrf.mxu0
    %v607 = vadd.f32 %v101, %v606
    %v608 = vpop.f32.mrf.mxu0
    %v609 = vpop.f32.mrf.mxu0
    %610 = vdwg.mxu0
    %611 = vmatprep.subr.bf16.mxu0 0
    %612 = vmatpush1.bf16.msra.mxu0 0
    %613 = vmatprep.subr.bf16.mxu0 0
    %614 = vmatpush1.bf16.msra.mxu0 0
    %615 = vmatprep.subr.bf16.mxu0 0
    %616 = vmatpush1.bf16.msra.mxu0 0
    %617 = vmatprep.subr.bf16.mxu0 0
    %618 = vmatpush1.bf16.msra.mxu0 0
    %619 = vmatprep.subr.bf16.mxu0 %v244
    %620 = vmatpush1.bf16.msra.mxu0 %v243
    %621 = vmatprep.subr.bf16.mxu0 %v240
    %622 = vmatpush1.bf16.msra.mxu0 %v239
    %623 = vmatprep.subr.bf16.mxu0 %v236
    %624 = vmatpush1.bf16.msra.mxu0 %v235
    %625 = vmatprep.subr.bf16.mxu0 %v232
    %626 = vmatpush1.bf16.msra.mxu0 %v231
    %627 = vmatprep.subr.bf16.mxu0 0
    %628 = vmatpush2.bf16.msra.mxu0 0
    %629 = vmatprep.subr.bf16.mxu0 0
    %630 = vmatpush2.bf16.msra.mxu0 0
    %631 = vmatprep.subr.bf16.mxu0 0
    %632 = vmatpush2.bf16.msra.mxu0 0
    %633 = vmatprep.subr.bf16.mxu0 0
    %634 = vmatpush2.bf16.msra.mxu0 0
    %635 = vmatprep.subr.bf16.mxu0 0
    %636 = vmatpush2.bf16.msra.mxu0 0
    %637 = vmatprep.subr.bf16.mxu0 0
    %638 = vmatpush2.bf16.msra.mxu0 0
    %639 = vmatprep.subr.bf16.mxu0 0
    %640 = vmatpush2.bf16.msra.mxu0 0
    %641 = vmatprep.subr.bf16.mxu0 0
    %642 = vmatpush2.bf16.msra.mxu0 0
    %643 = vmatprep.mubr.bf16.mxu0 0
    %644 = vmatmul.mubr.bf16.gmra.mxu0 %v568
    %v645 = vpop.f32.mrf.mxu0
    %v646 = vadd.f32 %v105, %v645
    %v647 = vpop.f32.mrf.mxu0
    %v648 = vadd.f32 %v109, %v647
    %v649 = vpop.f32.mrf.mxu0
    %v650 = vpop.f32.mrf.mxu0
    %651 = vdwg.mxu0
    %v668 = vunpack.c.l.b16 %v165
    %v669 = vunpack.c.h.b16 %v165
    %v670 = vunpack.c.l.b16 %v166
    %v671 = vunpack.c.h.b16 %v166
    %v672 = vunpack.c.l.b16 %v167
    %v673 = vunpack.c.h.b16 %v167
    %v674 = vunpack.c.l.b16 %v168
    %v675 = vunpack.c.h.b16 %v168
    %v676 = vunpack.c.l.b16 %v169
    %v677 = vunpack.c.h.b16 %v169
    %v678 = vunpack.c.l.b16 %v170
    %v679 = vunpack.c.h.b16 %v170
    %v680 = vunpack.c.l.b16 %v171
    %v681 = vunpack.c.h.b16 %v171
    %v682 = vunpack.c.l.b16 %v172
    %v683 = vunpack.c.h.b16 %v172
    %v684 = vunpack.c.l.b16 %v173
    %v685 = vunpack.c.h.b16 %v173
    %v686 = vunpack.c.l.b16 %v174
    %v687 = vunpack.c.h.b16 %v174
    %v688 = vunpack.c.l.b16 %v175
    %v689 = vunpack.c.h.b16 %v175
    %v690 = vunpack.c.l.b16 %v176
    %v691 = vunpack.c.h.b16 %v176
    %v692 = vunpack.c.l.b16 %v177
    %v693 = vunpack.c.h.b16 %v177
    %v694 = vunpack.c.l.b16 %v178
    %v695 = vunpack.c.h.b16 %v178
    %v696 = vunpack.c.l.b16 %v179
    %v697 = vunpack.c.h.b16 %v179
    %v698 = vunpack.c.l.b16 %v180
    %v699 = vunpack.c.h.b16 %v180
    %v700 = vpack.c.b16 %v672, %v668
    %v701 = vpack.c.b16 %v673, %v669
    %v702 = vpack.c.b16 %v674, %v670
    %v703 = vpack.c.b16 %v675, %v671
    %v704 = vpack.c.b16 %v680, %v676
    %v705 = vpack.c.b16 %v681, %v677
    %v706 = vpack.c.b16 %v682, %v678
    %v707 = vpack.c.b16 %v683, %v679
    %v708 = vpack.c.b16 %v688, %v684
    %v709 = vpack.c.b16 %v689, %v685
    %v710 = vpack.c.b16 %v690, %v686
    %v711 = vpack.c.b16 %v691, %v687
    %v712 = vpack.c.b16 %v696, %v692
    %v713 = vpack.c.b16 %v697, %v693
    %v714 = vpack.c.b16 %v698, %v694
    %v715 = vpack.c.b16 %v699, %v695
    %v733 = vsel %vm261, %v371, 0
    %735 = vmatprep.subr.bf16.mxu0 0
    %736 = vmatpush1.bf16.msra.mxu0 0
    %737 = vmatprep.subr.bf16.mxu0 0
    %738 = vmatpush1.bf16.msra.mxu0 0
    %739 = vmatprep.subr.bf16.mxu0 0
    %740 = vmatpush1.bf16.msra.mxu0 0
    %741 = vmatprep.subr.bf16.mxu0 0
    %742 = vmatpush1.bf16.msra.mxu0 0
    %743 = vmatprep.subr.bf16.mxu0 %v713
    %744 = vmatpush1.bf16.msra.mxu0 %v712
    %745 = vmatprep.subr.bf16.mxu0 %v709
    %746 = vmatpush1.bf16.msra.mxu0 %v708
    %747 = vmatprep.subr.bf16.mxu0 %v705
    %748 = vmatpush1.bf16.msra.mxu0 %v704
    %749 = vmatprep.subr.bf16.mxu0 %v701
    %750 = vmatpush1.bf16.msra.mxu0 %v700
    %751 = vmatprep.subr.bf16.mxu0 0
    %752 = vmatpush2.bf16.msra.mxu0 0
    %753 = vmatprep.subr.bf16.mxu0 0
    %754 = vmatpush2.bf16.msra.mxu0 0
    %755 = vmatprep.subr.bf16.mxu0 0
    %756 = vmatpush2.bf16.msra.mxu0 0
    %757 = vmatprep.subr.bf16.mxu0 0
    %758 = vmatpush2.bf16.msra.mxu0 0
    %759 = vmatprep.subr.bf16.mxu0 0
    %760 = vmatpush2.bf16.msra.mxu0 0
    %761 = vmatprep.subr.bf16.mxu0 0
    %762 = vmatpush2.bf16.msra.mxu0 0
    %763 = vmatprep.subr.bf16.mxu0 0
    %764 = vmatpush2.bf16.msra.mxu0 0
    %765 = vmatprep.subr.bf16.mxu0 0
    %766 = vmatpush2.bf16.msra.mxu0 0
    %767 = vmatprep.mubr.bf16.mxu0 0
    %768 = vmatmul.mubr.bf16.gmra.mxu0 %v733
    %v769 = vpop.f32.mrf.mxu0
    %v770 = vadd.f32 0.0, %v769
    %v771 = vpop.f32.mrf.mxu0
    %v772 = vadd.f32 0.0, %v771
    %v773 = vpop.f32.mrf.mxu0
    %v774 = vpop.f32.mrf.mxu0
    %775 = vdwg.mxu0
    %776 = vmatprep.subr.bf16.mxu0 0
    %777 = vmatpush1.bf16.msra.mxu0 0
    %778 = vmatprep.subr.bf16.mxu0 0
    %779 = vmatpush1.bf16.msra.mxu0 0
    %780 = vmatprep.subr.bf16.mxu0 0
    %781 = vmatpush1.bf16.msra.mxu0 0
    %782 = vmatprep.subr.bf16.mxu0 0
    %783 = vmatpush1.bf16.msra.mxu0 0
    %784 = vmatprep.subr.bf16.mxu0 %v715
    %785 = vmatpush1.bf16.msra.mxu0 %v714
    %786 = vmatprep.subr.bf16.mxu0 %v711
    %787 = vmatpush1.bf16.msra.mxu0 %v710
    %788 = vmatprep.subr.bf16.mxu0 %v707
    %789 = vmatpush1.bf16.msra.mxu0 %v706
    %790 = vmatprep.subr.bf16.mxu0 %v703
    %791 = vmatpush1.bf16.msra.mxu0 %v702
    %792 = vmatprep.subr.bf16.mxu0 0
    %793 = vmatpush2.bf16.msra.mxu0 0
    %794 = vmatprep.subr.bf16.mxu0 0
    %795 = vmatpush2.bf16.msra.mxu0 0
    %796 = vmatprep.subr.bf16.mxu0 0
    %797 = vmatpush2.bf16.msra.mxu0 0
    %798 = vmatprep.subr.bf16.mxu0 0
    %799 = vmatpush2.bf16.msra.mxu0 0
    %800 = vmatprep.subr.bf16.mxu0 0
    %801 = vmatpush2.bf16.msra.mxu0 0
    %802 = vmatprep.subr.bf16.mxu0 0
    %803 = vmatpush2.bf16.msra.mxu0 0
    %804 = vmatprep.subr.bf16.mxu0 0
    %805 = vmatpush2.bf16.msra.mxu0 0
    %806 = vmatprep.subr.bf16.mxu0 0
    %807 = vmatpush2.bf16.msra.mxu0 0
    %808 = vmatprep.mubr.bf16.mxu0 0
    %809 = vmatmul.mubr.bf16.gmra.mxu0 %v733
    %v810 = vpop.f32.mrf.mxu0
    %v811 = vadd.f32 0.0, %v810
    %v812 = vpop.f32.mrf.mxu0
    %v813 = vadd.f32 0.0, %v812
    %v814 = vpop.f32.mrf.mxu0
    %v815 = vpop.f32.mrf.mxu0
    %816 = vdwg.mxu0
    %v817 = vadd.f32 %v605, %v770
    %v818 = vadd.f32 %v607, %v772
    %v819 = vadd.f32 %v646, %v811
    %v820 = vadd.f32 %v648, %v813
    %v821 = vxor.u32 %v817, 2147483648
    %v822 = vxor.u32 %v818, 2147483648
    %v823 = vxor.u32 %v819, 2147483648
    %v824 = vmul.f32 %v821, 1.442695
    %v825 = vpow.pop %v824
    %v826 = vmul.f32 %v822, 1.442695
    %v827 = vpow.pop %v826
    %v828 = vmul.f32 %v823, 1.442695
    %v829 = vpow.pop %v828
    %v830 = vadd.f32 %v825, 1.0
    %v831 = vadd.f32 %v827, 1.0
    %v832 = vadd.f32 %v829, 1.0
    %v833 = vrcp.pop %v830
    %v834 = vmul.f32 1.0, %v833
    %v835 = vrcp.pop %v831
    %v836 = vmul.f32 1.0, %v835
    %v837 = vrcp.pop %v832
    %v838 = vmul.f32 1.0, %v837
    %v839 = vtanh.pop %v820
    %v840 = vmul.f32 %v836, %v368
    %v841 = vmul.f32 %v834, %v839
    %v842 = vadd.f32 %v840, %v841
    %v843 = vtanh.pop %v842
    %v844 = vmul.f32 %v838, %v843
    %v845 = vpack.c.bf16 %v844, %v844
    %v846 = vld [vmem:[#allocation6 + $0x40] sm:$0xff]
    %v847 = vld [vmem:[#allocation6 + $0x48] sm:$0xff]
    %v848 = vld [vmem:[#allocation6 + $0x50] sm:$0xff]
    %v849 = vld [vmem:[#allocation6 + $0x58] sm:$0xff]
    %850 = vmatprep.subr.bf16.mxu0 0
    %851 = vmatpush1.bf16.msra.mxu0 0
    %852 = vmatprep.subr.bf16.mxu0 0
    %853 = vmatpush1.bf16.msra.mxu0 0
    %854 = vmatprep.subr.bf16.mxu0 0
    %855 = vmatpush1.bf16.msra.mxu0 0
    %856 = vmatprep.subr.bf16.mxu0 0
    %857 = vmatpush1.bf16.msra.mxu0 0
    %858 = vmatprep.subr.bf16.mxu0 %v437
    %859 = vmatpush1.bf16.msra.mxu0 %v436
    %860 = vmatprep.subr.bf16.mxu0 %v433
    %861 = vmatpush1.bf16.msra.mxu0 %v432
    %862 = vmatprep.subr.bf16.mxu0 %v429
    %863 = vmatpush1.bf16.msra.mxu0 %v428
    %864 = vmatprep.subr.bf16.mxu0 %v425
    %865 = vmatpush1.bf16.msra.mxu0 %v424
    %866 = vmatprep.subr.bf16.mxu0 0
    %867 = vmatpush2.bf16.msra.mxu0 0
    %868 = vmatprep.subr.bf16.mxu0 0
    %869 = vmatpush2.bf16.msra.mxu0 0
    %870 = vmatprep.subr.bf16.mxu0 0
    %871 = vmatpush2.bf16.msra.mxu0 0
    %872 = vmatprep.subr.bf16.mxu0 0
    %873 = vmatpush2.bf16.msra.mxu0 0
    %874 = vmatprep.subr.bf16.mxu0 0
    %875 = vmatpush2.bf16.msra.mxu0 0
    %876 = vmatprep.subr.bf16.mxu0 0
    %877 = vmatpush2.bf16.msra.mxu0 0
    %878 = vmatprep.subr.bf16.mxu0 0
    %879 = vmatpush2.bf16.msra.mxu0 0
    %880 = vmatprep.subr.bf16.mxu0 0
    %881 = vmatpush2.bf16.msra.mxu0 0
    %882 = vmatprep.mubr.bf16.mxu0 0
    %883 = vmatmul.mubr.bf16.gmra.mxu0 %v568
    %v884 = vpop.f32.mrf.mxu0
    %v885 = vadd.f32 0.0, %v884
    %v886 = vpop.f32.mrf.mxu0
    %v887 = vadd.f32 0.0, %v886
    %v888 = vpop.f32.mrf.mxu0
    %v889 = vpop.f32.mrf.mxu0
    %890 = vdwg.mxu0
    %891 = vmatprep.subr.bf16.mxu0 0
    %892 = vmatpush1.bf16.msra.mxu0 0
    %893 = vmatprep.subr.bf16.mxu0 0
    %894 = vmatpush1.bf16.msra.mxu0 0
    %895 = vmatprep.subr.bf16.mxu0 0
    %896 = vmatpush1.bf16.msra.mxu0 0
    %897 = vmatprep.subr.bf16.mxu0 0
    %898 = vmatpush1.bf16.msra.mxu0 0
    %899 = vmatprep.subr.bf16.mxu0 %v439
    %900 = vmatpush1.bf16.msra.mxu0 %v438
    %901 = vmatprep.subr.bf16.mxu0 %v435
    %902 = vmatpush1.bf16.msra.mxu0 %v434
    %903 = vmatprep.subr.bf16.mxu0 %v431
    %904 = vmatpush1.bf16.msra.mxu0 %v430
    %905 = vmatprep.subr.bf16.mxu0 %v427
    %906 = vmatpush1.bf16.msra.mxu0 %v426
    %907 = vmatprep.subr.bf16.mxu0 0
    %908 = vmatpush2.bf16.msra.mxu0 0
    %909 = vmatprep.subr.bf16.mxu0 0
    %910 = vmatpush2.bf16.msra.mxu0 0
    %911 = vmatprep.subr.bf16.mxu0 0
    %912 = vmatpush2.bf16.msra.mxu0 0
    %913 = vmatprep.subr.bf16.mxu0 0
    %914 = vmatpush2.bf16.msra.mxu0 0
    %915 = vmatprep.subr.bf16.mxu0 0
    %916 = vmatpush2.bf16.msra.mxu0 0
    %917 = vmatprep.subr.bf16.mxu0 0
    %918 = vmatpush2.bf16.msra.mxu0 0
    %919 = vmatprep.subr.bf16.mxu0 0
    %920 = vmatpush2.bf16.msra.mxu0 0
    %921 = vmatprep.subr.bf16.mxu0 0
    %922 = vmatpush2.bf16.msra.mxu0 0
    %923 = vmatprep.mubr.bf16.mxu0 0
    %924 = vmatmul.mubr.bf16.gmra.mxu0 %v568
    %v925 = vpop.f32.mrf.mxu0
    %v926 = vadd.f32 0.0, %v925
    %v927 = vpop.f32.mrf.mxu0
    %v928 = vadd.f32 0.0, %v927
    %v929 = vpop.f32.mrf.mxu0
    %v930 = vpop.f32.mrf.mxu0
    %931 = vdwg.mxu0
    %v932 = vadd.f32 %v846, %v885
    %v933 = vadd.f32 %v847, %v887
    %v934 = vadd.f32 %v848, %v926
    %v935 = vadd.f32 %v849, %v928
    %v936 = vxor.u32 %v932, 2147483648
    %v937 = vxor.u32 %v933, 2147483648
    %v938 = vxor.u32 %v934, 2147483648
    %v939 = vmul.f32 %v936, 1.442695
    %v940 = vpow.pop %v939
    %v941 = vmul.f32 %v937, 1.442695
    %v942 = vpow.pop %v941
    %v943 = vmul.f32 %v938, 1.442695
    %v944 = vpow.pop %v943
    %v945 = vadd.f32 %v940, 1.0
    %v946 = vadd.f32 %v942, 1.0
    %v947 = vadd.f32 %v944, 1.0
    %v948 = vrcp.pop %v945
    %v949 = vmul.f32 1.0, %v948
    %v950 = vrcp.pop %v946
    %v951 = vmul.f32 1.0, %v950
    %v952 = vrcp.pop %v947
    %v953 = vmul.f32 1.0, %v952
    %v954 = vtanh.pop %v935
    %v955 = vmul.f32 %v951, %v563
    %v956 = vmul.f32 %v949, %v954
    %v957 = vadd.f32 %v955, %v956
    %v958 = vtanh.pop %v957
    %v959 = vmul.f32 %v953, %v958
    %v960 = vpack.c.bf16 %v959, %v959
    %v962 = vsel %vm261, %v960, 0
    %964 = vmatprep.subr.bf16.mxu0 0
    %965 = vmatpush1.bf16.msra.mxu0 0
    %966 = vmatprep.subr.bf16.mxu0 0
    %967 = vmatpush1.bf16.msra.mxu0 0
    %968 = vmatprep.subr.bf16.mxu0 0
    %969 = vmatpush1.bf16.msra.mxu0 0
    %970 = vmatprep.subr.bf16.mxu0 0
    %971 = vmatpush1.bf16.msra.mxu0 0
    %972 = vmatprep.subr.bf16.mxu0 %v242
    %973 = vmatpush1.bf16.msra.mxu0 %v241
    %974 = vmatprep.subr.bf16.mxu0 %v238
    %975 = vmatpush1.bf16.msra.mxu0 %v237
    %976 = vmatprep.subr.bf16.mxu0 %v234
    %977 = vmatpush1.bf16.msra.mxu0 %v233
    %978 = vmatprep.subr.bf16.mxu0 %v230
    %979 = vmatpush1.bf16.msra.mxu0 %v229
    %980 = vmatprep.subr.bf16.mxu0 0
    %981 = vmatpush2.bf16.msra.mxu0 0
    %982 = vmatprep.subr.bf16.mxu0 0
    %983 = vmatpush2.bf16.msra.mxu0 0
    %984 = vmatprep.subr.bf16.mxu0 0
    %985 = vmatpush2.bf16.msra.mxu0 0
    %986 = vmatprep.subr.bf16.mxu0 0
    %987 = vmatpush2.bf16.msra.mxu0 0
    %988 = vmatprep.subr.bf16.mxu0 0
    %989 = vmatpush2.bf16.msra.mxu0 0
    %990 = vmatprep.subr.bf16.mxu0 0
    %991 = vmatpush2.bf16.msra.mxu0 0
    %992 = vmatprep.subr.bf16.mxu0 0
    %993 = vmatpush2.bf16.msra.mxu0 0
    %994 = vmatprep.subr.bf16.mxu0 0
    %995 = vmatpush2.bf16.msra.mxu0 0
    %996 = vmatprep.mubr.bf16.mxu0 0
    %997 = vmatmul.mubr.bf16.gmra.mxu0 %v962
    %v998 = vpop.f32.mrf.mxu0
    %v999 = vadd.f32 %v97, %v998
    %v1000 = vpop.f32.mrf.mxu0
    %v1001 = vadd.f32 %v101, %v1000
    %v1002 = vpop.f32.mrf.mxu0
    %v1003 = vpop.f32.mrf.mxu0
    %1004 = vdwg.mxu0
    %1005 = vmatprep.subr.bf16.mxu0 0
    %1006 = vmatpush1.bf16.msra.mxu0 0
    %1007 = vmatprep.subr.bf16.mxu0 0
    %1008 = vmatpush1.bf16.msra.mxu0 0
    %1009 = vmatprep.subr.bf16.mxu0 0
    %1010 = vmatpush1.bf16.msra.mxu0 0
    %1011 = vmatprep.subr.bf16.mxu0 0
    %1012 = vmatpush1.bf16.msra.mxu0 0
    %1013 = vmatprep.subr.bf16.mxu0 %v244
    %1014 = vmatpush1.bf16.msra.mxu0 %v243
    %1015 = vmatprep.subr.bf16.mxu0 %v240
    %1016 = vmatpush1.bf16.msra.mxu0 %v239
    %1017 = vmatprep.subr.bf16.mxu0 %v236
    %1018 = vmatpush1.bf16.msra.mxu0 %v235
    %1019 = vmatprep.subr.bf16.mxu0 %v232
    %1020 = vmatpush1.bf16.msra.mxu0 %v231
    %1021 = vmatprep.subr.bf16.mxu0 0
    %1022 = vmatpush2.bf16.msra.mxu0 0
    %1023 = vmatprep.subr.bf16.mxu0 0
    %1024 = vmatpush2.bf16.msra.mxu0 0
    %1025 = vmatprep.subr.bf16.mxu0 0
    %1026 = vmatpush2.bf16.msra.mxu0 0
    %1027 = vmatprep.subr.bf16.mxu0 0
    %1028 = vmatpush2.bf16.msra.mxu0 0
    %1029 = vmatprep.subr.bf16.mxu0 0
    %1030 = vmatpush2.bf16.msra.mxu0 0
    %1031 = vmatprep.subr.bf16.mxu0 0
    %1032 = vmatpush2.bf16.msra.mxu0 0
    %1033 = vmatprep.subr.bf16.mxu0 0
    %1034 = vmatpush2.bf16.msra.mxu0 0
    %1035 = vmatprep.subr.bf16.mxu0 0
    %1036 = vmatpush2.bf16.msra.mxu0 0
    %1037 = vmatprep.mubr.bf16.mxu0 0
    %1038 = vmatmul.mubr.bf16.gmra.mxu0 %v962
    %v1039 = vpop.f32.mrf.mxu0
    %v1040 = vadd.f32 %v105, %v1039
    %v1041 = vpop.f32.mrf.mxu0
    %v1042 = vadd.f32 %v109, %v1041
    %v1043 = vpop.f32.mrf.mxu0
    %v1044 = vpop.f32.mrf.mxu0
    %1045 = vdwg.mxu0
    %v1047 = vsel %vm261, %v845, 0
    %1049 = vmatprep.subr.bf16.mxu0 0
    %1050 = vmatpush1.bf16.msra.mxu0 0
    %1051 = vmatprep.subr.bf16.mxu0 0
    %1052 = vmatpush1.bf16.msra.mxu0 0
    %1053 = vmatprep.subr.bf16.mxu0 0
    %1054 = vmatpush1.bf16.msra.mxu0 0
    %1055 = vmatprep.subr.bf16.mxu0 0
    %1056 = vmatpush1.bf16.msra.mxu0 0
    %1057 = vmatprep.subr.bf16.mxu0 %v713
    %1058 = vmatpush1.bf16.msra.mxu0 %v712
    %1059 = vmatprep.subr.bf16.mxu0 %v709
    %1060 = vmatpush1.bf16.msra.mxu0 %v708
    %1061 = vmatprep.subr.bf16.mxu0 %v705
    %1062 = vmatpush1.bf16.msra.mxu0 %v704
    %1063 = vmatprep.subr.bf16.mxu0 %v701
    %1064 = vmatpush1.bf16.msra.mxu0 %v700
    %1065 = vmatprep.subr.bf16.mxu0 0
    %1066 = vmatpush2.bf16.msra.mxu0 0
    %1067 = vmatprep.subr.bf16.mxu0 0
    %1068 = vmatpush2.bf16.msra.mxu0 0
    %1069 = vmatprep.subr.bf16.mxu0 0
    %1070 = vmatpush2.bf16.msra.mxu0 0
    %1071 = vmatprep.subr.bf16.mxu0 0
    %1072 = vmatpush2.bf16.msra.mxu0 0
    %1073 = vmatprep.subr.bf16.mxu0 0
    %1074 = vmatpush2.bf16.msra.mxu0 0
    %1075 = vmatprep.subr.bf16.mxu0 0
    %1076 = vmatpush2.bf16.msra.mxu0 0
    %1077 = vmatprep.subr.bf16.mxu0 0
    %1078 = vmatpush2.bf16.msra.mxu0 0
    %1079 = vmatprep.subr.bf16.mxu0 0
    %1080 = vmatpush2.bf16.msra.mxu0 0
    %1081 = vmatprep.mubr.bf16.mxu0 0
    %1082 = vmatmul.mubr.bf16.gmra.mxu0 %v1047
    %v1083 = vpop.f32.mrf.mxu0
    %v1084 = vadd.f32 0.0, %v1083
    %v1085 = vpop.f32.mrf.mxu0
    %v1086 = vadd.f32 0.0, %v1085
    %v1087 = vpop.f32.mrf.mxu0
    %v1088 = vpop.f32.mrf.mxu0
    %1089 = vdwg.mxu0
    %1090 = vmatprep.subr.bf16.mxu0 0
    %1091 = vmatpush1.bf16.msra.mxu0 0
    %1092 = vmatprep.subr.bf16.mxu0 0
    %1093 = vmatpush1.bf16.msra.mxu0 0
    %1094 = vmatprep.subr.bf16.mxu0 0
    %1095 = vmatpush1.bf16.msra.mxu0 0
    %1096 = vmatprep.subr.bf16.mxu0 0
    %1097 = vmatpush1.bf16.msra.mxu0 0
    %1098 = vmatprep.subr.bf16.mxu0 %v715
    %1099 = vmatpush1.bf16.msra.mxu0 %v714
    %1100 = vmatprep.subr.bf16.mxu0 %v711
    %1101 = vmatpush1.bf16.msra.mxu0 %v710
    %1102 = vmatprep.subr.bf16.mxu0 %v707
    %1103 = vmatpush1.bf16.msra.mxu0 %v706
    %1104 = vmatprep.subr.bf16.mxu0 %v703
    %1105 = vmatpush1.bf16.msra.mxu0 %v702
    %1106 = vmatprep.subr.bf16.mxu0 0
    %1107 = vmatpush2.bf16.msra.mxu0 0
    %1108 = vmatprep.subr.bf16.mxu0 0
    %1109 = vmatpush2.bf16.msra.mxu0 0
    %1110 = vmatprep.subr.bf16.mxu0 0
    %1111 = vmatpush2.bf16.msra.mxu0 0
    %1112 = vmatprep.subr.bf16.mxu0 0
    %1113 = vmatpush2.bf16.msra.mxu0 0
    %1114 = vmatprep.subr.bf16.mxu0 0
    %1115 = vmatpush2.bf16.msra.mxu0 0
    %1116 = vmatprep.subr.bf16.mxu0 0
    %1117 = vmatpush2.bf16.msra.mxu0 0
    %1118 = vmatprep.subr.bf16.mxu0 0
    %1119 = vmatpush2.bf16.msra.mxu0 0
    %1120 = vmatprep.subr.bf16.mxu0 0
    %1121 = vmatpush2.bf16.msra.mxu0 0
    %1122 = vmatprep.mubr.bf16.mxu0 0
    %1123 = vmatmul.mubr.bf16.gmra.mxu0 %v1047
    %v1124 = vpop.f32.mrf.mxu0
    %v1125 = vadd.f32 0.0, %v1124
    %v1126 = vpop.f32.mrf.mxu0
    %v1127 = vadd.f32 0.0, %v1126
    %v1128 = vpop.f32.mrf.mxu0
    %v1129 = vpop.f32.mrf.mxu0
    %1130 = vdwg.mxu0
    %v1131 = vadd.f32 %v999, %v1084
    %v1132 = vadd.f32 %v1001, %v1086
    %v1133 = vadd.f32 %v1040, %v1125
    %v1134 = vadd.f32 %v1042, %v1127
    %v1135 = vxor.u32 %v1131, 2147483648
    %v1136 = vxor.u32 %v1132, 2147483648
    %v1137 = vxor.u32 %v1133, 2147483648
    %v1138 = vmul.f32 %v1135, 1.442695
    %v1139 = vpow.pop %v1138
    %v1140 = vmul.f32 %v1136, 1.442695
    %v1141 = vpow.pop %v1140
    %v1142 = vmul.f32 %v1137, 1.442695
    %v1143 = vpow.pop %v1142
    %v1144 = vadd.f32 %v1139, 1.0
    %v1145 = vadd.f32 %v1141, 1.0
    %v1146 = vadd.f32 %v1143, 1.0
    %v1147 = vrcp.pop %v1144
    %v1148 = vmul.f32 1.0, %v1147
    %v1149 = vrcp.pop %v1145
    %v1150 = vmul.f32 1.0, %v1149
    %v1151 = vrcp.pop %v1146
    %v1152 = vmul.f32 1.0, %v1151
    %v1153 = vtanh.pop %v1134
    %v1154 = vmul.f32 %v1150, %v842
    %v1155 = vmul.f32 %v1148, %v1153
    %v1156 = vadd.f32 %v1154, %v1155
    %v1157 = vtanh.pop %v1156
    %v1158 = vmul.f32 %v1152, %v1157
    %v1159 = vpack.c.bf16 %v1158, %v1158
    %v1160 = vld [vmem:[#allocation6 + $0x60] sm:$0xff]
    %v1161 = vld [vmem:[#allocation6 + $0x68] sm:$0xff]
    %v1162 = vld [vmem:[#allocation6 + $0x70] sm:$0xff]
    %v1163 = vld [vmem:[#allocation6 + $0x78] sm:$0xff]
    %1164 = vmatprep.subr.bf16.mxu0 0
    %1165 = vmatpush1.bf16.msra.mxu0 0
    %1166 = vmatprep.subr.bf16.mxu0 0
    %1167 = vmatpush1.bf16.msra.mxu0 0
    %1168 = vmatprep.subr.bf16.mxu0 0
    %1169 = vmatpush1.bf16.msra.mxu0 0
    %1170 = vmatprep.subr.bf16.mxu0 0
    %1171 = vmatpush1.bf16.msra.mxu0 0
    %1172 = vmatprep.subr.bf16.mxu0 %v437
    %1173 = vmatpush1.bf16.msra.mxu0 %v436
    %1174 = vmatprep.subr.bf16.mxu0 %v433
    %1175 = vmatpush1.bf16.msra.mxu0 %v432
    %1176 = vmatprep.subr.bf16.mxu0 %v429
    %1177 = vmatpush1.bf16.msra.mxu0 %v428
    %1178 = vmatprep.subr.bf16.mxu0 %v425
    %1179 = vmatpush1.bf16.msra.mxu0 %v424
    %1180 = vmatprep.subr.bf16.mxu0 0
    %1181 = vmatpush2.bf16.msra.mxu0 0
    %1182 = vmatprep.subr.bf16.mxu0 0
    %1183 = vmatpush2.bf16.msra.mxu0 0
    %1184 = vmatprep.subr.bf16.mxu0 0
    %1185 = vmatpush2.bf16.msra.mxu0 0
    %1186 = vmatprep.subr.bf16.mxu0 0
    %1187 = vmatpush2.bf16.msra.mxu0 0
    %1188 = vmatprep.subr.bf16.mxu0 0
    %1189 = vmatpush2.bf16.msra.mxu0 0
    %1190 = vmatprep.subr.bf16.mxu0 0
    %1191 = vmatpush2.bf16.msra.mxu0 0
    %1192 = vmatprep.subr.bf16.mxu0 0
    %1193 = vmatpush2.bf16.msra.mxu0 0
    %1194 = vmatprep.subr.bf16.mxu0 0
    %1195 = vmatpush2.bf16.msra.mxu0 0
    %1196 = vmatprep.mubr.bf16.mxu0 0
    %1197 = vmatmul.mubr.bf16.gmra.mxu0 %v962
    %v1198 = vpop.f32.mrf.mxu0
    %v1199 = vadd.f32 0.0, %v1198
    %v1200 = vpop.f32.mrf.mxu0
    %v1201 = vadd.f32 0.0, %v1200
    %v1202 = vpop.f32.mrf.mxu0
    %v1203 = vpop.f32.mrf.mxu0
    %1204 = vdwg.mxu0
    %1205 = vmatprep.subr.bf16.mxu0 0
    %1206 = vmatpush1.bf16.msra.mxu0 0
    %1207 = vmatprep.subr.bf16.mxu0 0
    %1208 = vmatpush1.bf16.msra.mxu0 0
    %1209 = vmatprep.subr.bf16.mxu0 0
    %1210 = vmatpush1.bf16.msra.mxu0 0
    %1211 = vmatprep.subr.bf16.mxu0 0
    %1212 = vmatpush1.bf16.msra.mxu0 0
    %1213 = vmatprep.subr.bf16.mxu0 %v439
    %1214 = vmatpush1.bf16.msra.mxu0 %v438
    %1215 = vmatprep.subr.bf16.mxu0 %v435
    %1216 = vmatpush1.bf16.msra.mxu0 %v434
    %1217 = vmatprep.subr.bf16.mxu0 %v431
    %1218 = vmatpush1.bf16.msra.mxu0 %v430
    %1219 = vmatprep.subr.bf16.mxu0 %v427
    %1220 = vmatpush1.bf16.msra.mxu0 %v426
    %1221 = vmatprep.subr.bf16.mxu0 0
    %1222 = vmatpush2.bf16.msra.mxu0 0
    %1223 = vmatprep.subr.bf16.mxu0 0
    %1224 = vmatpush2.bf16.msra.mxu0 0
    %1225 = vmatprep.subr.bf16.mxu0 0
    %1226 = vmatpush2.bf16.msra.mxu0 0
    %1227 = vmatprep.subr.bf16.mxu0 0
    %1228 = vmatpush2.bf16.msra.mxu0 0
    %1229 = vmatprep.subr.bf16.mxu0 0
    %1230 = vmatpush2.bf16.msra.mxu0 0
    %1231 = vmatprep.subr.bf16.mxu0 0
    %1232 = vmatpush2.bf16.msra.mxu0 0
    %1233 = vmatprep.subr.bf16.mxu0 0
    %1234 = vmatpush2.bf16.msra.mxu0 0
    %1235 = vmatprep.subr.bf16.mxu0 0
    %1236 = vmatpush2.bf16.msra.mxu0 0
    %1237 = vmatprep.mubr.bf16.mxu0 0
    %1238 = vmatmul.mubr.bf16.gmra.mxu0 %v962
    %v1239 = vpop.f32.mrf.mxu0
    %v1240 = vadd.f32 0.0, %v1239
    %v1241 = vpop.f32.mrf.mxu0
    %v1242 = vadd.f32 0.0, %v1241
    %v1243 = vpop.f32.mrf.mxu0
    %v1244 = vpop.f32.mrf.mxu0
    %1245 = vdwg.mxu0
    %v1246 = vadd.f32 %v1160, %v1199
    %v1247 = vadd.f32 %v1161, %v1201
    %v1248 = vadd.f32 %v1162, %v1240
    %v1249 = vadd.f32 %v1163, %v1242
    %v1250 = vxor.u32 %v1246, 2147483648
    %v1251 = vxor.u32 %v1247, 2147483648
    %v1252 = vxor.u32 %v1248, 2147483648
    %v1253 = vmul.f32 %v1250, 1.442695
    %v1254 = vpow.pop %v1253
    %v1255 = vmul.f32 %v1251, 1.442695
    %v1256 = vpow.pop %v1255
    %v1257 = vmul.f32 %v1252, 1.442695
    %v1258 = vpow.pop %v1257
    %v1259 = vadd.f32 %v1254, 1.0
    %v1260 = vadd.f32 %v1256, 1.0
    %v1261 = vadd.f32 %v1258, 1.0
    %v1262 = vrcp.pop %v1259
    %v1263 = vmul.f32 1.0, %v1262
    %v1264 = vrcp.pop %v1260
    %v1265 = vmul.f32 1.0, %v1264
    %v1266 = vrcp.pop %v1261
    %v1267 = vmul.f32 1.0, %v1266
    %v1268 = vtanh.pop %v1249
    %v1269 = vmul.f32 %v1265, %v957
    %v1270 = vmul.f32 %v1263, %v1268
    %v1271 = vadd.f32 %v1269, %v1270
    %v1272 = vtanh.pop %v1271
    %v1273 = vmul.f32 %v1267, %v1272
    %v1274 = vpack.c.bf16 %v1273, %v1273
    %v1276 = vsel %vm261, %v1274, 0
    %1278 = vmatprep.subr.bf16.mxu0 0
    %1279 = vmatpush1.bf16.msra.mxu0 0
    %1280 = vmatprep.subr.bf16.mxu0 0
    %1281 = vmatpush1.bf16.msra.mxu0 0
    %1282 = vmatprep.subr.bf16.mxu0 0
    %1283 = vmatpush1.bf16.msra.mxu0 0
    %1284 = vmatprep.subr.bf16.mxu0 0
    %1285 = vmatpush1.bf16.msra.mxu0 0
    %1286 = vmatprep.subr.bf16.mxu0 %v242
    %1287 = vmatpush1.bf16.msra.mxu0 %v241
    %1288 = vmatprep.subr.bf16.mxu0 %v238
    %1289 = vmatpush1.bf16.msra.mxu0 %v237
    %1290 = vmatprep.subr.bf16.mxu0 %v234
    %1291 = vmatpush1.bf16.msra.mxu0 %v233
    %1292 = vmatprep.subr.bf16.mxu0 %v230
    %1293 = vmatpush1.bf16.msra.mxu0 %v229
    %1294 = vmatprep.subr.bf16.mxu0 0
    %1295 = vmatpush2.bf16.msra.mxu0 0
    %1296 = vmatprep.subr.bf16.mxu0 0
    %1297 = vmatpush2.bf16.msra.mxu0 0
    %1298 = vmatprep.subr.bf16.mxu0 0
    %1299 = vmatpush2.bf16.msra.mxu0 0
    %1300 = vmatprep.subr.bf16.mxu0 0
    %1301 = vmatpush2.bf16.msra.mxu0 0
    %1302 = vmatprep.subr.bf16.mxu0 0
    %1303 = vmatpush2.bf16.msra.mxu0 0
    %1304 = vmatprep.subr.bf16.mxu0 0
    %1305 = vmatpush2.bf16.msra.mxu0 0
    %1306 = vmatprep.subr.bf16.mxu0 0
    %1307 = vmatpush2.bf16.msra.mxu0 0
    %1308 = vmatprep.subr.bf16.mxu0 0
    %1309 = vmatpush2.bf16.msra.mxu0 0
    %1310 = vmatprep.mubr.bf16.mxu0 0
    %1311 = vmatmul.mubr.bf16.gmra.mxu0 %v1276
    %v1312 = vpop.f32.mrf.mxu0
    %v1313 = vadd.f32 %v97, %v1312
    %v1314 = vpop.f32.mrf.mxu0
    %v1315 = vadd.f32 %v101, %v1314
    %v1316 = vpop.f32.mrf.mxu0
    %v1317 = vpop.f32.mrf.mxu0
    %1318 = vdwg.mxu0
    %1319 = vmatprep.subr.bf16.mxu0 0
    %1320 = vmatpush1.bf16.msra.mxu0 0
    %1321 = vmatprep.subr.bf16.mxu0 0
    %1322 = vmatpush1.bf16.msra.mxu0 0
    %1323 = vmatprep.subr.bf16.mxu0 0
    %1324 = vmatpush1.bf16.msra.mxu0 0
    %1325 = vmatprep.subr.bf16.mxu0 0
    %1326 = vmatpush1.bf16.msra.mxu0 0
    %1327 = vmatprep.subr.bf16.mxu0 %v244
    %1328 = vmatpush1.bf16.msra.mxu0 %v243
    %1329 = vmatprep.subr.bf16.mxu0 %v240
    %1330 = vmatpush1.bf16.msra.mxu0 %v239
    %1331 = vmatprep.subr.bf16.mxu0 %v236
    %1332 = vmatpush1.bf16.msra.mxu0 %v235
    %1333 = vmatprep.subr.bf16.mxu0 %v232
    %1334 = vmatpush1.bf16.msra.mxu0 %v231
    %1335 = vmatprep.subr.bf16.mxu0 0
    %1336 = vmatpush2.bf16.msra.mxu0 0
    %1337 = vmatprep.subr.bf16.mxu0 0
    %1338 = vmatpush2.bf16.msra.mxu0 0
    %1339 = vmatprep.subr.bf16.mxu0 0
    %1340 = vmatpush2.bf16.msra.mxu0 0
    %1341 = vmatprep.subr.bf16.mxu0 0
    %1342 = vmatpush2.bf16.msra.mxu0 0
    %1343 = vmatprep.subr.bf16.mxu0 0
    %1344 = vmatpush2.bf16.msra.mxu0 0
    %1345 = vmatprep.subr.bf16.mxu0 0
    %1346 = vmatpush2.bf16.msra.mxu0 0
    %1347 = vmatprep.subr.bf16.mxu0 0
    %1348 = vmatpush2.bf16.msra.mxu0 0
    %1349 = vmatprep.subr.bf16.mxu0 0
    %1350 = vmatpush2.bf16.msra.mxu0 0
    %1351 = vmatprep.mubr.bf16.mxu0 0
    %1352 = vmatmul.mubr.bf16.gmra.mxu0 %v1276
    %v1353 = vpop.f32.mrf.mxu0
    %v1354 = vadd.f32 %v105, %v1353
    %v1355 = vpop.f32.mrf.mxu0
    %v1356 = vadd.f32 %v109, %v1355
    %v1357 = vpop.f32.mrf.mxu0
    %v1358 = vpop.f32.mrf.mxu0
    %1359 = vdwg.mxu0
    %v1361 = vsel %vm261, %v1159, 0
    %1363 = vmatprep.subr.bf16.mxu0 0
    %1364 = vmatpush1.bf16.msra.mxu0 0
    %1365 = vmatprep.subr.bf16.mxu0 0
    %1366 = vmatpush1.bf16.msra.mxu0 0
    %1367 = vmatprep.subr.bf16.mxu0 0
    %1368 = vmatpush1.bf16.msra.mxu0 0
    %1369 = vmatprep.subr.bf16.mxu0 0
    %1370 = vmatpush1.bf16.msra.mxu0 0
    %1371 = vmatprep.subr.bf16.mxu0 %v713
    %1372 = vmatpush1.bf16.msra.mxu0 %v712
    %1373 = vmatprep.subr.bf16.mxu0 %v709
    %1374 = vmatpush1.bf16.msra.mxu0 %v708
    %1375 = vmatprep.subr.bf16.mxu0 %v705
    %1376 = vmatpush1.bf16.msra.mxu0 %v704
    %1377 = vmatprep.subr.bf16.mxu0 %v701
    %1378 = vmatpush1.bf16.msra.mxu0 %v700
    %1379 = vmatprep.subr.bf16.mxu0 0
    %1380 = vmatpush2.bf16.msra.mxu0 0
    %1381 = vmatprep.subr.bf16.mxu0 0
    %1382 = vmatpush2.bf16.msra.mxu0 0
    %1383 = vmatprep.subr.bf16.mxu0 0
    %1384 = vmatpush2.bf16.msra.mxu0 0
    %1385 = vmatprep.subr.bf16.mxu0 0
    %1386 = vmatpush2.bf16.msra.mxu0 0
    %1387 = vmatprep.subr.bf16.mxu0 0
    %1388 = vmatpush2.bf16.msra.mxu0 0
    %1389 = vmatprep.subr.bf16.mxu0 0
    %1390 = vmatpush2.bf16.msra.mxu0 0
    %1391 = vmatprep.subr.bf16.mxu0 0
    %1392 = vmatpush2.bf16.msra.mxu0 0
    %1393 = vmatprep.subr.bf16.mxu0 0
    %1394 = vmatpush2.bf16.msra.mxu0 0
    %1395 = vmatprep.mubr.bf16.mxu0 0
    %1396 = vmatmul.mubr.bf16.gmra.mxu0 %v1361
    %v1397 = vpop.f32.mrf.mxu0
    %v1398 = vadd.f32 0.0, %v1397
    %v1399 = vpop.f32.mrf.mxu0
    %v1400 = vadd.f32 0.0, %v1399
    %v1401 = vpop.f32.mrf.mxu0
    %v1402 = vpop.f32.mrf.mxu0
    %1403 = vdwg.mxu0
    %1404 = vmatprep.subr.bf16.mxu0 0
    %1405 = vmatpush1.bf16.msra.mxu0 0
    %1406 = vmatprep.subr.bf16.mxu0 0
    %1407 = vmatpush1.bf16.msra.mxu0 0
    %1408 = vmatprep.subr.bf16.mxu0 0
    %1409 = vmatpush1.bf16.msra.mxu0 0
    %1410 = vmatprep.subr.bf16.mxu0 0
    %1411 = vmatpush1.bf16.msra.mxu0 0
    %1412 = vmatprep.subr.bf16.mxu0 %v715
    %1413 = vmatpush1.bf16.msra.mxu0 %v714
    %1414 = vmatprep.subr.bf16.mxu0 %v711
    %1415 = vmatpush1.bf16.msra.mxu0 %v710
    %1416 = vmatprep.subr.bf16.mxu0 %v707
    %1417 = vmatpush1.bf16.msra.mxu0 %v706
    %1418 = vmatprep.subr.bf16.mxu0 %v703
    %1419 = vmatpush1.bf16.msra.mxu0 %v702
    %1420 = vmatprep.subr.bf16.mxu0 0
    %1421 = vmatpush2.bf16.msra.mxu0 0
    %1422 = vmatprep.subr.bf16.mxu0 0
    %1423 = vmatpush2.bf16.msra.mxu0 0
    %1424 = vmatprep.subr.bf16.mxu0 0
    %1425 = vmatpush2.bf16.msra.mxu0 0
    %1426 = vmatprep.subr.bf16.mxu0 0
    %1427 = vmatpush2.bf16.msra.mxu0 0
    %1428 = vmatprep.subr.bf16.mxu0 0
    %1429 = vmatpush2.bf16.msra.mxu0 0
    %1430 = vmatprep.subr.bf16.mxu0 0
    %1431 = vmatpush2.bf16.msra.mxu0 0
    %1432 = vmatprep.subr.bf16.mxu0 0
    %1433 = vmatpush2.bf16.msra.mxu0 0
    %1434 = vmatprep.subr.bf16.mxu0 0
    %1435 = vmatpush2.bf16.msra.mxu0 0
    %1436 = vmatprep.mubr.bf16.mxu0 0
    %1437 = vmatmul.mubr.bf16.gmra.mxu0 %v1361
    %v1438 = vpop.f32.mrf.mxu0
    %v1439 = vadd.f32 0.0, %v1438
    %v1440 = vpop.f32.mrf.mxu0
    %v1441 = vadd.f32 0.0, %v1440
    %v1442 = vpop.f32.mrf.mxu0
    %v1443 = vpop.f32.mrf.mxu0
    %1444 = vdwg.mxu0
    %v1445 = vadd.f32 %v1313, %v1398
    %v1446 = vadd.f32 %v1315, %v1400
    %v1447 = vadd.f32 %v1354, %v1439
    %v1448 = vadd.f32 %v1356, %v1441
    %v1449 = vxor.u32 %v1445, 2147483648
    %v1450 = vxor.u32 %v1446, 2147483648
    %v1451 = vxor.u32 %v1447, 2147483648
    %v1452 = vmul.f32 %v1449, 1.442695
    %v1453 = vpow.pop %v1452
    %v1454 = vmul.f32 %v1450, 1.442695
    %v1455 = vpow.pop %v1454
    %v1456 = vmul.f32 %v1451, 1.442695
    %v1457 = vpow.pop %v1456
    %v1458 = vadd.f32 %v1453, 1.0
    %v1459 = vadd.f32 %v1455, 1.0
    %v1460 = vadd.f32 %v1457, 1.0
    %v1461 = vrcp.pop %v1458
    %v1462 = vmul.f32 1.0, %v1461
    %v1463 = vrcp.pop %v1459
    %v1464 = vmul.f32 1.0, %v1463
    %v1465 = vrcp.pop %v1460
    %v1466 = vmul.f32 1.0, %v1465
    %v1467 = vtanh.pop %v1448
    %v1468 = vmul.f32 %v1464, %v1156
    %v1469 = vmul.f32 %v1462, %v1467
    %v1470 = vadd.f32 %v1468, %v1469
    %v1471 = vtanh.pop %v1470
    %v1472 = vmul.f32 %v1466, %v1471
    %v1473 = vpack.c.bf16 %v1472, %v1472
    %v1474 = vld [vmem:[#allocation6 + $0x80] sm:$0xff]
    %v1475 = vld [vmem:[#allocation6 + $0x88] sm:$0xff]
    %v1476 = vld [vmem:[#allocation6 + $0x90] sm:$0xff]
    %v1477 = vld [vmem:[#allocation6 + $0x98] sm:$0xff]
    %1478 = vmatprep.subr.bf16.mxu0 0
    %1479 = vmatpush1.bf16.msra.mxu0 0
    %1480 = vmatprep.subr.bf16.mxu0 0
    %1481 = vmatpush1.bf16.msra.mxu0 0
    %1482 = vmatprep.subr.bf16.mxu0 0
    %1483 = vmatpush1.bf16.msra.mxu0 0
    %1484 = vmatprep.subr.bf16.mxu0 0
    %1485 = vmatpush1.bf16.msra.mxu0 0
    %1486 = vmatprep.subr.bf16.mxu0 %v437
    %1487 = vmatpush1.bf16.msra.mxu0 %v436
    %1488 = vmatprep.subr.bf16.mxu0 %v433
    %1489 = vmatpush1.bf16.msra.mxu0 %v432
    %1490 = vmatprep.subr.bf16.mxu0 %v429
    %1491 = vmatpush1.bf16.msra.mxu0 %v428
    %1492 = vmatprep.subr.bf16.mxu0 %v425
    %1493 = vmatpush1.bf16.msra.mxu0 %v424
    %1494 = vmatprep.subr.bf16.mxu0 0
    %1495 = vmatpush2.bf16.msra.mxu0 0
    %1496 = vmatprep.subr.bf16.mxu0 0
    %1497 = vmatpush2.bf16.msra.mxu0 0
    %1498 = vmatprep.subr.bf16.mxu0 0
    %1499 = vmatpush2.bf16.msra.mxu0 0
    %1500 = vmatprep.subr.bf16.mxu0 0
    %1501 = vmatpush2.bf16.msra.mxu0 0
    %1502 = vmatprep.subr.bf16.mxu0 0
    %1503 = vmatpush2.bf16.msra.mxu0 0
    %1504 = vmatprep.subr.bf16.mxu0 0
    %1505 = vmatpush2.bf16.msra.mxu0 0
    %1506 = vmatprep.subr.bf16.mxu0 0
    %1507 = vmatpush2.bf16.msra.mxu0 0
    %1508 = vmatprep.subr.bf16.mxu0 0
    %1509 = vmatpush2.bf16.msra.mxu0 0
    %1510 = vmatprep.mubr.bf16.mxu0 0
    %1511 = vmatmul.mubr.bf16.gmra.mxu0 %v1276
    %v1512 = vpop.f32.mrf.mxu0
    %v1513 = vadd.f32 0.0, %v1512
    %v1514 = vpop.f32.mrf.mxu0
    %v1515 = vadd.f32 0.0, %v1514
    %v1516 = vpop.f32.mrf.mxu0
    %v1517 = vpop.f32.mrf.mxu0
    %1518 = vdwg.mxu0
    %1519 = vmatprep.subr.bf16.mxu0 0
    %1520 = vmatpush1.bf16.msra.mxu0 0
    %1521 = vmatprep.subr.bf16.mxu0 0
    %1522 = vmatpush1.bf16.msra.mxu0 0
    %1523 = vmatprep.subr.bf16.mxu0 0
    %1524 = vmatpush1.bf16.msra.mxu0 0
    %1525 = vmatprep.subr.bf16.mxu0 0
    %1526 = vmatpush1.bf16.msra.mxu0 0
    %1527 = vmatprep.subr.bf16.mxu0 %v439
    %1528 = vmatpush1.bf16.msra.mxu0 %v438
    %1529 = vmatprep.subr.bf16.mxu0 %v435
    %1530 = vmatpush1.bf16.msra.mxu0 %v434
    %1531 = vmatprep.subr.bf16.mxu0 %v431
    %1532 = vmatpush1.bf16.msra.mxu0 %v430
    %1533 = vmatprep.subr.bf16.mxu0 %v427
    %1534 = vmatpush1.bf16.msra.mxu0 %v426
    %1535 = vmatprep.subr.bf16.mxu0 0
    %1536 = vmatpush2.bf16.msra.mxu0 0
    %1537 = vmatprep.subr.bf16.mxu0 0
    %1538 = vmatpush2.bf16.msra.mxu0 0
    %1539 = vmatprep.subr.bf16.mxu0 0
    %1540 = vmatpush2.bf16.msra.mxu0 0
    %1541 = vmatprep.subr.bf16.mxu0 0
    %1542 = vmatpush2.bf16.msra.mxu0 0
    %1543 = vmatprep.subr.bf16.mxu0 0
    %1544 = vmatpush2.bf16.msra.mxu0 0
    %1545 = vmatprep.subr.bf16.mxu0 0
    %1546 = vmatpush2.bf16.msra.mxu0 0
    %1547 = vmatprep.subr.bf16.mxu0 0
    %1548 = vmatpush2.bf16.msra.mxu0 0
    %1549 = vmatprep.subr.bf16.mxu0 0
    %1550 = vmatpush2.bf16.msra.mxu0 0
    %1551 = vmatprep.mubr.bf16.mxu0 0
    %1552 = vmatmul.mubr.bf16.gmra.mxu0 %v1276
    %v1553 = vpop.f32.mrf.mxu0
    %v1554 = vadd.f32 0.0, %v1553
    %v1555 = vpop.f32.mrf.mxu0
    %v1556 = vadd.f32 0.0, %v1555
    %v1557 = vpop.f32.mrf.mxu0
    %v1558 = vpop.f32.mrf.mxu0
    %1559 = vdwg.mxu0
    %v1560 = vadd.f32 %v1474, %v1513
    %v1561 = vadd.f32 %v1475, %v1515
    %v1562 = vadd.f32 %v1476, %v1554
    %v1563 = vadd.f32 %v1477, %v1556
    %v1564 = vxor.u32 %v1560, 2147483648
    %v1565 = vxor.u32 %v1561, 2147483648
    %v1566 = vxor.u32 %v1562, 2147483648
    %v1567 = vmul.f32 %v1564, 1.442695
    %v1568 = vpow.pop %v1567
    %v1569 = vmul.f32 %v1565, 1.442695
    %v1570 = vpow.pop %v1569
    %v1571 = vmul.f32 %v1566, 1.442695
    %v1572 = vpow.pop %v1571
    %v1573 = vadd.f32 %v1568, 1.0
    %v1574 = vadd.f32 %v1570, 1.0
    %v1575 = vadd.f32 %v1572, 1.0
    %v1576 = vrcp.pop %v1573
    %v1577 = vmul.f32 1.0, %v1576
    %v1578 = vrcp.pop %v1574
    %v1579 = vmul.f32 1.0, %v1578
    %v1580 = vrcp.pop %v1575
    %v1581 = vmul.f32 1.0, %v1580
    %v1582 = vtanh.pop %v1563
    %v1583 = vmul.f32 %v1579, %v1271
    %v1584 = vmul.f32 %v1577, %v1582
    %v1585 = vadd.f32 %v1583, %v1584
    %v1586 = vtanh.pop %v1585
    %v1587 = vmul.f32 %v1581, %v1586
    %v1588 = vpack.c.bf16 %v1587, %v1587
    %v1590 = vsel %vm261, %v1588, 0
    %1592 = vmatprep.subr.bf16.mxu0 0
    %1593 = vmatpush1.bf16.msra.mxu0 0
    %1594 = vmatprep.subr.bf16.mxu0 0
    %1595 = vmatpush1.bf16.msra.mxu0 0
    %1596 = vmatprep.subr.bf16.mxu0 0
    %1597 = vmatpush1.bf16.msra.mxu0 0
    %1598 = vmatprep.subr.bf16.mxu0 0
    %1599 = vmatpush1.bf16.msra.mxu0 0
    %1600 = vmatprep.subr.bf16.mxu0 %v242
    %1601 = vmatpush1.bf16.msra.mxu0 %v241
    %1602 = vmatprep.subr.bf16.mxu0 %v238
    %1603 = vmatpush1.bf16.msra.mxu0 %v237
    %1604 = vmatprep.subr.bf16.mxu0 %v234
    %1605 = vmatpush1.bf16.msra.mxu0 %v233
    %1606 = vmatprep.subr.bf16.mxu0 %v230
    %1607 = vmatpush1.bf16.msra.mxu0 %v229
    %1608 = vmatprep.subr.bf16.mxu0 0
    %1609 = vmatpush2.bf16.msra.mxu0 0
    %1610 = vmatprep.subr.bf16.mxu0 0
    %1611 = vmatpush2.bf16.msra.mxu0 0
    %1612 = vmatprep.subr.bf16.mxu0 0
    %1613 = vmatpush2.bf16.msra.mxu0 0
    %1614 = vmatprep.subr.bf16.mxu0 0
    %1615 = vmatpush2.bf16.msra.mxu0 0
    %1616 = vmatprep.subr.bf16.mxu0 0
    %1617 = vmatpush2.bf16.msra.mxu0 0
    %1618 = vmatprep.subr.bf16.mxu0 0
    %1619 = vmatpush2.bf16.msra.mxu0 0
    %1620 = vmatprep.subr.bf16.mxu0 0
    %1621 = vmatpush2.bf16.msra.mxu0 0
    %1622 = vmatprep.subr.bf16.mxu0 0
    %1623 = vmatpush2.bf16.msra.mxu0 0
    %1624 = vmatprep.mubr.bf16.mxu0 0
    %1625 = vmatmul.mubr.bf16.gmra.mxu0 %v1590
    %v1626 = vpop.f32.mrf.mxu0
    %v1627 = vadd.f32 %v97, %v1626
    %v1628 = vpop.f32.mrf.mxu0
    %v1629 = vadd.f32 %v101, %v1628
    %v1630 = vpop.f32.mrf.mxu0
    %v1631 = vpop.f32.mrf.mxu0
    %1632 = vdwg.mxu0
    %1633 = vmatprep.subr.bf16.mxu0 0
    %1634 = vmatpush1.bf16.msra.mxu0 0
    %1635 = vmatprep.subr.bf16.mxu0 0
    %1636 = vmatpush1.bf16.msra.mxu0 0
    %1637 = vmatprep.subr.bf16.mxu0 0
    %1638 = vmatpush1.bf16.msra.mxu0 0
    %1639 = vmatprep.subr.bf16.mxu0 0
    %1640 = vmatpush1.bf16.msra.mxu0 0
    %1641 = vmatprep.subr.bf16.mxu0 %v244
    %1642 = vmatpush1.bf16.msra.mxu0 %v243
    %1643 = vmatprep.subr.bf16.mxu0 %v240
    %1644 = vmatpush1.bf16.msra.mxu0 %v239
    %1645 = vmatprep.subr.bf16.mxu0 %v236
    %1646 = vmatpush1.bf16.msra.mxu0 %v235
    %1647 = vmatprep.subr.bf16.mxu0 %v232
    %1648 = vmatpush1.bf16.msra.mxu0 %v231
    %1649 = vmatprep.subr.bf16.mxu0 0
    %1650 = vmatpush2.bf16.msra.mxu0 0
    %1651 = vmatprep.subr.bf16.mxu0 0
    %1652 = vmatpush2.bf16.msra.mxu0 0
    %1653 = vmatprep.subr.bf16.mxu0 0
    %1654 = vmatpush2.bf16.msra.mxu0 0
    %1655 = vmatprep.subr.bf16.mxu0 0
    %1656 = vmatpush2.bf16.msra.mxu0 0
    %1657 = vmatprep.subr.bf16.mxu0 0
    %1658 = vmatpush2.bf16.msra.mxu0 0
    %1659 = vmatprep.subr.bf16.mxu0 0
    %1660 = vmatpush2.bf16.msra.mxu0 0
    %1661 = vmatprep.subr.bf16.mxu0 0
    %1662 = vmatpush2.bf16.msra.mxu0 0
    %1663 = vmatprep.subr.bf16.mxu0 0
    %1664 = vmatpush2.bf16.msra.mxu0 0
    %1665 = vmatprep.mubr.bf16.mxu0 0
    %1666 = vmatmul.mubr.bf16.gmra.mxu0 %v1590
    %v1667 = vpop.f32.mrf.mxu0
    %v1668 = vadd.f32 %v105, %v1667
    %v1669 = vpop.f32.mrf.mxu0
    %v1670 = vadd.f32 %v109, %v1669
    %v1671 = vpop.f32.mrf.mxu0
    %v1672 = vpop.f32.mrf.mxu0
    %1673 = vdwg.mxu0
    %v1675 = vsel %vm261, %v1473, 0
    %1677 = vmatprep.subr.bf16.mxu0 0
    %1678 = vmatpush1.bf16.msra.mxu0 0
    %1679 = vmatprep.subr.bf16.mxu0 0
    %1680 = vmatpush1.bf16.msra.mxu0 0
    %1681 = vmatprep.subr.bf16.mxu0 0
    %1682 = vmatpush1.bf16.msra.mxu0 0
    %1683 = vmatprep.subr.bf16.mxu0 0
    %1684 = vmatpush1.bf16.msra.mxu0 0
    %1685 = vmatprep.subr.bf16.mxu0 %v713
    %1686 = vmatpush1.bf16.msra.mxu0 %v712
    %1687 = vmatprep.subr.bf16.mxu0 %v709
    %1688 = vmatpush1.bf16.msra.mxu0 %v708
    %1689 = vmatprep.subr.bf16.mxu0 %v705
    %1690 = vmatpush1.bf16.msra.mxu0 %v704
    %1691 = vmatprep.subr.bf16.mxu0 %v701
    %1692 = vmatpush1.bf16.msra.mxu0 %v700
    %1693 = vmatprep.subr.bf16.mxu0 0
    %1694 = vmatpush2.bf16.msra.mxu0 0
    %1695 = vmatprep.subr.bf16.mxu0 0
    %1696 = vmatpush2.bf16.msra.mxu0 0
    %1697 = vmatprep.subr.bf16.mxu0 0
    %1698 = vmatpush2.bf16.msra.mxu0 0
    %1699 = vmatprep.subr.bf16.mxu0 0
    %1700 = vmatpush2.bf16.msra.mxu0 0
    %1701 = vmatprep.subr.bf16.mxu0 0
    %1702 = vmatpush2.bf16.msra.mxu0 0
    %1703 = vmatprep.subr.bf16.mxu0 0
    %1704 = vmatpush2.bf16.msra.mxu0 0
    %1705 = vmatprep.subr.bf16.mxu0 0
    %1706 = vmatpush2.bf16.msra.mxu0 0
    %1707 = vmatprep.subr.bf16.mxu0 0
    %1708 = vmatpush2.bf16.msra.mxu0 0
    %1709 = vmatprep.mubr.bf16.mxu0 0
    %1710 = vmatmul.mubr.bf16.gmra.mxu0 %v1675
    %v1711 = vpop.f32.mrf.mxu0
    %v1712 = vadd.f32 0.0, %v1711
    %v1713 = vpop.f32.mrf.mxu0
    %v1714 = vadd.f32 0.0, %v1713
    %v1715 = vpop.f32.mrf.mxu0
    %v1716 = vpop.f32.mrf.mxu0
    %1717 = vdwg.mxu0
    %1718 = vmatprep.subr.bf16.mxu0 0
    %1719 = vmatpush1.bf16.msra.mxu0 0
    %1720 = vmatprep.subr.bf16.mxu0 0
    %1721 = vmatpush1.bf16.msra.mxu0 0
    %1722 = vmatprep.subr.bf16.mxu0 0
    %1723 = vmatpush1.bf16.msra.mxu0 0
    %1724 = vmatprep.subr.bf16.mxu0 0
    %1725 = vmatpush1.bf16.msra.mxu0 0
    %1726 = vmatprep.subr.bf16.mxu0 %v715
    %1727 = vmatpush1.bf16.msra.mxu0 %v714
    %1728 = vmatprep.subr.bf16.mxu0 %v711
    %1729 = vmatpush1.bf16.msra.mxu0 %v710
    %1730 = vmatprep.subr.bf16.mxu0 %v707
    %1731 = vmatpush1.bf16.msra.mxu0 %v706
    %1732 = vmatprep.subr.bf16.mxu0 %v703
    %1733 = vmatpush1.bf16.msra.mxu0 %v702
    %1734 = vmatprep.subr.bf16.mxu0 0
    %1735 = vmatpush2.bf16.msra.mxu0 0
    %1736 = vmatprep.subr.bf16.mxu0 0
    %1737 = vmatpush2.bf16.msra.mxu0 0
    %1738 = vmatprep.subr.bf16.mxu0 0
    %1739 = vmatpush2.bf16.msra.mxu0 0
    %1740 = vmatprep.subr.bf16.mxu0 0
    %1741 = vmatpush2.bf16.msra.mxu0 0
    %1742 = vmatprep.subr.bf16.mxu0 0
    %1743 = vmatpush2.bf16.msra.mxu0 0
    %1744 = vmatprep.subr.bf16.mxu0 0
    %1745 = vmatpush2.bf16.msra.mxu0 0
    %1746 = vmatprep.subr.bf16.mxu0 0
    %1747 = vmatpush2.bf16.msra.mxu0 0
    %1748 = vmatprep.subr.bf16.mxu0 0
    %1749 = vmatpush2.bf16.msra.mxu0 0
    %1750 = vmatprep.mubr.bf16.mxu0 0
    %1751 = vmatmul.mubr.bf16.gmra.mxu0 %v1675
    %v1752 = vpop.f32.mrf.mxu0
    %v1753 = vadd.f32 0.0, %v1752
    %v1754 = vpop.f32.mrf.mxu0
    %v1755 = vadd.f32 0.0, %v1754
    %v1756 = vpop.f32.mrf.mxu0
    %v1757 = vpop.f32.mrf.mxu0
    %1758 = vdwg.mxu0
    %v1759 = vadd.f32 %v1627, %v1712
    %v1760 = vadd.f32 %v1629, %v1714
    %v1761 = vadd.f32 %v1668, %v1753
    %v1762 = vadd.f32 %v1670, %v1755
    %v1763 = vxor.u32 %v1759, 2147483648
    %v1764 = vxor.u32 %v1760, 2147483648
    %v1765 = vxor.u32 %v1761, 2147483648
    %v1766 = vmul.f32 %v1763, 1.442695
    %v1767 = vpow.pop %v1766
    %v1768 = vmul.f32 %v1764, 1.442695
    %v1769 = vpow.pop %v1768
    %v1770 = vmul.f32 %v1765, 1.442695
    %v1771 = vpow.pop %v1770
    %v1772 = vadd.f32 %v1767, 1.0
    %v1773 = vadd.f32 %v1769, 1.0
    %v1774 = vadd.f32 %v1771, 1.0
    %v1775 = vrcp.pop %v1772
    %v1776 = vmul.f32 1.0, %v1775
    %v1777 = vrcp.pop %v1773
    %v1778 = vmul.f32 1.0, %v1777
    %v1779 = vrcp.pop %v1774
    %v1780 = vmul.f32 1.0, %v1779
    %v1781 = vtanh.pop %v1762
    %v1782 = vmul.f32 %v1778, %v1470
    %v1783 = vmul.f32 %v1776, %v1781
    %v1784 = vadd.f32 %v1782, %v1783
    %v1785 = vtanh.pop %v1784
    %v1786 = vmul.f32 %v1780, %v1785
    %v1787 = vpack.c.bf16 %v1786, %v1786
    %v1788 = vld [vmem:[#allocation6 + $0xa0] sm:$0xff]
    %v1789 = vld [vmem:[#allocation6 + $0xa8] sm:$0xff]
    %v1790 = vld [vmem:[#allocation6 + $0xb0] sm:$0xff]
    %v1791 = vld [vmem:[#allocation6 + $0xb8] sm:$0xff]
    %1792 = vmatprep.subr.bf16.mxu0 0
    %1793 = vmatpush1.bf16.msra.mxu0 0
    %1794 = vmatprep.subr.bf16.mxu0 0
    %1795 = vmatpush1.bf16.msra.mxu0 0
    %1796 = vmatprep.subr.bf16.mxu0 0
    %1797 = vmatpush1.bf16.msra.mxu0 0
    %1798 = vmatprep.subr.bf16.mxu0 0
    %1799 = vmatpush1.bf16.msra.mxu0 0
    %1800 = vmatprep.subr.bf16.mxu0 %v437
    %1801 = vmatpush1.bf16.msra.mxu0 %v436
    %1802 = vmatprep.subr.bf16.mxu0 %v433
    %1803 = vmatpush1.bf16.msra.mxu0 %v432
    %1804 = vmatprep.subr.bf16.mxu0 %v429
    %1805 = vmatpush1.bf16.msra.mxu0 %v428
    %1806 = vmatprep.subr.bf16.mxu0 %v425
    %1807 = vmatpush1.bf16.msra.mxu0 %v424
    %1808 = vmatprep.subr.bf16.mxu0 0
    %1809 = vmatpush2.bf16.msra.mxu0 0
    %1810 = vmatprep.subr.bf16.mxu0 0
    %1811 = vmatpush2.bf16.msra.mxu0 0
    %1812 = vmatprep.subr.bf16.mxu0 0
    %1813 = vmatpush2.bf16.msra.mxu0 0
    %1814 = vmatprep.subr.bf16.mxu0 0
    %1815 = vmatpush2.bf16.msra.mxu0 0
    %1816 = vmatprep.subr.bf16.mxu0 0
    %1817 = vmatpush2.bf16.msra.mxu0 0
    %1818 = vmatprep.subr.bf16.mxu0 0
    %1819 = vmatpush2.bf16.msra.mxu0 0
    %1820 = vmatprep.subr.bf16.mxu0 0
    %1821 = vmatpush2.bf16.msra.mxu0 0
    %1822 = vmatprep.subr.bf16.mxu0 0
    %1823 = vmatpush2.bf16.msra.mxu0 0
    %1824 = vmatprep.mubr.bf16.mxu0 0
    %1825 = vmatmul.mubr.bf16.gmra.mxu0 %v1590
    %v1826 = vpop.f32.mrf.mxu0
    %v1827 = vadd.f32 0.0, %v1826
    %v1828 = vpop.f32.mrf.mxu0
    %v1829 = vadd.f32 0.0, %v1828
    %v1830 = vpop.f32.mrf.mxu0
    %v1831 = vpop.f32.mrf.mxu0
    %1832 = vdwg.mxu0
    %1833 = vmatprep.subr.bf16.mxu0 0
    %1834 = vmatpush1.bf16.msra.mxu0 0
    %1835 = vmatprep.subr.bf16.mxu0 0
    %1836 = vmatpush1.bf16.msra.mxu0 0
    %1837 = vmatprep.subr.bf16.mxu0 0
    %1838 = vmatpush1.bf16.msra.mxu0 0
    %1839 = vmatprep.subr.bf16.mxu0 0
    %1840 = vmatpush1.bf16.msra.mxu0 0
    %1841 = vmatprep.subr.bf16.mxu0 %v439
    %1842 = vmatpush1.bf16.msra.mxu0 %v438
    %1843 = vmatprep.subr.bf16.mxu0 %v435
    %1844 = vmatpush1.bf16.msra.mxu0 %v434
    %1845 = vmatprep.subr.bf16.mxu0 %v431
    %1846 = vmatpush1.bf16.msra.mxu0 %v430
    %1847 = vmatprep.subr.bf16.mxu0 %v427
    %1848 = vmatpush1.bf16.msra.mxu0 %v426
    %1849 = vmatprep.subr.bf16.mxu0 0
    %1850 = vmatpush2.bf16.msra.mxu0 0
    %1851 = vmatprep.subr.bf16.mxu0 0
    %1852 = vmatpush2.bf16.msra.mxu0 0
    %1853 = vmatprep.subr.bf16.mxu0 0
    %1854 = vmatpush2.bf16.msra.mxu0 0
    %1855 = vmatprep.subr.bf16.mxu0 0
    %1856 = vmatpush2.bf16.msra.mxu0 0
    %1857 = vmatprep.subr.bf16.mxu0 0
    %1858 = vmatpush2.bf16.msra.mxu0 0
    %1859 = vmatprep.subr.bf16.mxu0 0
    %1860 = vmatpush2.bf16.msra.mxu0 0
    %1861 = vmatprep.subr.bf16.mxu0 0
    %1862 = vmatpush2.bf16.msra.mxu0 0
    %1863 = vmatprep.subr.bf16.mxu0 0
    %1864 = vmatpush2.bf16.msra.mxu0 0
    %1865 = vmatprep.mubr.bf16.mxu0 0
    %1866 = vmatmul.mubr.bf16.gmra.mxu0 %v1590
    %v1867 = vpop.f32.mrf.mxu0
    %v1868 = vadd.f32 0.0, %v1867
    %v1869 = vpop.f32.mrf.mxu0
    %v1870 = vadd.f32 0.0, %v1869
    %v1871 = vpop.f32.mrf.mxu0
    %v1872 = vpop.f32.mrf.mxu0
    %1873 = vdwg.mxu0
    %v1874 = vadd.f32 %v1788, %v1827
    %v1875 = vadd.f32 %v1789, %v1829
    %v1876 = vadd.f32 %v1790, %v1868
    %v1877 = vadd.f32 %v1791, %v1870
    %v1878 = vxor.u32 %v1874, 2147483648
    %v1879 = vxor.u32 %v1875, 2147483648
    %v1880 = vxor.u32 %v1876, 2147483648
    %v1881 = vmul.f32 %v1878, 1.442695
    %v1882 = vpow.pop %v1881
    %v1883 = vmul.f32 %v1879, 1.442695
    %v1884 = vpow.pop %v1883
    %v1885 = vmul.f32 %v1880, 1.442695
    %v1886 = vpow.pop %v1885
    %v1887 = vadd.f32 %v1882, 1.0
    %v1888 = vadd.f32 %v1884, 1.0
    %v1889 = vadd.f32 %v1886, 1.0
    %v1890 = vrcp.pop %v1887
    %v1891 = vmul.f32 1.0, %v1890
    %v1892 = vrcp.pop %v1888
    %v1893 = vmul.f32 1.0, %v1892
    %v1894 = vrcp.pop %v1889
    %v1895 = vmul.f32 1.0, %v1894
    %v1896 = vtanh.pop %v1877
    %v1897 = vmul.f32 %v1893, %v1585
    %v1898 = vmul.f32 %v1891, %v1896
    %v1899 = vadd.f32 %v1897, %v1898
    %v1900 = vtanh.pop %v1899
    %v1901 = vmul.f32 %v1895, %v1900
    %v1902 = vpack.c.bf16 %v1901, %v1901
    %v1904 = vsel %vm261, %v1902, 0
    %1906 = vmatprep.subr.bf16.mxu0 0
    %1907 = vmatpush1.bf16.msra.mxu0 0
    %1908 = vmatprep.subr.bf16.mxu0 0
    %1909 = vmatpush1.bf16.msra.mxu0 0
    %1910 = vmatprep.subr.bf16.mxu0 0
    %1911 = vmatpush1.bf16.msra.mxu0 0
    %1912 = vmatprep.subr.bf16.mxu0 0
    %1913 = vmatpush1.bf16.msra.mxu0 0
    %1914 = vmatprep.subr.bf16.mxu0 %v242
    %1915 = vmatpush1.bf16.msra.mxu0 %v241
    %1916 = vmatprep.subr.bf16.mxu0 %v238
    %1917 = vmatpush1.bf16.msra.mxu0 %v237
    %1918 = vmatprep.subr.bf16.mxu0 %v234
    %1919 = vmatpush1.bf16.msra.mxu0 %v233
    %1920 = vmatprep.subr.bf16.mxu0 %v230
    %1921 = vmatpush1.bf16.msra.mxu0 %v229
    %1922 = vmatprep.subr.bf16.mxu0 0
    %1923 = vmatpush2.bf16.msra.mxu0 0
    %1924 = vmatprep.subr.bf16.mxu0 0
    %1925 = vmatpush2.bf16.msra.mxu0 0
    %1926 = vmatprep.subr.bf16.mxu0 0
    %1927 = vmatpush2.bf16.msra.mxu0 0
    %1928 = vmatprep.subr.bf16.mxu0 0
    %1929 = vmatpush2.bf16.msra.mxu0 0
    %1930 = vmatprep.subr.bf16.mxu0 0
    %1931 = vmatpush2.bf16.msra.mxu0 0
    %1932 = vmatprep.subr.bf16.mxu0 0
    %1933 = vmatpush2.bf16.msra.mxu0 0
    %1934 = vmatprep.subr.bf16.mxu0 0
    %1935 = vmatpush2.bf16.msra.mxu0 0
    %1936 = vmatprep.subr.bf16.mxu0 0
    %1937 = vmatpush2.bf16.msra.mxu0 0
    %1938 = vmatprep.mubr.bf16.mxu0 0
    %1939 = vmatmul.mubr.bf16.gmra.mxu0 %v1904
    %v1940 = vpop.f32.mrf.mxu0
    %v1941 = vadd.f32 %v97, %v1940
    %v1942 = vpop.f32.mrf.mxu0
    %v1943 = vadd.f32 %v101, %v1942
    %v1944 = vpop.f32.mrf.mxu0
    %v1945 = vpop.f32.mrf.mxu0
    %1946 = vdwg.mxu0
    %1947 = vmatprep.subr.bf16.mxu0 0
    %1948 = vmatpush1.bf16.msra.mxu0 0
    %1949 = vmatprep.subr.bf16.mxu0 0
    %1950 = vmatpush1.bf16.msra.mxu0 0
    %1951 = vmatprep.subr.bf16.mxu0 0
    %1952 = vmatpush1.bf16.msra.mxu0 0
    %1953 = vmatprep.subr.bf16.mxu0 0
    %1954 = vmatpush1.bf16.msra.mxu0 0
    %1955 = vmatprep.subr.bf16.mxu0 %v244
    %1956 = vmatpush1.bf16.msra.mxu0 %v243
    %1957 = vmatprep.subr.bf16.mxu0 %v240
    %1958 = vmatpush1.bf16.msra.mxu0 %v239
    %1959 = vmatprep.subr.bf16.mxu0 %v236
    %1960 = vmatpush1.bf16.msra.mxu0 %v235
    %1961 = vmatprep.subr.bf16.mxu0 %v232
    %1962 = vmatpush1.bf16.msra.mxu0 %v231
    %1963 = vmatprep.subr.bf16.mxu0 0
    %1964 = vmatpush2.bf16.msra.mxu0 0
    %1965 = vmatprep.subr.bf16.mxu0 0
    %1966 = vmatpush2.bf16.msra.mxu0 0
    %1967 = vmatprep.subr.bf16.mxu0 0
    %1968 = vmatpush2.bf16.msra.mxu0 0
    %1969 = vmatprep.subr.bf16.mxu0 0
    %1970 = vmatpush2.bf16.msra.mxu0 0
    %1971 = vmatprep.subr.bf16.mxu0 0
    %1972 = vmatpush2.bf16.msra.mxu0 0
    %1973 = vmatprep.subr.bf16.mxu0 0
    %1974 = vmatpush2.bf16.msra.mxu0 0
    %1975 = vmatprep.subr.bf16.mxu0 0
    %1976 = vmatpush2.bf16.msra.mxu0 0
    %1977 = vmatprep.subr.bf16.mxu0 0
    %1978 = vmatpush2.bf16.msra.mxu0 0
    %1979 = vmatprep.mubr.bf16.mxu0 0
    %1980 = vmatmul.mubr.bf16.gmra.mxu0 %v1904
    %v1981 = vpop.f32.mrf.mxu0
    %v1982 = vadd.f32 %v105, %v1981
    %v1983 = vpop.f32.mrf.mxu0
    %v1984 = vadd.f32 %v109, %v1983
    %v1985 = vpop.f32.mrf.mxu0
    %v1986 = vpop.f32.mrf.mxu0
    %1987 = vdwg.mxu0
    %v1989 = vsel %vm261, %v1787, 0
    %1991 = vmatprep.subr.bf16.mxu0 0
    %1992 = vmatpush1.bf16.msra.mxu0 0
    %1993 = vmatprep.subr.bf16.mxu0 0
    %1994 = vmatpush1.bf16.msra.mxu0 0
    %1995 = vmatprep.subr.bf16.mxu0 0
    %1996 = vmatpush1.bf16.msra.mxu0 0
    %1997 = vmatprep.subr.bf16.mxu0 0
    %1998 = vmatpush1.bf16.msra.mxu0 0
    %1999 = vmatprep.subr.bf16.mxu0 %v713
    %2000 = vmatpush1.bf16.msra.mxu0 %v712
    %2001 = vmatprep.subr.bf16.mxu0 %v709
    %2002 = vmatpush1.bf16.msra.mxu0 %v708
    %2003 = vmatprep.subr.bf16.mxu0 %v705
    %2004 = vmatpush1.bf16.msra.mxu0 %v704
    %2005 = vmatprep.subr.bf16.mxu0 %v701
    %2006 = vmatpush1.bf16.msra.mxu0 %v700
    %2007 = vmatprep.subr.bf16.mxu0 0
    %2008 = vmatpush2.bf16.msra.mxu0 0
    %2009 = vmatprep.subr.bf16.mxu0 0
    %2010 = vmatpush2.bf16.msra.mxu0 0
    %2011 = vmatprep.subr.bf16.mxu0 0
    %2012 = vmatpush2.bf16.msra.mxu0 0
    %2013 = vmatprep.subr.bf16.mxu0 0
    %2014 = vmatpush2.bf16.msra.mxu0 0
    %2015 = vmatprep.subr.bf16.mxu0 0
    %2016 = vmatpush2.bf16.msra.mxu0 0
    %2017 = vmatprep.subr.bf16.mxu0 0
    %2018 = vmatpush2.bf16.msra.mxu0 0
    %2019 = vmatprep.subr.bf16.mxu0 0
    %2020 = vmatpush2.bf16.msra.mxu0 0
    %2021 = vmatprep.subr.bf16.mxu0 0
    %2022 = vmatpush2.bf16.msra.mxu0 0
    %2023 = vmatprep.mubr.bf16.mxu0 0
    %2024 = vmatmul.mubr.bf16.gmra.mxu0 %v1989
    %v2025 = vpop.f32.mrf.mxu0
    %v2026 = vadd.f32 0.0, %v2025
    %v2027 = vpop.f32.mrf.mxu0
    %v2028 = vadd.f32 0.0, %v2027
    %v2029 = vpop.f32.mrf.mxu0
    %v2030 = vpop.f32.mrf.mxu0
    %2031 = vdwg.mxu0
    %2032 = vmatprep.subr.bf16.mxu0 0
    %2033 = vmatpush1.bf16.msra.mxu0 0
    %2034 = vmatprep.subr.bf16.mxu0 0
    %2035 = vmatpush1.bf16.msra.mxu0 0
    %2036 = vmatprep.subr.bf16.mxu0 0
    %2037 = vmatpush1.bf16.msra.mxu0 0
    %2038 = vmatprep.subr.bf16.mxu0 0
    %2039 = vmatpush1.bf16.msra.mxu0 0
    %2040 = vmatprep.subr.bf16.mxu0 %v715
    %2041 = vmatpush1.bf16.msra.mxu0 %v714
    %2042 = vmatprep.subr.bf16.mxu0 %v711
    %2043 = vmatpush1.bf16.msra.mxu0 %v710
    %2044 = vmatprep.subr.bf16.mxu0 %v707
    %2045 = vmatpush1.bf16.msra.mxu0 %v706
    %2046 = vmatprep.subr.bf16.mxu0 %v703
    %2047 = vmatpush1.bf16.msra.mxu0 %v702
    %2048 = vmatprep.subr.bf16.mxu0 0
    %2049 = vmatpush2.bf16.msra.mxu0 0
    %2050 = vmatprep.subr.bf16.mxu0 0
    %2051 = vmatpush2.bf16.msra.mxu0 0
    %2052 = vmatprep.subr.bf16.mxu0 0
    %2053 = vmatpush2.bf16.msra.mxu0 0
    %2054 = vmatprep.subr.bf16.mxu0 0
    %2055 = vmatpush2.bf16.msra.mxu0 0
    %2056 = vmatprep.subr.bf16.mxu0 0
    %2057 = vmatpush2.bf16.msra.mxu0 0
    %2058 = vmatprep.subr.bf16.mxu0 0
    %2059 = vmatpush2.bf16.msra.mxu0 0
    %2060 = vmatprep.subr.bf16.mxu0 0
    %2061 = vmatpush2.bf16.msra.mxu0 0
    %2062 = vmatprep.subr.bf16.mxu0 0
    %2063 = vmatpush2.bf16.msra.mxu0 0
    %2064 = vmatprep.mubr.bf16.mxu0 0
    %2065 = vmatmul.mubr.bf16.gmra.mxu0 %v1989
    %v2066 = vpop.f32.mrf.mxu0
    %v2067 = vadd.f32 0.0, %v2066
    %v2068 = vpop.f32.mrf.mxu0
    %v2069 = vadd.f32 0.0, %v2068
    %v2070 = vpop.f32.mrf.mxu0
    %v2071 = vpop.f32.mrf.mxu0
    %2072 = vdwg.mxu0
    %v2073 = vadd.f32 %v1941, %v2026
    %v2074 = vadd.f32 %v1943, %v2028
    %v2075 = vadd.f32 %v1982, %v2067
    %v2076 = vadd.f32 %v1984, %v2069
    %v2077 = vxor.u32 %v2073, 2147483648
    %v2078 = vxor.u32 %v2074, 2147483648
    %v2079 = vxor.u32 %v2075, 2147483648
    %v2080 = vmul.f32 %v2077, 1.442695
    %v2081 = vpow.pop %v2080
    %v2082 = vmul.f32 %v2078, 1.442695
    %v2083 = vpow.pop %v2082
    %v2084 = vmul.f32 %v2079, 1.442695
    %v2085 = vpow.pop %v2084
    %v2086 = vadd.f32 %v2081, 1.0
    %v2087 = vadd.f32 %v2083, 1.0
    %v2088 = vadd.f32 %v2085, 1.0
    %v2089 = vrcp.pop %v2086
    %v2090 = vmul.f32 1.0, %v2089
    %v2091 = vrcp.pop %v2087
    %v2092 = vmul.f32 1.0, %v2091
    %v2093 = vrcp.pop %v2088
    %v2094 = vmul.f32 1.0, %v2093
    %v2095 = vtanh.pop %v2076
    %v2096 = vmul.f32 %v2092, %v1784
    %v2097 = vmul.f32 %v2090, %v2095
    %v2098 = vadd.f32 %v2096, %v2097
    %v2099 = vtanh.pop %v2098
    %v2100 = vmul.f32 %v2094, %v2099
    %v2101 = vpack.c.bf16 %v2100, %v2100
    %v2102 = vld [vmem:[#allocation6 + $0xc0] sm:$0xff]
    %v2103 = vld [vmem:[#allocation6 + $0xc8] sm:$0xff]
    %v2104 = vld [vmem:[#allocation6 + $0xd0] sm:$0xff]
    %v2105 = vld [vmem:[#allocation6 + $0xd8] sm:$0xff]
    %2106 = vmatprep.subr.bf16.mxu0 0
    %2107 = vmatpush1.bf16.msra.mxu0 0
    %2108 = vmatprep.subr.bf16.mxu0 0
    %2109 = vmatpush1.bf16.msra.mxu0 0
    %2110 = vmatprep.subr.bf16.mxu0 0
    %2111 = vmatpush1.bf16.msra.mxu0 0
    %2112 = vmatprep.subr.bf16.mxu0 0
    %2113 = vmatpush1.bf16.msra.mxu0 0
    %2114 = vmatprep.subr.bf16.mxu0 %v437
    %2115 = vmatpush1.bf16.msra.mxu0 %v436
    %2116 = vmatprep.subr.bf16.mxu0 %v433
    %2117 = vmatpush1.bf16.msra.mxu0 %v432
    %2118 = vmatprep.subr.bf16.mxu0 %v429
    %2119 = vmatpush1.bf16.msra.mxu0 %v428
    %2120 = vmatprep.subr.bf16.mxu0 %v425
    %2121 = vmatpush1.bf16.msra.mxu0 %v424
    %2122 = vmatprep.subr.bf16.mxu0 0
    %2123 = vmatpush2.bf16.msra.mxu0 0
    %2124 = vmatprep.subr.bf16.mxu0 0
    %2125 = vmatpush2.bf16.msra.mxu0 0
    %2126 = vmatprep.subr.bf16.mxu0 0
    %2127 = vmatpush2.bf16.msra.mxu0 0
    %2128 = vmatprep.subr.bf16.mxu0 0
    %2129 = vmatpush2.bf16.msra.mxu0 0
    %2130 = vmatprep.subr.bf16.mxu0 0
    %2131 = vmatpush2.bf16.msra.mxu0 0
    %2132 = vmatprep.subr.bf16.mxu0 0
    %2133 = vmatpush2.bf16.msra.mxu0 0
    %2134 = vmatprep.subr.bf16.mxu0 0
    %2135 = vmatpush2.bf16.msra.mxu0 0
    %2136 = vmatprep.subr.bf16.mxu0 0
    %2137 = vmatpush2.bf16.msra.mxu0 0
    %2138 = vmatprep.mubr.bf16.mxu0 0
    %2139 = vmatmul.mubr.bf16.gmra.mxu0 %v1904
    %v2140 = vpop.f32.mrf.mxu0
    %v2141 = vadd.f32 0.0, %v2140
    %v2142 = vpop.f32.mrf.mxu0
    %v2143 = vadd.f32 0.0, %v2142
    %v2144 = vpop.f32.mrf.mxu0
    %v2145 = vpop.f32.mrf.mxu0
    %2146 = vdwg.mxu0
    %2147 = vmatprep.subr.bf16.mxu0 0
    %2148 = vmatpush1.bf16.msra.mxu0 0
    %2149 = vmatprep.subr.bf16.mxu0 0
    %2150 = vmatpush1.bf16.msra.mxu0 0
    %2151 = vmatprep.subr.bf16.mxu0 0
    %2152 = vmatpush1.bf16.msra.mxu0 0
    %2153 = vmatprep.subr.bf16.mxu0 0
    %2154 = vmatpush1.bf16.msra.mxu0 0
    %2155 = vmatprep.subr.bf16.mxu0 %v439
    %2156 = vmatpush1.bf16.msra.mxu0 %v438
    %2157 = vmatprep.subr.bf16.mxu0 %v435
    %2158 = vmatpush1.bf16.msra.mxu0 %v434
    %2159 = vmatprep.subr.bf16.mxu0 %v431
    %2160 = vmatpush1.bf16.msra.mxu0 %v430
    %2161 = vmatprep.subr.bf16.mxu0 %v427
    %2162 = vmatpush1.bf16.msra.mxu0 %v426
    %2163 = vmatprep.subr.bf16.mxu0 0
    %2164 = vmatpush2.bf16.msra.mxu0 0
    %2165 = vmatprep.subr.bf16.mxu0 0
    %2166 = vmatpush2.bf16.msra.mxu0 0
    %2167 = vmatprep.subr.bf16.mxu0 0
    %2168 = vmatpush2.bf16.msra.mxu0 0
    %2169 = vmatprep.subr.bf16.mxu0 0
    %2170 = vmatpush2.bf16.msra.mxu0 0
    %2171 = vmatprep.subr.bf16.mxu0 0
    %2172 = vmatpush2.bf16.msra.mxu0 0
    %2173 = vmatprep.subr.bf16.mxu0 0
    %2174 = vmatpush2.bf16.msra.mxu0 0
    %2175 = vmatprep.subr.bf16.mxu0 0
    %2176 = vmatpush2.bf16.msra.mxu0 0
    %2177 = vmatprep.subr.bf16.mxu0 0
    %2178 = vmatpush2.bf16.msra.mxu0 0
    %2179 = vmatprep.mubr.bf16.mxu0 0
    %2180 = vmatmul.mubr.bf16.gmra.mxu0 %v1904
    %v2181 = vpop.f32.mrf.mxu0
    %v2182 = vadd.f32 0.0, %v2181
    %v2183 = vpop.f32.mrf.mxu0
    %v2184 = vadd.f32 0.0, %v2183
    %v2185 = vpop.f32.mrf.mxu0
    %v2186 = vpop.f32.mrf.mxu0
    %2187 = vdwg.mxu0
    %v2188 = vadd.f32 %v2102, %v2141
    %v2189 = vadd.f32 %v2103, %v2143
    %v2190 = vadd.f32 %v2104, %v2182
    %v2191 = vadd.f32 %v2105, %v2184
    %v2192 = vxor.u32 %v2188, 2147483648
    %v2193 = vxor.u32 %v2189, 2147483648
    %v2194 = vxor.u32 %v2190, 2147483648
    %v2195 = vmul.f32 %v2192, 1.442695
    %v2196 = vpow.pop %v2195
    %v2197 = vmul.f32 %v2193, 1.442695
    %v2198 = vpow.pop %v2197
    %v2199 = vmul.f32 %v2194, 1.442695
    %v2200 = vpow.pop %v2199
    %v2201 = vadd.f32 %v2196, 1.0
    %v2202 = vadd.f32 %v2198, 1.0
    %v2203 = vadd.f32 %v2200, 1.0
    %v2204 = vrcp.pop %v2201
    %v2205 = vmul.f32 1.0, %v2204
    %v2206 = vrcp.pop %v2202
    %v2207 = vmul.f32 1.0, %v2206
    %v2208 = vrcp.pop %v2203
    %v2209 = vmul.f32 1.0, %v2208
    %v2210 = vtanh.pop %v2191
    %v2211 = vmul.f32 %v2207, %v1899
    %v2212 = vmul.f32 %v2205, %v2210
    %v2213 = vadd.f32 %v2211, %v2212
    %v2214 = vtanh.pop %v2213
    %v2215 = vmul.f32 %v2209, %v2214
    %v2216 = vpack.c.bf16 %v2215, %v2215
    %v2218 = vsel %vm261, %v2216, 0
    %2220 = vmatprep.subr.bf16.mxu0 0
    %2221 = vmatpush1.bf16.msra.mxu0 0
    %2222 = vmatprep.subr.bf16.mxu0 0
    %2223 = vmatpush1.bf16.msra.mxu0 0
    %2224 = vmatprep.subr.bf16.mxu0 0
    %2225 = vmatpush1.bf16.msra.mxu0 0
    %2226 = vmatprep.subr.bf16.mxu0 0
    %2227 = vmatpush1.bf16.msra.mxu0 0
    %2228 = vmatprep.subr.bf16.mxu0 %v242
    %2229 = vmatpush1.bf16.msra.mxu0 %v241
    %2230 = vmatprep.subr.bf16.mxu0 %v238
    %2231 = vmatpush1.bf16.msra.mxu0 %v237
    %2232 = vmatprep.subr.bf16.mxu0 %v234
    %2233 = vmatpush1.bf16.msra.mxu0 %v233
    %2234 = vmatprep.subr.bf16.mxu0 %v230
    %2235 = vmatpush1.bf16.msra.mxu0 %v229
    %2236 = vmatprep.subr.bf16.mxu0 0
    %2237 = vmatpush2.bf16.msra.mxu0 0
    %2238 = vmatprep.subr.bf16.mxu0 0
    %2239 = vmatpush2.bf16.msra.mxu0 0
    %2240 = vmatprep.subr.bf16.mxu0 0
    %2241 = vmatpush2.bf16.msra.mxu0 0
    %2242 = vmatprep.subr.bf16.mxu0 0
    %2243 = vmatpush2.bf16.msra.mxu0 0
    %2244 = vmatprep.subr.bf16.mxu0 0
    %2245 = vmatpush2.bf16.msra.mxu0 0
    %2246 = vmatprep.subr.bf16.mxu0 0
    %2247 = vmatpush2.bf16.msra.mxu0 0
    %2248 = vmatprep.subr.bf16.mxu0 0
    %2249 = vmatpush2.bf16.msra.mxu0 0
    %2250 = vmatprep.subr.bf16.mxu0 0
    %2251 = vmatpush2.bf16.msra.mxu0 0
    %2252 = vmatprep.mubr.bf16.mxu0 0
    %2253 = vmatmul.mubr.bf16.gmra.mxu0 %v2218
    %v2254 = vpop.f32.mrf.mxu0
    %v2255 = vadd.f32 %v97, %v2254
    %v2256 = vpop.f32.mrf.mxu0
    %v2257 = vadd.f32 %v101, %v2256
    %v2258 = vpop.f32.mrf.mxu0
    %v2259 = vpop.f32.mrf.mxu0
    %2260 = vdwg.mxu0
    %2261 = vmatprep.subr.bf16.mxu0 0
    %2262 = vmatpush1.bf16.msra.mxu0 0
    %2263 = vmatprep.subr.bf16.mxu0 0
    %2264 = vmatpush1.bf16.msra.mxu0 0
    %2265 = vmatprep.subr.bf16.mxu0 0
    %2266 = vmatpush1.bf16.msra.mxu0 0
    %2267 = vmatprep.subr.bf16.mxu0 0
    %2268 = vmatpush1.bf16.msra.mxu0 0
    %2269 = vmatprep.subr.bf16.mxu0 %v244
    %2270 = vmatpush1.bf16.msra.mxu0 %v243
    %2271 = vmatprep.subr.bf16.mxu0 %v240
    %2272 = vmatpush1.bf16.msra.mxu0 %v239
    %2273 = vmatprep.subr.bf16.mxu0 %v236
    %2274 = vmatpush1.bf16.msra.mxu0 %v235
    %2275 = vmatprep.subr.bf16.mxu0 %v232
    %2276 = vmatpush1.bf16.msra.mxu0 %v231
    %2277 = vmatprep.subr.bf16.mxu0 0
    %2278 = vmatpush2.bf16.msra.mxu0 0
    %2279 = vmatprep.subr.bf16.mxu0 0
    %2280 = vmatpush2.bf16.msra.mxu0 0
    %2281 = vmatprep.subr.bf16.mxu0 0
    %2282 = vmatpush2.bf16.msra.mxu0 0
    %2283 = vmatprep.subr.bf16.mxu0 0
    %2284 = vmatpush2.bf16.msra.mxu0 0
    %2285 = vmatprep.subr.bf16.mxu0 0
    %2286 = vmatpush2.bf16.msra.mxu0 0
    %2287 = vmatprep.subr.bf16.mxu0 0
    %2288 = vmatpush2.bf16.msra.mxu0 0
    %2289 = vmatprep.subr.bf16.mxu0 0
    %2290 = vmatpush2.bf16.msra.mxu0 0
    %2291 = vmatprep.subr.bf16.mxu0 0
    %2292 = vmatpush2.bf16.msra.mxu0 0
    %2293 = vmatprep.mubr.bf16.mxu0 0
    %2294 = vmatmul.mubr.bf16.gmra.mxu0 %v2218
    %v2295 = vpop.f32.mrf.mxu0
    %v2296 = vadd.f32 %v105, %v2295
    %v2297 = vpop.f32.mrf.mxu0
    %v2298 = vadd.f32 %v109, %v2297
    %v2299 = vpop.f32.mrf.mxu0
    %v2300 = vpop.f32.mrf.mxu0
    %2301 = vdwg.mxu0
    %v2303 = vsel %vm261, %v2101, 0
    %2305 = vmatprep.subr.bf16.mxu0 0
    %2306 = vmatpush1.bf16.msra.mxu0 0
    %2307 = vmatprep.subr.bf16.mxu0 0
    %2308 = vmatpush1.bf16.msra.mxu0 0
    %2309 = vmatprep.subr.bf16.mxu0 0
    %2310 = vmatpush1.bf16.msra.mxu0 0
    %2311 = vmatprep.subr.bf16.mxu0 0
    %2312 = vmatpush1.bf16.msra.mxu0 0
    %2313 = vmatprep.subr.bf16.mxu0 %v713
    %2314 = vmatpush1.bf16.msra.mxu0 %v712
    %2315 = vmatprep.subr.bf16.mxu0 %v709
    %2316 = vmatpush1.bf16.msra.mxu0 %v708
    %2317 = vmatprep.subr.bf16.mxu0 %v705
    %2318 = vmatpush1.bf16.msra.mxu0 %v704
    %2319 = vmatprep.subr.bf16.mxu0 %v701
    %2320 = vmatpush1.bf16.msra.mxu0 %v700
    %2321 = vmatprep.subr.bf16.mxu0 0
    %2322 = vmatpush2.bf16.msra.mxu0 0
    %2323 = vmatprep.subr.bf16.mxu0 0
    %2324 = vmatpush2.bf16.msra.mxu0 0
    %2325 = vmatprep.subr.bf16.mxu0 0
    %2326 = vmatpush2.bf16.msra.mxu0 0
    %2327 = vmatprep.subr.bf16.mxu0 0
    %2328 = vmatpush2.bf16.msra.mxu0 0
    %2329 = vmatprep.subr.bf16.mxu0 0
    %2330 = vmatpush2.bf16.msra.mxu0 0
    %2331 = vmatprep.subr.bf16.mxu0 0
    %2332 = vmatpush2.bf16.msra.mxu0 0
    %2333 = vmatprep.subr.bf16.mxu0 0
    %2334 = vmatpush2.bf16.msra.mxu0 0
    %2335 = vmatprep.subr.bf16.mxu0 0
    %2336 = vmatpush2.bf16.msra.mxu0 0
    %2337 = vmatprep.mubr.bf16.mxu0 0
    %2338 = vmatmul.mubr.bf16.gmra.mxu0 %v2303
    %v2339 = vpop.f32.mrf.mxu0
    %v2340 = vadd.f32 0.0, %v2339
    %v2341 = vpop.f32.mrf.mxu0
    %v2342 = vadd.f32 0.0, %v2341
    %v2343 = vpop.f32.mrf.mxu0
    %v2344 = vpop.f32.mrf.mxu0
    %2345 = vdwg.mxu0
    %2346 = vmatprep.subr.bf16.mxu0 0
    %2347 = vmatpush1.bf16.msra.mxu0 0
    %2348 = vmatprep.subr.bf16.mxu0 0
    %2349 = vmatpush1.bf16.msra.mxu0 0
    %2350 = vmatprep.subr.bf16.mxu0 0
    %2351 = vmatpush1.bf16.msra.mxu0 0
    %2352 = vmatprep.subr.bf16.mxu0 0
    %2353 = vmatpush1.bf16.msra.mxu0 0
    %2354 = vmatprep.subr.bf16.mxu0 %v715
    %2355 = vmatpush1.bf16.msra.mxu0 %v714
    %2356 = vmatprep.subr.bf16.mxu0 %v711
    %2357 = vmatpush1.bf16.msra.mxu0 %v710
    %2358 = vmatprep.subr.bf16.mxu0 %v707
    %2359 = vmatpush1.bf16.msra.mxu0 %v706
    %2360 = vmatprep.subr.bf16.mxu0 %v703
    %2361 = vmatpush1.bf16.msra.mxu0 %v702
    %2362 = vmatprep.subr.bf16.mxu0 0
    %2363 = vmatpush2.bf16.msra.mxu0 0
    %2364 = vmatprep.subr.bf16.mxu0 0
    %2365 = vmatpush2.bf16.msra.mxu0 0
    %2366 = vmatprep.subr.bf16.mxu0 0
    %2367 = vmatpush2.bf16.msra.mxu0 0
    %2368 = vmatprep.subr.bf16.mxu0 0
    %2369 = vmatpush2.bf16.msra.mxu0 0
    %2370 = vmatprep.subr.bf16.mxu0 0
    %2371 = vmatpush2.bf16.msra.mxu0 0
    %2372 = vmatprep.subr.bf16.mxu0 0
    %2373 = vmatpush2.bf16.msra.mxu0 0
    %2374 = vmatprep.subr.bf16.mxu0 0
    %2375 = vmatpush2.bf16.msra.mxu0 0
    %2376 = vmatprep.subr.bf16.mxu0 0
    %2377 = vmatpush2.bf16.msra.mxu0 0
    %2378 = vmatprep.mubr.bf16.mxu0 0
    %2379 = vmatmul.mubr.bf16.gmra.mxu0 %v2303
    %v2380 = vpop.f32.mrf.mxu0
    %v2381 = vadd.f32 0.0, %v2380
    %v2382 = vpop.f32.mrf.mxu0
    %v2383 = vadd.f32 0.0, %v2382
    %v2384 = vpop.f32.mrf.mxu0
    %v2385 = vpop.f32.mrf.mxu0
    %2386 = vdwg.mxu0
    %v2387 = vadd.f32 %v2255, %v2340
    %v2388 = vadd.f32 %v2257, %v2342
    %v2389 = vadd.f32 %v2296, %v2381
    %v2390 = vadd.f32 %v2298, %v2383
    %v2391 = vxor.u32 %v2387, 2147483648
    %v2392 = vxor.u32 %v2388, 2147483648
    %v2393 = vxor.u32 %v2389, 2147483648
    %v2394 = vmul.f32 %v2391, 1.442695
    %v2395 = vpow.pop %v2394
    %v2396 = vmul.f32 %v2392, 1.442695
    %v2397 = vpow.pop %v2396
    %v2398 = vmul.f32 %v2393, 1.442695
    %v2399 = vpow.pop %v2398
    %v2400 = vadd.f32 %v2395, 1.0
    %v2401 = vadd.f32 %v2397, 1.0
    %v2402 = vadd.f32 %v2399, 1.0
    %v2403 = vrcp.pop %v2400
    %v2404 = vmul.f32 1.0, %v2403
    %v2405 = vrcp.pop %v2401
    %v2406 = vmul.f32 1.0, %v2405
    %v2407 = vrcp.pop %v2402
    %v2408 = vmul.f32 1.0, %v2407
    %v2409 = vtanh.pop %v2390
    %v2410 = vmul.f32 %v2406, %v2098
    %v2411 = vmul.f32 %v2404, %v2409
    %v2412 = vadd.f32 %v2410, %v2411
    %v2413 = vtanh.pop %v2412
    %v2414 = vmul.f32 %v2408, %v2413
    %v2415 = vpack.c.bf16 %v2414, %v2414
    %v2416 = vld [vmem:[#allocation6 + $0xe0] sm:$0xff]
    %v2417 = vld [vmem:[#allocation6 + $0xe8] sm:$0xff]
    %v2418 = vld [vmem:[#allocation6 + $0xf0] sm:$0xff]
    %v2419 = vld [vmem:[#allocation6 + $0xf8] sm:$0xff]
    %2420 = vmatprep.subr.bf16.mxu0 0
    %2421 = vmatpush1.bf16.msra.mxu0 0
    %2422 = vmatprep.subr.bf16.mxu0 0
    %2423 = vmatpush1.bf16.msra.mxu0 0
    %2424 = vmatprep.subr.bf16.mxu0 0
    %2425 = vmatpush1.bf16.msra.mxu0 0
    %2426 = vmatprep.subr.bf16.mxu0 0
    %2427 = vmatpush1.bf16.msra.mxu0 0
    %2428 = vmatprep.subr.bf16.mxu0 %v437
    %2429 = vmatpush1.bf16.msra.mxu0 %v436
    %2430 = vmatprep.subr.bf16.mxu0 %v433
    %2431 = vmatpush1.bf16.msra.mxu0 %v432
    %2432 = vmatprep.subr.bf16.mxu0 %v429
    %2433 = vmatpush1.bf16.msra.mxu0 %v428
    %2434 = vmatprep.subr.bf16.mxu0 %v425
    %2435 = vmatpush1.bf16.msra.mxu0 %v424
    %2436 = vmatprep.subr.bf16.mxu0 0
    %2437 = vmatpush2.bf16.msra.mxu0 0
    %2438 = vmatprep.subr.bf16.mxu0 0
    %2439 = vmatpush2.bf16.msra.mxu0 0
    %2440 = vmatprep.subr.bf16.mxu0 0
    %2441 = vmatpush2.bf16.msra.mxu0 0
    %2442 = vmatprep.subr.bf16.mxu0 0
    %2443 = vmatpush2.bf16.msra.mxu0 0
    %2444 = vmatprep.subr.bf16.mxu0 0
    %2445 = vmatpush2.bf16.msra.mxu0 0
    %2446 = vmatprep.subr.bf16.mxu0 0
    %2447 = vmatpush2.bf16.msra.mxu0 0
    %2448 = vmatprep.subr.bf16.mxu0 0
    %2449 = vmatpush2.bf16.msra.mxu0 0
    %2450 = vmatprep.subr.bf16.mxu0 0
    %2451 = vmatpush2.bf16.msra.mxu0 0
    %2452 = vmatprep.mubr.bf16.mxu0 0
    %2453 = vmatmul.mubr.bf16.gmra.mxu0 %v2218
    %v2454 = vpop.f32.mrf.mxu0
    %v2455 = vadd.f32 0.0, %v2454
    %v2456 = vpop.f32.mrf.mxu0
    %v2457 = vadd.f32 0.0, %v2456
    %v2458 = vpop.f32.mrf.mxu0
    %v2459 = vpop.f32.mrf.mxu0
    %2460 = vdwg.mxu0
    %2461 = vmatprep.subr.bf16.mxu0 0
    %2462 = vmatpush1.bf16.msra.mxu0 0
    %2463 = vmatprep.subr.bf16.mxu0 0
    %2464 = vmatpush1.bf16.msra.mxu0 0
    %2465 = vmatprep.subr.bf16.mxu0 0
    %2466 = vmatpush1.bf16.msra.mxu0 0
    %2467 = vmatprep.subr.bf16.mxu0 0
    %2468 = vmatpush1.bf16.msra.mxu0 0
    %2469 = vmatprep.subr.bf16.mxu0 %v439
    %2470 = vmatpush1.bf16.msra.mxu0 %v438
    %2471 = vmatprep.subr.bf16.mxu0 %v435
    %2472 = vmatpush1.bf16.msra.mxu0 %v434
    %2473 = vmatprep.subr.bf16.mxu0 %v431
    %2474 = vmatpush1.bf16.msra.mxu0 %v430
    %2475 = vmatprep.subr.bf16.mxu0 %v427
    %2476 = vmatpush1.bf16.msra.mxu0 %v426
    %2477 = vmatprep.subr.bf16.mxu0 0
    %2478 = vmatpush2.bf16.msra.mxu0 0
    %2479 = vmatprep.subr.bf16.mxu0 0
    %2480 = vmatpush2.bf16.msra.mxu0 0
    %2481 = vmatprep.subr.bf16.mxu0 0
    %2482 = vmatpush2.bf16.msra.mxu0 0
    %2483 = vmatprep.subr.bf16.mxu0 0
    %2484 = vmatpush2.bf16.msra.mxu0 0
    %2485 = vmatprep.subr.bf16.mxu0 0
    %2486 = vmatpush2.bf16.msra.mxu0 0
    %2487 = vmatprep.subr.bf16.mxu0 0
    %2488 = vmatpush2.bf16.msra.mxu0 0
    %2489 = vmatprep.subr.bf16.mxu0 0
    %2490 = vmatpush2.bf16.msra.mxu0 0
    %2491 = vmatprep.subr.bf16.mxu0 0
    %2492 = vmatpush2.bf16.msra.mxu0 0
    %2493 = vmatprep.mubr.bf16.mxu0 0
    %2494 = vmatmul.mubr.bf16.gmra.mxu0 %v2218
    %v2495 = vpop.f32.mrf.mxu0
    %v2496 = vadd.f32 0.0, %v2495
    %v2497 = vpop.f32.mrf.mxu0
    %v2498 = vadd.f32 0.0, %v2497
    %v2499 = vpop.f32.mrf.mxu0
    %v2500 = vpop.f32.mrf.mxu0
    %2501 = vdwg.mxu0
    %v2502 = vadd.f32 %v2416, %v2455
    %v2503 = vadd.f32 %v2417, %v2457
    %v2504 = vadd.f32 %v2418, %v2496
    %v2505 = vadd.f32 %v2419, %v2498
    %v2506 = vxor.u32 %v2502, 2147483648
    %v2507 = vxor.u32 %v2503, 2147483648
    %v2508 = vxor.u32 %v2504, 2147483648
    %v2509 = vmul.f32 %v2506, 1.442695
    %v2510 = vpow.pop %v2509
    %v2511 = vmul.f32 %v2507, 1.442695
    %v2512 = vpow.pop %v2511
    %v2513 = vmul.f32 %v2508, 1.442695
    %v2514 = vpow.pop %v2513
    %v2515 = vadd.f32 %v2510, 1.0
    %v2516 = vadd.f32 %v2512, 1.0
    %v2517 = vadd.f32 %v2514, 1.0
    %v2518 = vrcp.pop %v2515
    %v2519 = vmul.f32 1.0, %v2518
    %v2520 = vrcp.pop %v2516
    %v2521 = vmul.f32 1.0, %v2520
    %v2522 = vrcp.pop %v2517
    %v2523 = vmul.f32 1.0, %v2522
    %v2524 = vtanh.pop %v2505
    %v2525 = vmul.f32 %v2521, %v2213
    %v2526 = vmul.f32 %v2519, %v2524
    %v2527 = vadd.f32 %v2525, %v2526
    %v2528 = vtanh.pop %v2527
    %v2529 = vmul.f32 %v2523, %v2528
    %v2530 = vpack.c.bf16 %v2529, %v2529
    %v2532 = vsel %vm261, %v2530, 0
    %2534 = vmatprep.subr.bf16.mxu0 0
    %2535 = vmatpush1.bf16.msra.mxu0 0
    %2536 = vmatprep.subr.bf16.mxu0 0
    %2537 = vmatpush1.bf16.msra.mxu0 0
    %2538 = vmatprep.subr.bf16.mxu0 0
    %2539 = vmatpush1.bf16.msra.mxu0 0
    %2540 = vmatprep.subr.bf16.mxu0 0
    %2541 = vmatpush1.bf16.msra.mxu0 0
    %2542 = vmatprep.subr.bf16.mxu0 %v242
    %2543 = vmatpush1.bf16.msra.mxu0 %v241
    %2544 = vmatprep.subr.bf16.mxu0 %v238
    %2545 = vmatpush1.bf16.msra.mxu0 %v237
    %2546 = vmatprep.subr.bf16.mxu0 %v234
    %2547 = vmatpush1.bf16.msra.mxu0 %v233
    %2548 = vmatprep.subr.bf16.mxu0 %v230
    %2549 = vmatpush1.bf16.msra.mxu0 %v229
    %2550 = vmatprep.subr.bf16.mxu0 0
    %2551 = vmatpush2.bf16.msra.mxu0 0
    %2552 = vmatprep.subr.bf16.mxu0 0
    %2553 = vmatpush2.bf16.msra.mxu0 0
    %2554 = vmatprep.subr.bf16.mxu0 0
    %2555 = vmatpush2.bf16.msra.mxu0 0
    %2556 = vmatprep.subr.bf16.mxu0 0
    %2557 = vmatpush2.bf16.msra.mxu0 0
    %2558 = vmatprep.subr.bf16.mxu0 0
    %2559 = vmatpush2.bf16.msra.mxu0 0
    %2560 = vmatprep.subr.bf16.mxu0 0
    %2561 = vmatpush2.bf16.msra.mxu0 0
    %2562 = vmatprep.subr.bf16.mxu0 0
    %2563 = vmatpush2.bf16.msra.mxu0 0
    %2564 = vmatprep.subr.bf16.mxu0 0
    %2565 = vmatpush2.bf16.msra.mxu0 0
    %2566 = vmatprep.mubr.bf16.mxu0 0
    %2567 = vmatmul.mubr.bf16.gmra.mxu0 %v2532
    %v2568 = vpop.f32.mrf.mxu0
    %v2569 = vadd.f32 %v97, %v2568
    %v2570 = vpop.f32.mrf.mxu0
    %v2571 = vadd.f32 %v101, %v2570
    %v2572 = vpop.f32.mrf.mxu0
    %v2573 = vpop.f32.mrf.mxu0
    %2574 = vdwg.mxu0
    %2575 = vmatprep.subr.bf16.mxu0 0
    %2576 = vmatpush1.bf16.msra.mxu0 0
    %2577 = vmatprep.subr.bf16.mxu0 0
    %2578 = vmatpush1.bf16.msra.mxu0 0
    %2579 = vmatprep.subr.bf16.mxu0 0
    %2580 = vmatpush1.bf16.msra.mxu0 0
    %2581 = vmatprep.subr.bf16.mxu0 0
    %2582 = vmatpush1.bf16.msra.mxu0 0
    %2583 = vmatprep.subr.bf16.mxu0 %v244
    %2584 = vmatpush1.bf16.msra.mxu0 %v243
    %2585 = vmatprep.subr.bf16.mxu0 %v240
    %2586 = vmatpush1.bf16.msra.mxu0 %v239
    %2587 = vmatprep.subr.bf16.mxu0 %v236
    %2588 = vmatpush1.bf16.msra.mxu0 %v235
    %2589 = vmatprep.subr.bf16.mxu0 %v232
    %2590 = vmatpush1.bf16.msra.mxu0 %v231
    %2591 = vmatprep.subr.bf16.mxu0 0
    %2592 = vmatpush2.bf16.msra.mxu0 0
    %2593 = vmatprep.subr.bf16.mxu0 0
    %2594 = vmatpush2.bf16.msra.mxu0 0
    %2595 = vmatprep.subr.bf16.mxu0 0
    %2596 = vmatpush2.bf16.msra.mxu0 0
    %2597 = vmatprep.subr.bf16.mxu0 0
    %2598 = vmatpush2.bf16.msra.mxu0 0
    %2599 = vmatprep.subr.bf16.mxu0 0
    %2600 = vmatpush2.bf16.msra.mxu0 0
    %2601 = vmatprep.subr.bf16.mxu0 0
    %2602 = vmatpush2.bf16.msra.mxu0 0
    %2603 = vmatprep.subr.bf16.mxu0 0
    %2604 = vmatpush2.bf16.msra.mxu0 0
    %2605 = vmatprep.subr.bf16.mxu0 0
    %2606 = vmatpush2.bf16.msra.mxu0 0
    %2607 = vmatprep.mubr.bf16.mxu0 0
    %2608 = vmatmul.mubr.bf16.gmra.mxu0 %v2532
    %v2609 = vpop.f32.mrf.mxu0
    %v2610 = vadd.f32 %v105, %v2609
    %v2611 = vpop.f32.mrf.mxu0
    %v2612 = vadd.f32 %v109, %v2611
    %v2613 = vpop.f32.mrf.mxu0
    %v2614 = vpop.f32.mrf.mxu0
    %2615 = vdwg.mxu0
    %v2617 = vsel %vm261, %v2415, 0
    %2619 = vmatprep.subr.bf16.mxu0 0
    %2620 = vmatpush1.bf16.msra.mxu0 0
    %2621 = vmatprep.subr.bf16.mxu0 0
    %2622 = vmatpush1.bf16.msra.mxu0 0
    %2623 = vmatprep.subr.bf16.mxu0 0
    %2624 = vmatpush1.bf16.msra.mxu0 0
    %2625 = vmatprep.subr.bf16.mxu0 0
    %2626 = vmatpush1.bf16.msra.mxu0 0
    %2627 = vmatprep.subr.bf16.mxu0 %v713
    %2628 = vmatpush1.bf16.msra.mxu0 %v712
    %2629 = vmatprep.subr.bf16.mxu0 %v709
    %2630 = vmatpush1.bf16.msra.mxu0 %v708
    %2631 = vmatprep.subr.bf16.mxu0 %v705
    %2632 = vmatpush1.bf16.msra.mxu0 %v704
    %2633 = vmatprep.subr.bf16.mxu0 %v701
    %2634 = vmatpush1.bf16.msra.mxu0 %v700
    %2635 = vmatprep.subr.bf16.mxu0 0
    %2636 = vmatpush2.bf16.msra.mxu0 0
    %2637 = vmatprep.subr.bf16.mxu0 0
    %2638 = vmatpush2.bf16.msra.mxu0 0
    %2639 = vmatprep.subr.bf16.mxu0 0
    %2640 = vmatpush2.bf16.msra.mxu0 0
    %2641 = vmatprep.subr.bf16.mxu0 0
    %2642 = vmatpush2.bf16.msra.mxu0 0
    %2643 = vmatprep.subr.bf16.mxu0 0
    %2644 = vmatpush2.bf16.msra.mxu0 0
    %2645 = vmatprep.subr.bf16.mxu0 0
    %2646 = vmatpush2.bf16.msra.mxu0 0
    %2647 = vmatprep.subr.bf16.mxu0 0
    %2648 = vmatpush2.bf16.msra.mxu0 0
    %2649 = vmatprep.subr.bf16.mxu0 0
    %2650 = vmatpush2.bf16.msra.mxu0 0
    %2651 = vmatprep.mubr.bf16.mxu0 0
    %2652 = vmatmul.mubr.bf16.gmra.mxu0 %v2617
    %v2653 = vpop.f32.mrf.mxu0
    %v2654 = vadd.f32 0.0, %v2653
    %v2655 = vpop.f32.mrf.mxu0
    %v2656 = vadd.f32 0.0, %v2655
    %v2657 = vpop.f32.mrf.mxu0
    %v2658 = vpop.f32.mrf.mxu0
    %2659 = vdwg.mxu0
    %2660 = vmatprep.subr.bf16.mxu0 0
    %2661 = vmatpush1.bf16.msra.mxu0 0
    %2662 = vmatprep.subr.bf16.mxu0 0
    %2663 = vmatpush1.bf16.msra.mxu0 0
    %2664 = vmatprep.subr.bf16.mxu0 0
    %2665 = vmatpush1.bf16.msra.mxu0 0
    %2666 = vmatprep.subr.bf16.mxu0 0
    %2667 = vmatpush1.bf16.msra.mxu0 0
    %2668 = vmatprep.subr.bf16.mxu0 %v715
    %2669 = vmatpush1.bf16.msra.mxu0 %v714
    %2670 = vmatprep.subr.bf16.mxu0 %v711
    %2671 = vmatpush1.bf16.msra.mxu0 %v710
    %2672 = vmatprep.subr.bf16.mxu0 %v707
    %2673 = vmatpush1.bf16.msra.mxu0 %v706
    %2674 = vmatprep.subr.bf16.mxu0 %v703
    %2675 = vmatpush1.bf16.msra.mxu0 %v702
    %2676 = vmatprep.subr.bf16.mxu0 0
    %2677 = vmatpush2.bf16.msra.mxu0 0
    %2678 = vmatprep.subr.bf16.mxu0 0
    %2679 = vmatpush2.bf16.msra.mxu0 0
    %2680 = vmatprep.subr.bf16.mxu0 0
    %2681 = vmatpush2.bf16.msra.mxu0 0
    %2682 = vmatprep.subr.bf16.mxu0 0
    %2683 = vmatpush2.bf16.msra.mxu0 0
    %2684 = vmatprep.subr.bf16.mxu0 0
    %2685 = vmatpush2.bf16.msra.mxu0 0
    %2686 = vmatprep.subr.bf16.mxu0 0
    %2687 = vmatpush2.bf16.msra.mxu0 0
    %2688 = vmatprep.subr.bf16.mxu0 0
    %2689 = vmatpush2.bf16.msra.mxu0 0
    %2690 = vmatprep.subr.bf16.mxu0 0
    %2691 = vmatpush2.bf16.msra.mxu0 0
    %2692 = vmatprep.mubr.bf16.mxu0 0
    %2693 = vmatmul.mubr.bf16.gmra.mxu0 %v2617
    %v2694 = vpop.f32.mrf.mxu0
    %v2695 = vadd.f32 0.0, %v2694
    %v2696 = vpop.f32.mrf.mxu0
    %v2697 = vadd.f32 0.0, %v2696
    %v2698 = vpop.f32.mrf.mxu0
    %v2699 = vpop.f32.mrf.mxu0
    %2700 = vdwg.mxu0
    %v2701 = vadd.f32 %v2569, %v2654
    %v2702 = vadd.f32 %v2571, %v2656
    %v2703 = vadd.f32 %v2610, %v2695
    %v2704 = vadd.f32 %v2612, %v2697
    %v2705 = vxor.u32 %v2701, 2147483648
    %v2706 = vxor.u32 %v2702, 2147483648
    %v2707 = vxor.u32 %v2703, 2147483648
    %v2708 = vmul.f32 %v2705, 1.442695
    %v2709 = vpow.pop %v2708
    %v2710 = vmul.f32 %v2706, 1.442695
    %v2711 = vpow.pop %v2710
    %v2712 = vmul.f32 %v2707, 1.442695
    %v2713 = vpow.pop %v2712
    %v2714 = vadd.f32 %v2709, 1.0
    %v2715 = vadd.f32 %v2711, 1.0
    %v2716 = vadd.f32 %v2713, 1.0
    %v2717 = vrcp.pop %v2714
    %v2718 = vmul.f32 1.0, %v2717
    %v2719 = vrcp.pop %v2715
    %v2720 = vmul.f32 1.0, %v2719
    %v2721 = vrcp.pop %v2716
    %v2722 = vmul.f32 1.0, %v2721
    %v2723 = vtanh.pop %v2704
    %v2724 = vmul.f32 %v2720, %v2412
    %v2725 = vmul.f32 %v2718, %v2723
    %v2726 = vadd.f32 %v2724, %v2725
    %v2727 = vtanh.pop %v2726
    %v2728 = vmul.f32 %v2722, %v2727
    %v2729 = vld [vmem:[%s5] sm:$0xff]
    %v2730 = vld [vmem:[%s5 + $0x8] sm:$0xff]
    %v2731 = vld [vmem:[%s5 + $0x10] sm:$0xff]
    %v2732 = vld [vmem:[%s5 + $0x18] sm:$0xff]
    %v2733 = vld [vmem:[%s5 + $0x20] sm:$0xff]
    %v2734 = vld [vmem:[%s5 + $0x28] sm:$0xff]
    %v2735 = vld [vmem:[%s5 + $0x30] sm:$0xff]
    %v2736 = vld [vmem:[%s5 + $0x38] sm:$0xff]
    %v2737 = vld [vmem:[#allocation5] sm:$0x1]
    %v2739 = vlaneseq
    %v2740 = vshrl.u32 %v2739, 7
    %v2741 = vsub.s32 0, %v2740
    %v2742 = vrot.slane %v2737, %v2741
    %v2745 = vsel %vm261, %v2728, 0
    %2747 = vmatprep.subr.mxu0 0.0
    %2748 = vmatpush1.msra.mxu0 0.0
    %2749 = vmatprep.subr.mxu0 0.0
    %2750 = vmatpush1.msra.mxu0 0.0
    %2751 = vmatprep.subr.mxu0 0.0
    %2752 = vmatpush1.msra.mxu0 0.0
    %2753 = vmatprep.subr.mxu0 0.0
    %2754 = vmatpush1.msra.mxu0 0.0
    %2755 = vmatprep.subr.mxu0 0.0
    %2756 = vmatpush1.msra.mxu0 0.0
    %2757 = vmatprep.subr.mxu0 0.0
    %2758 = vmatpush1.msra.mxu0 0.0
    %2759 = vmatprep.subr.mxu0 0.0
    %2760 = vmatpush1.msra.mxu0 0.0
    %2761 = vmatprep.subr.mxu0 0.0
    %2762 = vmatpush1.msra.mxu0 0.0
    %2763 = vmatprep.subr.mxu0 0.0
    %2764 = vmatpush1.msra.mxu0 %v2736
    %2765 = vmatprep.subr.mxu0 0.0
    %2766 = vmatpush1.msra.mxu0 %v2735
    %2767 = vmatprep.subr.mxu0 0.0
    %2768 = vmatpush1.msra.mxu0 %v2734
    %2769 = vmatprep.subr.mxu0 0.0
    %2770 = vmatpush1.msra.mxu0 %v2733
    %2771 = vmatprep.subr.mxu0 0.0
    %2772 = vmatpush1.msra.mxu0 %v2732
    %2773 = vmatprep.subr.mxu0 0.0
    %2774 = vmatpush1.msra.mxu0 %v2731
    %2775 = vmatprep.subr.mxu0 0.0
    %2776 = vmatpush1.msra.mxu0 %v2730
    %2777 = vmatprep.subr.mxu0 0.0
    %2778 = vmatpush1.msra.mxu0 %v2729
    %2779 = vmatprep.subr.mxu0 0.0
    %2780 = vmatpush2.msra.mxu0 0.0
    %2781 = vmatprep.subr.mxu0 0.0
    %2782 = vmatpush2.msra.mxu0 0.0
    %2783 = vmatprep.subr.mxu0 0.0
    %2784 = vmatpush2.msra.mxu0 0.0
    %2785 = vmatprep.subr.mxu0 0.0
    %2786 = vmatpush2.msra.mxu0 0.0
    %2787 = vmatprep.subr.mxu0 0.0
    %2788 = vmatpush2.msra.mxu0 0.0
    %2789 = vmatprep.subr.mxu0 0.0
    %2790 = vmatpush2.msra.mxu0 0.0
    %2791 = vmatprep.subr.mxu0 0.0
    %2792 = vmatpush2.msra.mxu0 0.0
    %2793 = vmatprep.subr.mxu0 0.0
    %2794 = vmatpush2.msra.mxu0 0.0
    %2795 = vmatprep.subr.mxu0 0.0
    %2796 = vmatpush2.msra.mxu0 0.0
    %2797 = vmatprep.subr.mxu0 0.0
    %2798 = vmatpush2.msra.mxu0 0.0
    %2799 = vmatprep.subr.mxu0 0.0
    %2800 = vmatpush2.msra.mxu0 0.0
    %2801 = vmatprep.subr.mxu0 0.0
    %2802 = vmatpush2.msra.mxu0 0.0
    %2803 = vmatprep.subr.mxu0 0.0
    %2804 = vmatpush2.msra.mxu0 0.0
    %2805 = vmatprep.subr.mxu0 0.0
    %2806 = vmatpush2.msra.mxu0 0.0
    %2807 = vmatprep.subr.mxu0 0.0
    %2808 = vmatpush2.msra.mxu0 0.0
    %2809 = vmatprep.subr.mxu0 0.0
    %2810 = vmatpush2.msra.mxu0 0.0
    %2811 = vmatprep.mubr.f32.mxu0 0.0
    %2812 = vmatmul.mubr.f32.gmra.mxu0 %v2745
    %v2813 = vpop.f32.mrf.mxu0
    %v2814 = vadd.f32 %v2742, %v2813
    %v2815 = vpop.f32.mrf.mxu0
    %2816 = vdwg.mxu0
    %vm2817 = vcmask 7168
    %2818 = vst.msk [vmem:[%s7] sm:$0xff] %vm2817, %v2814
    // Predicated region
    $region38: #{tpu_custom_call.1} parent=1 // pred_check
      _
    $region39: #{tpu_custom_call.1} parent=1 // pred_check_branch
      %2820 = sbr.rel (0) target = $region41
    $region40: #{tpu_custom_call.1} parent=1 // pred_region
      _
    $region41: #{tpu_custom_call.1} parent=1 // pred_fallthru
      _
    // Predicated region
    $region42: #{tpu_custom_call.1} parent=1 // pred_check
      _
    $region43: #{tpu_custom_call.1} parent=1 // pred_check_branch
      %2822 = sbr.rel (0) target = $region45
    $region44: #{tpu_custom_call.1} parent=1 // pred_region
      _
    $region45: #{tpu_custom_call.1} parent=1 // pred_fallthru
      _
    %2823 = vsyncpa [#allocation7], 1
    %2824 = vsyncpa [#allocation9], 1
  %2825 = vsyncmov [#allocation4]
  %s2826 = vpop.sfrf %2825
  %p2827 = scmp.eq.s32.totalorder %s2826, 0
  %p2828 = pneg %p2827
  %2830 = shalt.err (%p2828)
  %s2831 = scalar_lea.sflag [#allocation4], 1
  %2832 = vsyncmov %s2831
  %s2833 = vpop.sfrf %2832
  %p2834 = scmp.eq.s32.totalorder %s2833, 0
  %p2835 = pneg %p2834
  %2837 = shalt.err (%p2835)

</llo_original>
